<compile_context>
chip_gen: v7x
topology: tpu7x:2x2x1
jax: 0.10.0
libtpu: 0.0.40
codegen_flags: <defaults>
</compile_context>

<pallas_src>
import functools

import jax
import jax.numpy as jnp
from jax.experimental import pallas as pl
from jax.experimental.pallas import tpu as pltpu


# ----------------------------------------------------------------------------
# Pallas kernel
# ----------------------------------------------------------------------------
def _layer_norm(z, gamma, beta, eps=1e-5):
    # z: (rows, D) f32; gamma/beta: (1, D) f32.  Biased variance (PyTorch LN).
    mu = jnp.mean(z, axis=-1, keepdims=True)
    var = jnp.mean((z - mu) ** 2, axis=-1, keepdims=True)
    return (z - mu) * jax.lax.rsqrt(var + eps) * gamma + beta


def encoder_layer_kernel(x_ref, wqkv_ref, bqkv_ref, wo_ref, bo_ref,
                         ln1g_ref, ln1b_ref, w1_ref, b1_ref, w2_ref, b2_ref,
                         ln2g_ref, ln2b_ref, o_ref, attn_scratch, *,
                         num_heads, seq_len, d_model, apply_leaky_relu):
    # x_ref block: (bt, S, D) or lane-dense (bt, S*D) for the current batch tile.
    bt = x_ref.shape[0]
    S, D = seq_len, d_model
    dh = D // num_heads
    scale = 1.0 / (dh ** 0.5)
    rows = bt * S

    # Load the batch tile; all non-matmul math in f32 regardless of carried dtype.
    x2d = x_ref[...].astype(jnp.float32).reshape(rows, D)

    # --- QKV projection: one big rank-2 matmul (bf16 operands, f32 accum) -------
    qkv = jnp.dot(x2d.astype(jnp.bfloat16), wqkv_ref[...],
                  preferred_element_type=jnp.float32) + bqkv_ref[...]     # (rows, 3D)
    qkv = qkv.reshape(bt, S, 3 * D)
    q = qkv[:, :, :D] * scale        # fold 1/sqrt(dh) into Q once (bt*S*D muls)
    k = qkv[:, :, D:2 * D]
    v = qkv[:, :, 2 * D:]

    # --- multi-head self-attention, batched over the whole batch tile -----------
    for h in range(num_heads):                    # small static unroll; batched ops
        qh = q[:, :, h * dh:(h + 1) * dh].astype(jnp.bfloat16)   # (bt, S, dh)
        kh = k[:, :, h * dh:(h + 1) * dh].astype(jnp.bfloat16)
        vh = v[:, :, h * dh:(h + 1) * dh].astype(jnp.bfloat16)
        s = jnp.einsum('bqd,bkd->bqk', qh, kh,
                       preferred_element_type=jnp.float32)               # (bt, S, S)
        s = s - jnp.max(s, axis=-1, keepdims=True)
        p = jnp.exp(s)
        p = p * pl.reciprocal(jnp.sum(p, axis=-1, keepdims=True), approx=True)
        # Write each head directly into the VMEM scratch accumulator: bounds the
        # live range of the (bt,S,S) scores and avoids a concat lane-relayout.
        attn_scratch[:, :, h * dh:(h + 1) * dh] = jnp.einsum(
            'bqk,bkd->bqd', p.astype(jnp.bfloat16), vh,
            preferred_element_type=jnp.float32)                          # (bt, S, dh)

    attn = jnp.dot(attn_scratch[...].reshape(rows, D).astype(jnp.bfloat16),
                   wo_ref[...], preferred_element_type=jnp.float32) + bo_ref[...]

    # --- residual + LayerNorm 1 (f32) --------------------------------------------
    y = _layer_norm(x2d + attn, ln1g_ref[...], ln1b_ref[...])

    # --- feed-forward (ReLU activation, PyTorch default) -------------------------
    ff = jnp.dot(y.astype(jnp.bfloat16), w1_ref[...],
                 preferred_element_type=jnp.float32) + b1_ref[...]
    ff = jnp.maximum(ff, 0.0)
    ff = jnp.dot(ff.astype(jnp.bfloat16), w2_ref[...],
                 preferred_element_type=jnp.float32) + b2_ref[...]

    # --- residual + LayerNorm 2 ---------------------------------------------------
    out = _layer_norm(y + ff, ln2g_ref[...], ln2b_ref[...])

    # --- fused final activation (only on the last encoder layer) -----------------
    if apply_leaky_relu:
        out = jnp.where(out > 0.0, out, 0.01 * out)

    o_ref[...] = out.reshape(o_ref.shape).astype(o_ref.dtype)


# ----------------------------------------------------------------------------
# Tiling / VMEM heuristics (generation-aware)
# ----------------------------------------------------------------------------
_PARAM_ORDER = ("wqkv", "bqkv", "wo", "bo", "ln1g", "ln1b",
                "w1", "b1", "w2", "b2", "ln2g", "ln2b")

_GEN_CFG = {
    # v7x: 64 MiB VMEM per TC, 2 TensorCores per chip -> keep grid >= 2.
    7: dict(vmem_budget=44 << 20, vmem_limit=60 << 20, target_rows=512, min_grid=2),
    # v6e: 128 MiB VMEM, 256x256 MXU -> large row tiles pay off.
    6: dict(vmem_budget=80 << 20, vmem_limit=100 << 20, target_rows=512, min_grid=1),
    # v5e: 128 MiB physical but low HBM BW; 128-wide MXU -> smaller targets.
    5: dict(vmem_budget=56 << 20, vmem_limit=80 << 20, target_rows=256, min_grid=1),
}


def _tpu_generation():
    try:
        kind = jax.devices()[0].device_kind.lower()
    except Exception:
        return 6
    if "v7" in kind or "tpu7" in kind:
        return 7
    if "v6" in kind:
        return 6
    if "v5" in kind:
        return 5
    return 6


def _layer_vmem_model(S, D, dff, in_bytes, out_bytes):
    """(resident_weight_bytes, per_token_row_bytes) rough VMEM model."""
    weight_bytes = 2 * (3 * D * D + D * D + 2 * D * dff)       # bf16 matmul weights
    weight_bytes += 4 * (3 * D + D + dff + D + 4 * D)           # f32 biases + LN params
    # f32 intermediates per token row: qkv (3D) + attn scratch (D) + one live
    # (S,) score row per query + FFN hidden (dff) + ~4 extra D-wide temporaries.
    per_row = 4 * (3 * D + D + S + dff + 4 * D)
    # double-buffered input/output tiles
    per_row += 2 * D * (in_bytes + out_bytes)
    return weight_bytes, per_row


def _choose_batch_tile(B, S, D, dff, in_bytes, out_bytes, cfg):
    weight_bytes, per_row = _layer_vmem_model(S, D, dff, in_bytes, out_bytes)
    rows_fit = max(1, (cfg["vmem_budget"] - weight_bytes) // per_row)
    rows = min(cfg["target_rows"], rows_fit)
    bt = max(1, min(B, rows // max(S, 1)))
    if cfg["min_grid"] > 1:              # keep >= 2 grid steps for 2 TensorCores
        bt = min(bt, max(1, B // cfg["min_grid"]))
    while B % bt != 0:                   # bt must divide B
        bt -= 1
    return bt


# ----------------------------------------------------------------------------
# Wrappers
# ----------------------------------------------------------------------------
def _call_layer(x, params, num_heads, S, D, *, apply_leaky_relu, out_dtype,
                single_buffer_weights, cfg):
    """x: (B, S, D) or lane-dense (B, S*D).  One full TransformerEncoderLayer."""
    B = x.shape[0]
    flat = (x.ndim == 2)
    weights = [params[name] for name in _PARAM_ORDER]
    dff = params["w1"].shape[1]
    out_itemsize = jnp.dtype(out_dtype).itemsize
    bt = _choose_batch_tile(B, S, D, dff, x.dtype.itemsize, out_itemsize, cfg)

    if flat:
        x_spec = pl.BlockSpec((bt, S * D), lambda b: (b, 0))
        o_spec = pl.BlockSpec((bt, S * D), lambda b: (b, 0))
        out_shape = jax.ShapeDtypeStruct((B, S * D), out_dtype)
    else:
        x_spec = pl.BlockSpec((bt, S, D), lambda b: (b, 0, 0))
        o_spec = pl.BlockSpec((bt, S, D), lambda b: (b, 0, 0))
        out_shape = jax.ShapeDtypeStruct((B, S, D), out_dtype)

    in_specs = [x_spec]
    for w in weights:
        nd = w.ndim
        idx = lambda b, _nd=nd: (0,) * _nd      # constant index map -> resident block
        if single_buffer_weights:
            in_specs.append(pl.BlockSpec(w.shape, idx, pipeline_mode=pl.Buffered(1)))
        else:
            in_specs.append(pl.BlockSpec(w.shape, idx))

    kernel = functools.partial(encoder_layer_kernel,
                               num_heads=num_heads, seq_len=S, d_model=D,
                               apply_leaky_relu=apply_leaky_relu)

    rows_total = B * S
    flops = 2 * rows_total * (3 * D * D + D * D + 2 * D * dff) + 4 * B * S * S * D
    bytes_accessed = (int(x.size) * x.dtype.itemsize
                      + rows_total * D * out_itemsize
                      + sum(int(w.size) * w.dtype.itemsize for w in weights))

    return pl.pallas_call(
        kernel,
        out_shape=out_shape,
        grid=(B // bt,),
        in_specs=in_specs,
        out_specs=o_spec,
        scratch_shapes=[pltpu.VMEM((bt, S, D), jnp.float32)],
        compiler_params=pltpu.CompilerParams(
            dimension_semantics=("parallel",),          # batch tiles are independent
            vmem_limit_bytes=int(cfg["vmem_limit"])),
        cost_estimate=pl.CostEstimate(
            flops=int(flops),
            transcendentals=int(B * num_heads * S * S),
            bytes_accessed=int(bytes_accessed)),
    )(x, *weights)


def run_encoder_layer(x, params, num_heads, S, D, *, apply_leaky_relu, out_dtype, cfg):
    try:
        return _call_layer(x, params, num_heads, S, D,
                           apply_leaky_relu=apply_leaky_relu, out_dtype=out_dtype,
                           single_buffer_weights=True, cfg=cfg)
    except Exception:
        # Fallback for backends without BlockSpec(pipeline_mode=pl.Buffered(1)).
        return _call_layer(x, params, num_heads, S, D,
                           apply_leaky_relu=apply_leaky_relu, out_dtype=out_dtype,
                           single_buffer_weights=False, cfg=cfg)


def _encoder_stack(x_bsd, layer_params, num_heads, *, lane_dense, carry_bf16, cfg):
    B, S, D = x_bsd.shape
    n = len(layer_params)
    if n == 0:                                   # degenerate: just the activation
        return jnp.where(x_bsd > 0.0, x_bsd, 0.01 * x_bsd)
    x = x_bsd.reshape(B, S * D) if lane_dense else x_bsd
    for i, params in enumerate(layer_params):
        last = (i == n - 1)
        out_dtype = x_bsd.dtype if (last or not carry_bf16) else jnp.bfloat16
        x = run_encoder_layer(x, params, num_heads, S, D,
                              apply_leaky_relu=last, out_dtype=out_dtype, cfg=cfg)
    return x.reshape(B, S, D) if lane_dense else x


def transformer_encoder(features_sbd, layer_params, num_heads, *, carry_bf16=True):
    """features_sbd: (S, B, D) — PyTorch default (seq, batch, d_model) layout."""
    x_bsd = jnp.transpose(features_sbd, (1, 0, 2))   # (S,B,D) -> (B,S,D), once
    D = x_bsd.shape[-1]
    cfg = _GEN_CFG.get(_tpu_generation(), _GEN_CFG[6])
    lane_dense = (D % 128 != 0)          # D not lane-aligned -> present (B, S*D) I/O
    if lane_dense:
        try:
            out = _encoder_stack(x_bsd, layer_params, num_heads,
                                 lane_dense=True, carry_bf16=carry_bf16, cfg=cfg)
        except Exception:
            # In-kernel (bt, S*D) <-> (bt*S, D) relayout not supported here.
            out = _encoder_stack(x_bsd, layer_params, num_heads,
                                 lane_dense=False, carry_bf16=carry_bf16, cfg=cfg)
    else:
        out = _encoder_stack(x_bsd, layer_params, num_heads,
                             lane_dense=False, carry_bf16=carry_bf16, cfg=cfg)
    return jnp.transpose(out, (1, 0, 2))             # back to (S,B,D), once


# ----------------------------------------------------------------------------
# Deterministic parameter construction (synthetic weights)
# ----------------------------------------------------------------------------
def make_layer_params(key, d_model):
    dff = 2 * d_model
    ks = jax.random.split(key, 8)
    f32, bf16 = jnp.float32, jnp.bfloat16
    return {
        # Large matmul weights stored in bf16 (MXU operands, f32 accumulation).
        "wqkv": (0.05 * jax.random.normal(ks[0], (d_model, 3 * d_model), f32)).astype(bf16),
        "wo":   (0.05 * jax.random.normal(ks[2], (d_model, d_model), f32)).astype(bf16),
        "w1":   (0.05 * jax.random.normal(ks[4], (d_model, dff), f32)).astype(bf16),
        "w2":   (0.05 * jax.random.normal(ks[6], (dff, d_model), f32)).astype(bf16),
        # Biases and LayerNorm params stay f32 (added after f32 accumulation).
        "bqkv": 0.05 * jax.random.normal(ks[1], (1, 3 * d_model), f32),
        "bo":   0.05 * jax.random.normal(ks[3], (1, d_model), f32),
        "b1":   0.05 * jax.random.normal(ks[5], (1, dff), f32),
        "b2":   0.05 * jax.random.normal(ks[7], (1, d_model), f32),
        "ln1g": jnp.ones((1, d_model), f32),
        "ln1b": jnp.zeros((1, d_model), f32),
        "ln2g": jnp.ones((1, d_model), f32),
        "ln2b": jnp.zeros((1, d_model), f32),
    }


if __name__ == "__main__":
    in_dim, num_heads, num_layers = 32, 4, 2
    seq_len, batch = 8, 2

    root = jax.random.PRNGKey(0)
    x_key, *layer_keys = jax.random.split(root, num_layers + 1)

    # PyTorch nn.TransformerEncoder default input layout: (seq, batch, d_model).
    features = jax.random.normal(x_key, (seq_len, batch, in_dim), jnp.float32)
    layer_params = [make_layer_params(k, in_dim) for k in layer_keys]

    out = transformer_encoder(features, layer_params, num_heads)
    out = jax.block_until_ready(out)
    assert out.shape == (seq_len, batch, in_dim)
    assert jnp.all(jnp.isfinite(out))
    print("KERNEL_OK")
</pallas_src>

<mosaic_0001>
module attributes {stable_mosaic.version = 11 : i64} {
  func.func @encoder_layer_kernel(%arg0: i32, %arg1: memref<2x256xf32, #tpu.memory_space<vmem>>, %arg2: memref<32x96xbf16, #tpu.memory_space<vmem>>, %arg3: memref<1x96xf32, #tpu.memory_space<vmem>>, %arg4: memref<32x32xbf16, #tpu.memory_space<vmem>>, %arg5: memref<1x32xf32, #tpu.memory_space<vmem>>, %arg6: memref<1x32xf32, #tpu.memory_space<vmem>>, %arg7: memref<1x32xf32, #tpu.memory_space<vmem>>, %arg8: memref<32x64xbf16, #tpu.memory_space<vmem>>, %arg9: memref<1x64xf32, #tpu.memory_space<vmem>>, %arg10: memref<64x32xbf16, #tpu.memory_space<vmem>>, %arg11: memref<1x32xf32, #tpu.memory_space<vmem>>, %arg12: memref<1x32xf32, #tpu.memory_space<vmem>>, %arg13: memref<1x32xf32, #tpu.memory_space<vmem>>, %arg14: memref<2x256xbf16, #tpu.memory_space<vmem>>, %arg15: memref<2x8x32xf32, #tpu.memory_space<vmem>>) attributes {dimension_semantics = [#tpu.dimension_semantics<parallel>], iteration_bounds = array<i64: 1>, scalar_prefetch = 0 : i64, scratch_operands = 1 : i64, tpu.core_type = #tpu.core_type<tc>, window_params = [{transform_indices = @transform_0, window_bounds = array<i64: 2, 256>}, {pipeline_mode = #tpu.pipeline_mode<synchronous>, transform_indices = @transform_1, window_bounds = array<i64: 32, 96>}, {pipeline_mode = #tpu.pipeline_mode<synchronous>, transform_indices = @transform_2, window_bounds = array<i64: 1, 96>}, {pipeline_mode = #tpu.pipeline_mode<synchronous>, transform_indices = @transform_3, window_bounds = array<i64: 32, 32>}, {pipeline_mode = #tpu.pipeline_mode<synchronous>, transform_indices = @transform_4, window_bounds = array<i64: 1, 32>}, {pipeline_mode = #tpu.pipeline_mode<synchronous>, transform_indices = @transform_5, window_bounds = array<i64: 1, 32>}, {pipeline_mode = #tpu.pipeline_mode<synchronous>, transform_indices = @transform_6, window_bounds = array<i64: 1, 32>}, {pipeline_mode = #tpu.pipeline_mode<synchronous>, transform_indices = @transform_7, window_bounds = array<i64: 32, 64>}, {pipeline_mode = #tpu.pipeline_mode<synchronous>, transform_indices = @transform_8, window_bounds = array<i64: 1, 64>}, {pipeline_mode = #tpu.pipeline_mode<synchronous>, transform_indices = @transform_9, window_bounds = array<i64: 64, 32>}, {pipeline_mode = #tpu.pipeline_mode<synchronous>, transform_indices = @transform_10, window_bounds = array<i64: 1, 32>}, {pipeline_mode = #tpu.pipeline_mode<synchronous>, transform_indices = @transform_11, window_bounds = array<i64: 1, 32>}, {pipeline_mode = #tpu.pipeline_mode<synchronous>, transform_indices = @transform_12, window_bounds = array<i64: 1, 32>}, {transform_indices = @transform_13, window_bounds = array<i64: 2, 256>}]} {
    %c0 = arith.constant 0 : index
    %c0_0 = arith.constant 0 : index
    %0 = vector.load %arg1[%c0, %c0_0] : memref<2x256xf32, #tpu.memory_space<vmem>>, vector<2x256xf32>
    %1 = vector.shape_cast %0 : vector<2x256xf32> to vector<16x32xf32>
    %2 = arith.truncf %1 : vector<16x32xf32> to vector<16x32xbf16>
    %c0_1 = arith.constant 0 : index
    %c0_2 = arith.constant 0 : index
    %3 = vector.load %arg2[%c0_1, %c0_2] : memref<32x96xbf16, #tpu.memory_space<vmem>>, vector<32x96xbf16>
    %cst = arith.constant dense<0.000000e+00> : vector<16x96xf32>
    %4 = tpu.matmul %2, %3, %cst {dimension_numbers = #tpu.dot_dimension_numbers<[1], [0], [0], [1], [0, 0, 1, 1], [], []>} : vector<16x32xbf16>, vector<32x96xbf16>, vector<16x96xf32> -> vector<16x96xf32>
    %c0_3 = arith.constant 0 : index
    %c0_4 = arith.constant 0 : index
    %5 = vector.load %arg3[%c0_3, %c0_4] : memref<1x96xf32, #tpu.memory_space<vmem>>, vector<1x96xf32>
    %6 = vector.broadcast %5 : vector<1x96xf32> to vector<16x96xf32>
    %7 = arith.addf %4, %6 : vector<16x96xf32>
    %8 = vector.shape_cast %7 : vector<16x96xf32> to vector<2x8x96xf32>
    %9 = vector.extract_strided_slice %8 {offsets = [0, 0, 0], sizes = [2, 8, 32], strides = [1, 1, 1]} : vector<2x8x96xf32> to vector<2x8x32xf32>
    %cst_5 = arith.constant 0.353553385 : f32
    %10 = vector.broadcast %cst_5 : f32 to vector<2x8x32xf32>
    %11 = arith.mulf %9, %10 : vector<2x8x32xf32>
    %12 = vector.extract_strided_slice %8 {offsets = [0, 0, 32], sizes = [2, 8, 32], strides = [1, 1, 1]} : vector<2x8x96xf32> to vector<2x8x32xf32>
    %13 = vector.extract_strided_slice %8 {offsets = [0, 0, 64], sizes = [2, 8, 32], strides = [1, 1, 1]} : vector<2x8x96xf32> to vector<2x8x32xf32>
    %14 = vector.extract_strided_slice %11 {offsets = [0, 0, 0], sizes = [2, 8, 8], strides = [1, 1, 1]} : vector<2x8x32xf32> to vector<2x8x8xf32>
    %15 = arith.truncf %14 : vector<2x8x8xf32> to vector<2x8x8xbf16>
    %16 = vector.extract_strided_slice %12 {offsets = [0, 0, 0], sizes = [2, 8, 8], strides = [1, 1, 1]} : vector<2x8x32xf32> to vector<2x8x8xf32>
    %17 = arith.truncf %16 : vector<2x8x8xf32> to vector<2x8x8xbf16>
    %18 = vector.extract_strided_slice %13 {offsets = [0, 0, 0], sizes = [2, 8, 8], strides = [1, 1, 1]} : vector<2x8x32xf32> to vector<2x8x8xf32>
    %19 = arith.truncf %18 : vector<2x8x8xf32> to vector<2x8x8xbf16>
    "tpu.trace_start"() <{level = 10 : i32, message = "bqd,bkd->bqk"}> : () -> ()
    %cst_6 = arith.constant dense<0.000000e+00> : vector<2x8x8xf32>
    %20 = tpu.matmul %15, %17, %cst_6 {dimension_numbers = #tpu.dot_dimension_numbers<[2], [2], [1], [1], [0, 0, 0, 1, 1, 1], [0], [0]>} : vector<2x8x8xbf16>, vector<2x8x8xbf16>, vector<2x8x8xf32> -> vector<2x8x8xf32>
    "tpu.trace_stop"() : () -> ()
    %cst_7 = arith.constant dense<0xFF800000> : vector<2x8xf32>
    %21 = vector.multi_reduction <maximumf>, %20, %cst_7 [2] : vector<2x8x8xf32> to vector<2x8xf32>
    %22 = vector.shape_cast %21 : vector<2x8xf32> to vector<2x8x1xf32>
    %23 = vector.broadcast %22 : vector<2x8x1xf32> to vector<2x8x8xf32>
    %24 = arith.subf %20, %23 : vector<2x8x8xf32>
    %25 = math.exp %24 : vector<2x8x8xf32>
    %cst_8 = arith.constant dense<0.000000e+00> : vector<2x8xf32>
    %26 = vector.multi_reduction <add>, %25, %cst_8 [2] : vector<2x8x8xf32> to vector<2x8xf32>
    %27 = vector.shape_cast %26 : vector<2x8xf32> to vector<2x8x1xf32>
    %28 = tpu.reciprocal %27 {approx = true} : vector<2x8x1xf32> -> vector<2x8x1xf32>
    %29 = vector.broadcast %28 : vector<2x8x1xf32> to vector<2x8x8xf32>
    %30 = arith.mulf %25, %29 : vector<2x8x8xf32>
    %31 = arith.truncf %30 : vector<2x8x8xf32> to vector<2x8x8xbf16>
    "tpu.trace_start"() <{level = 10 : i32, message = "bqk,bkd->bqd"}> : () -> ()
    %cst_9 = arith.constant dense<0.000000e+00> : vector<2x8x8xf32>
    %32 = tpu.matmul %31, %19, %cst_9 {dimension_numbers = #tpu.dot_dimension_numbers<[2], [1], [1], [2], [0, 0, 0, 1, 1, 2], [0], [0]>} : vector<2x8x8xbf16>, vector<2x8x8xbf16>, vector<2x8x8xf32> -> vector<2x8x8xf32>
    "tpu.trace_stop"() : () -> ()
    %c0_10 = arith.constant 0 : index
    %c0_11 = arith.constant 0 : index
    %c0_12 = arith.constant 0 : index
    %33 = vector.load %arg15[%c0_10, %c0_11, %c0_12] : memref<2x8x32xf32, #tpu.memory_space<vmem>>, vector<2x8x8xf32>
    tpu.vector_store %arg15[%c0_10, %c0_11, %c0_12], %32 {strides = array<i32>} : memref<2x8x32xf32, #tpu.memory_space<vmem>>, vector<2x8x8xf32>,
    %34 = vector.extract_strided_slice %11 {offsets = [0, 0, 8], sizes = [2, 8, 8], strides = [1, 1, 1]} : vector<2x8x32xf32> to vector<2x8x8xf32>
    %35 = arith.truncf %34 : vector<2x8x8xf32> to vector<2x8x8xbf16>
    %36 = vector.extract_strided_slice %12 {offsets = [0, 0, 8], sizes = [2, 8, 8], strides = [1, 1, 1]} : vector<2x8x32xf32> to vector<2x8x8xf32>
    %37 = arith.truncf %36 : vector<2x8x8xf32> to vector<2x8x8xbf16>
    %38 = vector.extract_strided_slice %13 {offsets = [0, 0, 8], sizes = [2, 8, 8], strides = [1, 1, 1]} : vector<2x8x32xf32> to vector<2x8x8xf32>
    %39 = arith.truncf %38 : vector<2x8x8xf32> to vector<2x8x8xbf16>
    "tpu.trace_start"() <{level = 10 : i32, message = "bqd,bkd->bqk"}> : () -> ()
    %cst_13 = arith.constant dense<0.000000e+00> : vector<2x8x8xf32>
    %40 = tpu.matmul %35, %37, %cst_13 {dimension_numbers = #tpu.dot_dimension_numbers<[2], [2], [1], [1], [0, 0, 0, 1, 1, 1], [0], [0]>} : vector<2x8x8xbf16>, vector<2x8x8xbf16>, vector<2x8x8xf32> -> vector<2x8x8xf32>
    "tpu.trace_stop"() : () -> ()
    %cst_14 = arith.constant dense<0xFF800000> : vector<2x8xf32>
    %41 = vector.multi_reduction <maximumf>, %40, %cst_14 [2] : vector<2x8x8xf32> to vector<2x8xf32>
    %42 = vector.shape_cast %41 : vector<2x8xf32> to vector<2x8x1xf32>
    %43 = vector.broadcast %42 : vector<2x8x1xf32> to vector<2x8x8xf32>
    %44 = arith.subf %40, %43 : vector<2x8x8xf32>
    %45 = math.exp %44 : vector<2x8x8xf32>
    %cst_15 = arith.constant dense<0.000000e+00> : vector<2x8xf32>
    %46 = vector.multi_reduction <add>, %45, %cst_15 [2] : vector<2x8x8xf32> to vector<2x8xf32>
    %47 = vector.shape_cast %46 : vector<2x8xf32> to vector<2x8x1xf32>
    %48 = tpu.reciprocal %47 {approx = true} : vector<2x8x1xf32> -> vector<2x8x1xf32>
    %49 = vector.broadcast %48 : vector<2x8x1xf32> to vector<2x8x8xf32>
    %50 = arith.mulf %45, %49 : vector<2x8x8xf32>
    %51 = arith.truncf %50 : vector<2x8x8xf32> to vector<2x8x8xbf16>
    "tpu.trace_start"() <{level = 10 : i32, message = "bqk,bkd->bqd"}> : () -> ()
    %cst_16 = arith.constant dense<0.000000e+00> : vector<2x8x8xf32>
    %52 = tpu.matmul %51, %39, %cst_16 {dimension_numbers = #tpu.dot_dimension_numbers<[2], [1], [1], [2], [0, 0, 0, 1, 1, 2], [0], [0]>} : vector<2x8x8xbf16>, vector<2x8x8xbf16>, vector<2x8x8xf32> -> vector<2x8x8xf32>
    "tpu.trace_stop"() : () -> ()
    %c0_17 = arith.constant 0 : index
    %c0_18 = arith.constant 0 : index
    %c8 = arith.constant 8 : index
    %53 = vector.load %arg15[%c0_17, %c0_18, %c8] : memref<2x8x32xf32, #tpu.memory_space<vmem>>, vector<2x8x8xf32>
    tpu.vector_store %arg15[%c0_17, %c0_18, %c8], %52 {strides = array<i32>} : memref<2x8x32xf32, #tpu.memory_space<vmem>>, vector<2x8x8xf32>,
    %54 = vector.extract_strided_slice %11 {offsets = [0, 0, 16], sizes = [2, 8, 8], strides = [1, 1, 1]} : vector<2x8x32xf32> to vector<2x8x8xf32>
    %55 = arith.truncf %54 : vector<2x8x8xf32> to vector<2x8x8xbf16>
    %56 = vector.extract_strided_slice %12 {offsets = [0, 0, 16], sizes = [2, 8, 8], strides = [1, 1, 1]} : vector<2x8x32xf32> to vector<2x8x8xf32>
    %57 = arith.truncf %56 : vector<2x8x8xf32> to vector<2x8x8xbf16>
    %58 = vector.extract_strided_slice %13 {offsets = [0, 0, 16], sizes = [2, 8, 8], strides = [1, 1, 1]} : vector<2x8x32xf32> to vector<2x8x8xf32>
    %59 = arith.truncf %58 : vector<2x8x8xf32> to vector<2x8x8xbf16>
    "tpu.trace_start"() <{level = 10 : i32, message = "bqd,bkd->bqk"}> : () -> ()
    %cst_19 = arith.constant dense<0.000000e+00> : vector<2x8x8xf32>
    %60 = tpu.matmul %55, %57, %cst_19 {dimension_numbers = #tpu.dot_dimension_numbers<[2], [2], [1], [1], [0, 0, 0, 1, 1, 1], [0], [0]>} : vector<2x8x8xbf16>, vector<2x8x8xbf16>, vector<2x8x8xf32> -> vector<2x8x8xf32>
    "tpu.trace_stop"() : () -> ()
    %cst_20 = arith.constant dense<0xFF800000> : vector<2x8xf32>
    %61 = vector.multi_reduction <maximumf>, %60, %cst_20 [2] : vector<2x8x8xf32> to vector<2x8xf32>
    %62 = vector.shape_cast %61 : vector<2x8xf32> to vector<2x8x1xf32>
    %63 = vector.broadcast %62 : vector<2x8x1xf32> to vector<2x8x8xf32>
    %64 = arith.subf %60, %63 : vector<2x8x8xf32>
    %65 = math.exp %64 : vector<2x8x8xf32>
    %cst_21 = arith.constant dense<0.000000e+00> : vector<2x8xf32>
    %66 = vector.multi_reduction <add>, %65, %cst_21 [2] : vector<2x8x8xf32> to vector<2x8xf32>
    %67 = vector.shape_cast %66 : vector<2x8xf32> to vector<2x8x1xf32>
    %68 = tpu.reciprocal %67 {approx = true} : vector<2x8x1xf32> -> vector<2x8x1xf32>
    %69 = vector.broadcast %68 : vector<2x8x1xf32> to vector<2x8x8xf32>
    %70 = arith.mulf %65, %69 : vector<2x8x8xf32>
    %71 = arith.truncf %70 : vector<2x8x8xf32> to vector<2x8x8xbf16>
    "tpu.trace_start"() <{level = 10 : i32, message = "bqk,bkd->bqd"}> : () -> ()
    %cst_22 = arith.constant dense<0.000000e+00> : vector<2x8x8xf32>
    %72 = tpu.matmul %71, %59, %cst_22 {dimension_numbers = #tpu.dot_dimension_numbers<[2], [1], [1], [2], [0, 0, 0, 1, 1, 2], [0], [0]>} : vector<2x8x8xbf16>, vector<2x8x8xbf16>, vector<2x8x8xf32> -> vector<2x8x8xf32>
    "tpu.trace_stop"() : () -> ()
    %c0_23 = arith.constant 0 : index
    %c0_24 = arith.constant 0 : index
    %c16 = arith.constant 16 : index
    %73 = vector.load %arg15[%c0_23, %c0_24, %c16] : memref<2x8x32xf32, #tpu.memory_space<vmem>>, vector<2x8x8xf32>
    tpu.vector_store %arg15[%c0_23, %c0_24, %c16], %72 {strides = array<i32>} : memref<2x8x32xf32, #tpu.memory_space<vmem>>, vector<2x8x8xf32>,
    %74 = vector.extract_strided_slice %11 {offsets = [0, 0, 24], sizes = [2, 8, 8], strides = [1, 1, 1]} : vector<2x8x32xf32> to vector<2x8x8xf32>
    %75 = arith.truncf %74 : vector<2x8x8xf32> to vector<2x8x8xbf16>
    %76 = vector.extract_strided_slice %12 {offsets = [0, 0, 24], sizes = [2, 8, 8], strides = [1, 1, 1]} : vector<2x8x32xf32> to vector<2x8x8xf32>
    %77 = arith.truncf %76 : vector<2x8x8xf32> to vector<2x8x8xbf16>
    %78 = vector.extract_strided_slice %13 {offsets = [0, 0, 24], sizes = [2, 8, 8], strides = [1, 1, 1]} : vector<2x8x32xf32> to vector<2x8x8xf32>
    %79 = arith.truncf %78 : vector<2x8x8xf32> to vector<2x8x8xbf16>
    "tpu.trace_start"() <{level = 10 : i32, message = "bqd,bkd->bqk"}> : () -> ()
    %cst_25 = arith.constant dense<0.000000e+00> : vector<2x8x8xf32>
    %80 = tpu.matmul %75, %77, %cst_25 {dimension_numbers = #tpu.dot_dimension_numbers<[2], [2], [1], [1], [0, 0, 0, 1, 1, 1], [0], [0]>} : vector<2x8x8xbf16>, vector<2x8x8xbf16>, vector<2x8x8xf32> -> vector<2x8x8xf32>
    "tpu.trace_stop"() : () -> ()
    %cst_26 = arith.constant dense<0xFF800000> : vector<2x8xf32>
    %81 = vector.multi_reduction <maximumf>, %80, %cst_26 [2] : vector<2x8x8xf32> to vector<2x8xf32>
    %82 = vector.shape_cast %81 : vector<2x8xf32> to vector<2x8x1xf32>
    %83 = vector.broadcast %82 : vector<2x8x1xf32> to vector<2x8x8xf32>
    %84 = arith.subf %80, %83 : vector<2x8x8xf32>
    %85 = math.exp %84 : vector<2x8x8xf32>
    %cst_27 = arith.constant dense<0.000000e+00> : vector<2x8xf32>
    %86 = vector.multi_reduction <add>, %85, %cst_27 [2] : vector<2x8x8xf32> to vector<2x8xf32>
    %87 = vector.shape_cast %86 : vector<2x8xf32> to vector<2x8x1xf32>
    %88 = tpu.reciprocal %87 {approx = true} : vector<2x8x1xf32> -> vector<2x8x1xf32>
    %89 = vector.broadcast %88 : vector<2x8x1xf32> to vector<2x8x8xf32>
    %90 = arith.mulf %85, %89 : vector<2x8x8xf32>
    %91 = arith.truncf %90 : vector<2x8x8xf32> to vector<2x8x8xbf16>
    "tpu.trace_start"() <{level = 10 : i32, message = "bqk,bkd->bqd"}> : () -> ()
    %cst_28 = arith.constant dense<0.000000e+00> : vector<2x8x8xf32>
    %92 = tpu.matmul %91, %79, %cst_28 {dimension_numbers = #tpu.dot_dimension_numbers<[2], [1], [1], [2], [0, 0, 0, 1, 1, 2], [0], [0]>} : vector<2x8x8xbf16>, vector<2x8x8xbf16>, vector<2x8x8xf32> -> vector<2x8x8xf32>
    "tpu.trace_stop"() : () -> ()
    %c0_29 = arith.constant 0 : index
    %c0_30 = arith.constant 0 : index
    %c24 = arith.constant 24 : index
    %93 = vector.load %arg15[%c0_29, %c0_30, %c24] : memref<2x8x32xf32, #tpu.memory_space<vmem>>, vector<2x8x8xf32>
    tpu.vector_store %arg15[%c0_29, %c0_30, %c24], %92 {strides = array<i32>} : memref<2x8x32xf32, #tpu.memory_space<vmem>>, vector<2x8x8xf32>,
    %c0_31 = arith.constant 0 : index
    %c0_32 = arith.constant 0 : index
    %c0_33 = arith.constant 0 : index
    %94 = vector.load %arg15[%c0_31, %c0_32, %c0_33] : memref<2x8x32xf32, #tpu.memory_space<vmem>>, vector<2x8x32xf32>
    %95 = vector.shape_cast %94 : vector<2x8x32xf32> to vector<16x32xf32>
    %96 = arith.truncf %95 : vector<16x32xf32> to vector<16x32xbf16>
    %c0_34 = arith.constant 0 : index
    %c0_35 = arith.constant 0 : index
    %97 = vector.load %arg4[%c0_34, %c0_35] : memref<32x32xbf16, #tpu.memory_space<vmem>>, vector<32x32xbf16>
    %cst_36 = arith.constant dense<0.000000e+00> : vector<16x32xf32>
    %98 = tpu.matmul %96, %97, %cst_36 {dimension_numbers = #tpu.dot_dimension_numbers<[1], [0], [0], [1], [0, 0, 1, 1], [], []>} : vector<16x32xbf16>, vector<32x32xbf16>, vector<16x32xf32> -> vector<16x32xf32>
    %c0_37 = arith.constant 0 : index
    %c0_38 = arith.constant 0 : index
    %99 = vector.load %arg5[%c0_37, %c0_38] : memref<1x32xf32, #tpu.memory_space<vmem>>, vector<1x32xf32>
    %100 = vector.broadcast %99 : vector<1x32xf32> to vector<16x32xf32>
    %101 = arith.addf %98, %100 : vector<16x32xf32>
    %102 = arith.addf %1, %101 : vector<16x32xf32>
    %c0_39 = arith.constant 0 : index
    %c0_40 = arith.constant 0 : index
    %103 = vector.load %arg6[%c0_39, %c0_40] : memref<1x32xf32, #tpu.memory_space<vmem>>, vector<1x32xf32>
    %c0_41 = arith.constant 0 : index
    %c0_42 = arith.constant 0 : index
    %104 = vector.load %arg7[%c0_41, %c0_42] : memref<1x32xf32, #tpu.memory_space<vmem>>, vector<1x32xf32>
    %cst_43 = arith.constant dense<0.000000e+00> : vector<16xf32>
    %105 = vector.multi_reduction <add>, %102, %cst_43 [1] : vector<16x32xf32> to vector<16xf32>
    %106 = vector.shape_cast %105 : vector<16xf32> to vector<16x1xf32>
    %cst_44 = arith.constant 3.200000e+01 : f32
    %107 = vector.broadcast %cst_44 : f32 to vector<16x1xf32>
    %108 = arith.divf %106, %107 : vector<16x1xf32>
    %109 = vector.broadcast %108 : vector<16x1xf32> to vector<16x32xf32>
    %110 = arith.subf %102, %109 : vector<16x32xf32>
    %111 = arith.mulf %110, %110 : vector<16x32xf32>
    %cst_45 = arith.constant dense<0.000000e+00> : vector<16xf32>
    %112 = vector.multi_reduction <add>, %111, %cst_45 [1] : vector<16x32xf32> to vector<16xf32>
    %113 = vector.shape_cast %112 : vector<16xf32> to vector<16x1xf32>
    %cst_46 = arith.constant 3.200000e+01 : f32
    %114 = vector.broadcast %cst_46 : f32 to vector<16x1xf32>
    %115 = arith.divf %113, %114 : vector<16x1xf32>
    %116 = vector.broadcast %108 : vector<16x1xf32> to vector<16x32xf32>
    %117 = arith.subf %102, %116 : vector<16x32xf32>
    %cst_47 = arith.constant 9.99999974E-6 : f32
    %118 = vector.broadcast %cst_47 : f32 to vector<16x1xf32>
    %119 = arith.addf %115, %118 : vector<16x1xf32>
    %120 = math.rsqrt %119 : vector<16x1xf32>
    %121 = vector.broadcast %120 : vector<16x1xf32> to vector<16x32xf32>
    %122 = arith.mulf %117, %121 : vector<16x32xf32>
    %123 = vector.broadcast %103 : vector<1x32xf32> to vector<16x32xf32>
    %124 = arith.mulf %122, %123 : vector<16x32xf32>
    %125 = vector.broadcast %104 : vector<1x32xf32> to vector<16x32xf32>
    %126 = arith.addf %124, %125 : vector<16x32xf32>
    %127 = arith.truncf %126 : vector<16x32xf32> to vector<16x32xbf16>
    %c0_48 = arith.constant 0 : index
    %c0_49 = arith.constant 0 : index
    %128 = vector.load %arg8[%c0_48, %c0_49] : memref<32x64xbf16, #tpu.memory_space<vmem>>, vector<32x64xbf16>
    %cst_50 = arith.constant dense<0.000000e+00> : vector<16x64xf32>
    %129 = tpu.matmul %127, %128, %cst_50 {dimension_numbers = #tpu.dot_dimension_numbers<[1], [0], [0], [1], [0, 0, 1, 1], [], []>} : vector<16x32xbf16>, vector<32x64xbf16>, vector<16x64xf32> -> vector<16x64xf32>
    %c0_51 = arith.constant 0 : index
    %c0_52 = arith.constant 0 : index
    %130 = vector.load %arg9[%c0_51, %c0_52] : memref<1x64xf32, #tpu.memory_space<vmem>>, vector<1x64xf32>
    %131 = vector.broadcast %130 : vector<1x64xf32> to vector<16x64xf32>
    %132 = arith.addf %129, %131 : vector<16x64xf32>
    %cst_53 = arith.constant 0.000000e+00 : f32
    %133 = vector.broadcast %cst_53 : f32 to vector<16x64xf32>
    %134 = arith.maximumf %132, %133 : vector<16x64xf32>
    %135 = arith.truncf %134 : vector<16x64xf32> to vector<16x64xbf16>
    %c0_54 = arith.constant 0 : index
    %c0_55 = arith.constant 0 : index
    %136 = vector.load %arg10[%c0_54, %c0_55] : memref<64x32xbf16, #tpu.memory_space<vmem>>, vector<64x32xbf16>
    %cst_56 = arith.constant dense<0.000000e+00> : vector<16x32xf32>
    %137 = tpu.matmul %135, %136, %cst_56 {dimension_numbers = #tpu.dot_dimension_numbers<[1], [0], [0], [1], [0, 0, 1, 1], [], []>} : vector<16x64xbf16>, vector<64x32xbf16>, vector<16x32xf32> -> vector<16x32xf32>
    %c0_57 = arith.constant 0 : index
    %c0_58 = arith.constant 0 : index
    %138 = vector.load %arg11[%c0_57, %c0_58] : memref<1x32xf32, #tpu.memory_space<vmem>>, vector<1x32xf32>
    %139 = vector.broadcast %138 : vector<1x32xf32> to vector<16x32xf32>
    %140 = arith.addf %137, %139 : vector<16x32xf32>
    %141 = arith.addf %126, %140 : vector<16x32xf32>
    %c0_59 = arith.constant 0 : index
    %c0_60 = arith.constant 0 : index
    %142 = vector.load %arg12[%c0_59, %c0_60] : memref<1x32xf32, #tpu.memory_space<vmem>>, vector<1x32xf32>
    %c0_61 = arith.constant 0 : index
    %c0_62 = arith.constant 0 : index
    %143 = vector.load %arg13[%c0_61, %c0_62] : memref<1x32xf32, #tpu.memory_space<vmem>>, vector<1x32xf32>
    %cst_63 = arith.constant dense<0.000000e+00> : vector<16xf32>
    %144 = vector.multi_reduction <add>, %141, %cst_63 [1] : vector<16x32xf32> to vector<16xf32>
    %145 = vector.shape_cast %144 : vector<16xf32> to vector<16x1xf32>
    %cst_64 = arith.constant 3.200000e+01 : f32
    %146 = vector.broadcast %cst_64 : f32 to vector<16x1xf32>
    %147 = arith.divf %145, %146 : vector<16x1xf32>
    %148 = vector.broadcast %147 : vector<16x1xf32> to vector<16x32xf32>
    %149 = arith.subf %141, %148 : vector<16x32xf32>
    %150 = arith.mulf %149, %149 : vector<16x32xf32>
    %cst_65 = arith.constant dense<0.000000e+00> : vector<16xf32>
    %151 = vector.multi_reduction <add>, %150, %cst_65 [1] : vector<16x32xf32> to vector<16xf32>
    %152 = vector.shape_cast %151 : vector<16xf32> to vector<16x1xf32>
    %cst_66 = arith.constant 3.200000e+01 : f32
    %153 = vector.broadcast %cst_66 : f32 to vector<16x1xf32>
    %154 = arith.divf %152, %153 : vector<16x1xf32>
    %155 = vector.broadcast %147 : vector<16x1xf32> to vector<16x32xf32>
    %156 = arith.subf %141, %155 : vector<16x32xf32>
    %cst_67 = arith.constant 9.99999974E-6 : f32
    %157 = vector.broadcast %cst_67 : f32 to vector<16x1xf32>
    %158 = arith.addf %154, %157 : vector<16x1xf32>
    %159 = math.rsqrt %158 : vector<16x1xf32>
    %160 = vector.broadcast %159 : vector<16x1xf32> to vector<16x32xf32>
    %161 = arith.mulf %156, %160 : vector<16x32xf32>
    %162 = vector.broadcast %142 : vector<1x32xf32> to vector<16x32xf32>
    %163 = arith.mulf %161, %162 : vector<16x32xf32>
    %164 = vector.broadcast %143 : vector<1x32xf32> to vector<16x32xf32>
    %165 = arith.addf %163, %164 : vector<16x32xf32>
    %166 = vector.shape_cast %165 : vector<16x32xf32> to vector<2x256xf32>
    %167 = arith.truncf %166 : vector<2x256xf32> to vector<2x256xbf16>
    %c0_68 = arith.constant 0 : index
    %c0_69 = arith.constant 0 : index
    %168 = vector.load %arg14[%c0_68, %c0_69] : memref<2x256xbf16, #tpu.memory_space<vmem>>, vector<2x256xbf16>
    tpu.vector_store %arg14[%c0_68, %c0_69], %167 {strides = array<i32>} : memref<2x256xbf16, #tpu.memory_space<vmem>>, vector<2x256xbf16>,
    return
  }
  func.func @transform_0(%arg0: i32) -> (i32, i32) {
    %c0_i32 = arith.constant 0 : i32
    %c0_i32_0 = arith.constant 0 : i32
    return %arg0, %c0_i32 : i32, i32
  }
  func.func @transform_1(%arg0: i32) -> (i32, i32) {
    %c0_i32 = arith.constant 0 : i32
    %c0_i32_0 = arith.constant 0 : i32
    %c0_i32_1 = arith.constant 0 : i32
    return %c0_i32, %c0_i32_0 : i32, i32
  }
  func.func @transform_2(%arg0: i32) -> (i32, i32) {
    %c0_i32 = arith.constant 0 : i32
    %c0_i32_0 = arith.constant 0 : i32
    %c0_i32_1 = arith.constant 0 : i32
    return %c0_i32, %c0_i32_0 : i32, i32
  }
  func.func @transform_3(%arg0: i32) -> (i32, i32) {
    %c0_i32 = arith.constant 0 : i32
    %c0_i32_0 = arith.constant 0 : i32
    %c0_i32_1 = arith.constant 0 : i32
    return %c0_i32, %c0_i32_0 : i32, i32
  }
  func.func @transform_4(%arg0: i32) -> (i32, i32) {
    %c0_i32 = arith.constant 0 : i32
    %c0_i32_0 = arith.constant 0 : i32
    %c0_i32_1 = arith.constant 0 : i32
    return %c0_i32, %c0_i32_0 : i32, i32
  }
  func.func @transform_5(%arg0: i32) -> (i32, i32) {
    %c0_i32 = arith.constant 0 : i32
    %c0_i32_0 = arith.constant 0 : i32
    %c0_i32_1 = arith.constant 0 : i32
    return %c0_i32, %c0_i32_0 : i32, i32
  }
  func.func @transform_6(%arg0: i32) -> (i32, i32) {
    %c0_i32 = arith.constant 0 : i32
    %c0_i32_0 = arith.constant 0 : i32
    %c0_i32_1 = arith.constant 0 : i32
    return %c0_i32, %c0_i32_0 : i32, i32
  }
  func.func @transform_7(%arg0: i32) -> (i32, i32) {
    %c0_i32 = arith.constant 0 : i32
    %c0_i32_0 = arith.constant 0 : i32
    %c0_i32_1 = arith.constant 0 : i32
    return %c0_i32, %c0_i32_0 : i32, i32
  }
  func.func @transform_8(%arg0: i32) -> (i32, i32) {
    %c0_i32 = arith.constant 0 : i32
    %c0_i32_0 = arith.constant 0 : i32
    %c0_i32_1 = arith.constant 0 : i32
    return %c0_i32, %c0_i32_0 : i32, i32
  }
  func.func @transform_9(%arg0: i32) -> (i32, i32) {
    %c0_i32 = arith.constant 0 : i32
    %c0_i32_0 = arith.constant 0 : i32
    %c0_i32_1 = arith.constant 0 : i32
    return %c0_i32, %c0_i32_0 : i32, i32
  }
  func.func @transform_10(%arg0: i32) -> (i32, i32) {
    %c0_i32 = arith.constant 0 : i32
    %c0_i32_0 = arith.constant 0 : i32
    %c0_i32_1 = arith.constant 0 : i32
    return %c0_i32, %c0_i32_0 : i32, i32
  }
  func.func @transform_11(%arg0: i32) -> (i32, i32) {
    %c0_i32 = arith.constant 0 : i32
    %c0_i32_0 = arith.constant 0 : i32
    %c0_i32_1 = arith.constant 0 : i32
    return %c0_i32, %c0_i32_0 : i32, i32
  }
  func.func @transform_12(%arg0: i32) -> (i32, i32) {
    %c0_i32 = arith.constant 0 : i32
    %c0_i32_0 = arith.constant 0 : i32
    %c0_i32_1 = arith.constant 0 : i32
    return %c0_i32, %c0_i32_0 : i32, i32
  }
  func.func @transform_13(%arg0: i32) -> (i32, i32) {
    %c0_i32 = arith.constant 0 : i32
    %c0_i32_0 = arith.constant 0 : i32
    return %arg0, %c0_i32 : i32, i32
  }
}

module attributes {stable_mosaic.version = 11 : i64} {
  func.func @encoder_layer_kernel(%arg0: i32, %arg1: memref<2x256xf32, #tpu.memory_space<vmem>>, %arg2: memref<32x96xbf16, #tpu.memory_space<vmem>>, %arg3: memref<1x96xf32, #tpu.memory_space<vmem>>, %arg4: memref<32x32xbf16, #tpu.memory_space<vmem>>, %arg5: memref<1x32xf32, #tpu.memory_space<vmem>>, %arg6: memref<1x32xf32, #tpu.memory_space<vmem>>, %arg7: memref<1x32xf32, #tpu.memory_space<vmem>>, %arg8: memref<32x64xbf16, #tpu.memory_space<vmem>>, %arg9: memref<1x64xf32, #tpu.memory_space<vmem>>, %arg10: memref<64x32xbf16, #tpu.memory_space<vmem>>, %arg11: memref<1x32xf32, #tpu.memory_space<vmem>>, %arg12: memref<1x32xf32, #tpu.memory_space<vmem>>, %arg13: memref<1x32xf32, #tpu.memory_space<vmem>>, %arg14: memref<2x256xbf16, #tpu.memory_space<vmem>>, %arg15: memref<2x8x32xf32, #tpu.memory_space<vmem>>) attributes {dimension_semantics = [#tpu.dimension_semantics<parallel>], iteration_bounds = array<i64: 1>, scalar_prefetch = 0 : i64, scratch_operands = 1 : i64, tpu.core_type = #tpu.core_type<tc>, window_params = [{transform_indices = @transform_0, window_bounds = array<i64: 2, 256>}, {pipeline_mode = #tpu.pipeline_mode<synchronous>, transform_indices = @transform_1, window_bounds = array<i64: 32, 96>}, {pipeline_mode = #tpu.pipeline_mode<synchronous>, transform_indices = @transform_2, window_bounds = array<i64: 1, 96>}, {pipeline_mode = #tpu.pipeline_mode<synchronous>, transform_indices = @transform_3, window_bounds = array<i64: 32, 32>}, {pipeline_mode = #tpu.pipeline_mode<synchronous>, transform_indices = @transform_4, window_bounds = array<i64: 1, 32>}, {pipeline_mode = #tpu.pipeline_mode<synchronous>, transform_indices = @transform_5, window_bounds = array<i64: 1, 32>}, {pipeline_mode = #tpu.pipeline_mode<synchronous>, transform_indices = @transform_6, window_bounds = array<i64: 1, 32>}, {pipeline_mode = #tpu.pipeline_mode<synchronous>, transform_indices = @transform_7, window_bounds = array<i64: 32, 64>}, {pipeline_mode = #tpu.pipeline_mode<synchronous>, transform_indices = @transform_8, window_bounds = array<i64: 1, 64>}, {pipeline_mode = #tpu.pipeline_mode<synchronous>, transform_indices = @transform_9, window_bounds = array<i64: 64, 32>}, {pipeline_mode = #tpu.pipeline_mode<synchronous>, transform_indices = @transform_10, window_bounds = array<i64: 1, 32>}, {pipeline_mode = #tpu.pipeline_mode<synchronous>, transform_indices = @transform_11, window_bounds = array<i64: 1, 32>}, {pipeline_mode = #tpu.pipeline_mode<synchronous>, transform_indices = @transform_12, window_bounds = array<i64: 1, 32>}, {transform_indices = @transform_13, window_bounds = array<i64: 2, 256>}]} {
    %c0 = arith.constant 0 : index
    %c0_0 = arith.constant 0 : index
    %0 = vector.load %arg1[%c0, %c0_0] : memref<2x256xf32, #tpu.memory_space<vmem>>, vector<2x256xf32>
    %1 = vector.shape_cast %0 : vector<2x256xf32> to vector<16x32xf32>
    %2 = arith.truncf %1 : vector<16x32xf32> to vector<16x32xbf16>
    %c0_1 = arith.constant 0 : index
    %c0_2 = arith.constant 0 : index
    %3 = vector.load %arg2[%c0_1, %c0_2] : memref<32x96xbf16, #tpu.memory_space<vmem>>, vector<32x96xbf16>
    %cst = arith.constant dense<0.000000e+00> : vector<16x96xf32>
    %4 = tpu.matmul %2, %3, %cst {dimension_numbers = #tpu.dot_dimension_numbers<[1], [0], [0], [1], [0, 0, 1, 1], [], []>} : vector<16x32xbf16>, vector<32x96xbf16>, vector<16x96xf32> -> vector<16x96xf32>
    %c0_3 = arith.constant 0 : index
    %c0_4 = arith.constant 0 : index
    %5 = vector.load %arg3[%c0_3, %c0_4] : memref<1x96xf32, #tpu.memory_space<vmem>>, vector<1x96xf32>
    %6 = vector.broadcast %5 : vector<1x96xf32> to vector<16x96xf32>
    %7 = arith.addf %4, %6 : vector<16x96xf32>
    %8 = vector.shape_cast %7 : vector<16x96xf32> to vector<2x8x96xf32>
    %9 = vector.extract_strided_slice %8 {offsets = [0, 0, 0], sizes = [2, 8, 32], strides = [1, 1, 1]} : vector<2x8x96xf32> to vector<2x8x32xf32>
    %cst_5 = arith.constant 0.353553385 : f32
    %10 = vector.broadcast %cst_5 : f32 to vector<2x8x32xf32>
    %11 = arith.mulf %9, %10 : vector<2x8x32xf32>
    %12 = vector.extract_strided_slice %8 {offsets = [0, 0, 32], sizes = [2, 8, 32], strides = [1, 1, 1]} : vector<2x8x96xf32> to vector<2x8x32xf32>
    %13 = vector.extract_strided_slice %8 {offsets = [0, 0, 64], sizes = [2, 8, 32], strides = [1, 1, 1]} : vector<2x8x96xf32> to vector<2x8x32xf32>
    %14 = vector.extract_strided_slice %11 {offsets = [0, 0, 0], sizes = [2, 8, 8], strides = [1, 1, 1]} : vector<2x8x32xf32> to vector<2x8x8xf32>
    %15 = arith.truncf %14 : vector<2x8x8xf32> to vector<2x8x8xbf16>
    %16 = vector.extract_strided_slice %12 {offsets = [0, 0, 0], sizes = [2, 8, 8], strides = [1, 1, 1]} : vector<2x8x32xf32> to vector<2x8x8xf32>
    %17 = arith.truncf %16 : vector<2x8x8xf32> to vector<2x8x8xbf16>
    %18 = vector.extract_strided_slice %13 {offsets = [0, 0, 0], sizes = [2, 8, 8], strides = [1, 1, 1]} : vector<2x8x32xf32> to vector<2x8x8xf32>
    %19 = arith.truncf %18 : vector<2x8x8xf32> to vector<2x8x8xbf16>
    "tpu.trace_start"() <{level = 10 : i32, message = "bqd,bkd->bqk"}> : () -> ()
    %cst_6 = arith.constant dense<0.000000e+00> : vector<2x8x8xf32>
    %20 = tpu.matmul %15, %17, %cst_6 {dimension_numbers = #tpu.dot_dimension_numbers<[2], [2], [1], [1], [0, 0, 0, 1, 1, 1], [0], [0]>} : vector<2x8x8xbf16>, vector<2x8x8xbf16>, vector<2x8x8xf32> -> vector<2x8x8xf32>
    "tpu.trace_stop"() : () -> ()
    %cst_7 = arith.constant dense<0xFF800000> : vector<2x8xf32>
    %21 = vector.multi_reduction <maximumf>, %20, %cst_7 [2] : vector<2x8x8xf32> to vector<2x8xf32>
    %22 = vector.shape_cast %21 : vector<2x8xf32> to vector<2x8x1xf32>
    %23 = vector.broadcast %22 : vector<2x8x1xf32> to vector<2x8x8xf32>
    %24 = arith.subf %20, %23 : vector<2x8x8xf32>
    %25 = math.exp %24 : vector<2x8x8xf32>
    %cst_8 = arith.constant dense<0.000000e+00> : vector<2x8xf32>
    %26 = vector.multi_reduction <add>, %25, %cst_8 [2] : vector<2x8x8xf32> to vector<2x8xf32>
    %27 = vector.shape_cast %26 : vector<2x8xf32> to vector<2x8x1xf32>
    %28 = tpu.reciprocal %27 {approx = true} : vector<2x8x1xf32> -> vector<2x8x1xf32>
    %29 = vector.broadcast %28 : vector<2x8x1xf32> to vector<2x8x8xf32>
    %30 = arith.mulf %25, %29 : vector<2x8x8xf32>
    %31 = arith.truncf %30 : vector<2x8x8xf32> to vector<2x8x8xbf16>
    "tpu.trace_start"() <{level = 10 : i32, message = "bqk,bkd->bqd"}> : () -> ()
    %cst_9 = arith.constant dense<0.000000e+00> : vector<2x8x8xf32>
    %32 = tpu.matmul %31, %19, %cst_9 {dimension_numbers = #tpu.dot_dimension_numbers<[2], [1], [1], [2], [0, 0, 0, 1, 1, 2], [0], [0]>} : vector<2x8x8xbf16>, vector<2x8x8xbf16>, vector<2x8x8xf32> -> vector<2x8x8xf32>
    "tpu.trace_stop"() : () -> ()
    %c0_10 = arith.constant 0 : index
    %c0_11 = arith.constant 0 : index
    %c0_12 = arith.constant 0 : index
    %33 = vector.load %arg15[%c0_10, %c0_11, %c0_12] : memref<2x8x32xf32, #tpu.memory_space<vmem>>, vector<2x8x8xf32>
    tpu.vector_store %arg15[%c0_10, %c0_11, %c0_12], %32 {strides = array<i32>} : memref<2x8x32xf32, #tpu.memory_space<vmem>>, vector<2x8x8xf32>,
    %34 = vector.extract_strided_slice %11 {offsets = [0, 0, 8], sizes = [2, 8, 8], strides = [1, 1, 1]} : vector<2x8x32xf32> to vector<2x8x8xf32>
    %35 = arith.truncf %34 : vector<2x8x8xf32> to vector<2x8x8xbf16>
    %36 = vector.extract_strided_slice %12 {offsets = [0, 0, 8], sizes = [2, 8, 8], strides = [1, 1, 1]} : vector<2x8x32xf32> to vector<2x8x8xf32>
    %37 = arith.truncf %36 : vector<2x8x8xf32> to vector<2x8x8xbf16>
    %38 = vector.extract_strided_slice %13 {offsets = [0, 0, 8], sizes = [2, 8, 8], strides = [1, 1, 1]} : vector<2x8x32xf32> to vector<2x8x8xf32>
    %39 = arith.truncf %38 : vector<2x8x8xf32> to vector<2x8x8xbf16>
    "tpu.trace_start"() <{level = 10 : i32, message = "bqd,bkd->bqk"}> : () -> ()
    %cst_13 = arith.constant dense<0.000000e+00> : vector<2x8x8xf32>
    %40 = tpu.matmul %35, %37, %cst_13 {dimension_numbers = #tpu.dot_dimension_numbers<[2], [2], [1], [1], [0, 0, 0, 1, 1, 1], [0], [0]>} : vector<2x8x8xbf16>, vector<2x8x8xbf16>, vector<2x8x8xf32> -> vector<2x8x8xf32>
    "tpu.trace_stop"() : () -> ()
    %cst_14 = arith.constant dense<0xFF800000> : vector<2x8xf32>
    %41 = vector.multi_reduction <maximumf>, %40, %cst_14 [2] : vector<2x8x8xf32> to vector<2x8xf32>
    %42 = vector.shape_cast %41 : vector<2x8xf32> to vector<2x8x1xf32>
    %43 = vector.broadcast %42 : vector<2x8x1xf32> to vector<2x8x8xf32>
    %44 = arith.subf %40, %43 : vector<2x8x8xf32>
    %45 = math.exp %44 : vector<2x8x8xf32>
    %cst_15 = arith.constant dense<0.000000e+00> : vector<2x8xf32>
    %46 = vector.multi_reduction <add>, %45, %cst_15 [2] : vector<2x8x8xf32> to vector<2x8xf32>
    %47 = vector.shape_cast %46 : vector<2x8xf32> to vector<2x8x1xf32>
    %48 = tpu.reciprocal %47 {approx = true} : vector<2x8x1xf32> -> vector<2x8x1xf32>
    %49 = vector.broadcast %48 : vector<2x8x1xf32> to vector<2x8x8xf32>
    %50 = arith.mulf %45, %49 : vector<2x8x8xf32>
    %51 = arith.truncf %50 : vector<2x8x8xf32> to vector<2x8x8xbf16>
    "tpu.trace_start"() <{level = 10 : i32, message = "bqk,bkd->bqd"}> : () -> ()
    %cst_16 = arith.constant dense<0.000000e+00> : vector<2x8x8xf32>
    %52 = tpu.matmul %51, %39, %cst_16 {dimension_numbers = #tpu.dot_dimension_numbers<[2], [1], [1], [2], [0, 0, 0, 1, 1, 2], [0], [0]>} : vector<2x8x8xbf16>, vector<2x8x8xbf16>, vector<2x8x8xf32> -> vector<2x8x8xf32>
    "tpu.trace_stop"() : () -> ()
    %c0_17 = arith.constant 0 : index
    %c0_18 = arith.constant 0 : index
    %c8 = arith.constant 8 : index
    %53 = vector.load %arg15[%c0_17, %c0_18, %c8] : memref<2x8x32xf32, #tpu.memory_space<vmem>>, vector<2x8x8xf32>
    tpu.vector_store %arg15[%c0_17, %c0_18, %c8], %52 {strides = array<i32>} : memref<2x8x32xf32, #tpu.memory_space<vmem>>, vector<2x8x8xf32>,
    %54 = vector.extract_strided_slice %11 {offsets = [0, 0, 16], sizes = [2, 8, 8], strides = [1, 1, 1]} : vector<2x8x32xf32> to vector<2x8x8xf32>
    %55 = arith.truncf %54 : vector<2x8x8xf32> to vector<2x8x8xbf16>
    %56 = vector.extract_strided_slice %12 {offsets = [0, 0, 16], sizes = [2, 8, 8], strides = [1, 1, 1]} : vector<2x8x32xf32> to vector<2x8x8xf32>
    %57 = arith.truncf %56 : vector<2x8x8xf32> to vector<2x8x8xbf16>
    %58 = vector.extract_strided_slice %13 {offsets = [0, 0, 16], sizes = [2, 8, 8], strides = [1, 1, 1]} : vector<2x8x32xf32> to vector<2x8x8xf32>
    %59 = arith.truncf %58 : vector<2x8x8xf32> to vector<2x8x8xbf16>
    "tpu.trace_start"() <{level = 10 : i32, message = "bqd,bkd->bqk"}> : () -> ()
    %cst_19 = arith.constant dense<0.000000e+00> : vector<2x8x8xf32>
    %60 = tpu.matmul %55, %57, %cst_19 {dimension_numbers = #tpu.dot_dimension_numbers<[2], [2], [1], [1], [0, 0, 0, 1, 1, 1], [0], [0]>} : vector<2x8x8xbf16>, vector<2x8x8xbf16>, vector<2x8x8xf32> -> vector<2x8x8xf32>
    "tpu.trace_stop"() : () -> ()
    %cst_20 = arith.constant dense<0xFF800000> : vector<2x8xf32>
    %61 = vector.multi_reduction <maximumf>, %60, %cst_20 [2] : vector<2x8x8xf32> to vector<2x8xf32>
    %62 = vector.shape_cast %61 : vector<2x8xf32> to vector<2x8x1xf32>
    %63 = vector.broadcast %62 : vector<2x8x1xf32> to vector<2x8x8xf32>
    %64 = arith.subf %60, %63 : vector<2x8x8xf32>
    %65 = math.exp %64 : vector<2x8x8xf32>
    %cst_21 = arith.constant dense<0.000000e+00> : vector<2x8xf32>
    %66 = vector.multi_reduction <add>, %65, %cst_21 [2] : vector<2x8x8xf32> to vector<2x8xf32>
    %67 = vector.shape_cast %66 : vector<2x8xf32> to vector<2x8x1xf32>
    %68 = tpu.reciprocal %67 {approx = true} : vector<2x8x1xf32> -> vector<2x8x1xf32>
    %69 = vector.broadcast %68 : vector<2x8x1xf32> to vector<2x8x8xf32>
    %70 = arith.mulf %65, %69 : vector<2x8x8xf32>
    %71 = arith.truncf %70 : vector<2x8x8xf32> to vector<2x8x8xbf16>
    "tpu.trace_start"() <{level = 10 : i32, message = "bqk,bkd->bqd"}> : () -> ()
    %cst_22 = arith.constant dense<0.000000e+00> : vector<2x8x8xf32>
    %72 = tpu.matmul %71, %59, %cst_22 {dimension_numbers = #tpu.dot_dimension_numbers<[2], [1], [1], [2], [0, 0, 0, 1, 1, 2], [0], [0]>} : vector<2x8x8xbf16>, vector<2x8x8xbf16>, vector<2x8x8xf32> -> vector<2x8x8xf32>
    "tpu.trace_stop"() : () -> ()
    %c0_23 = arith.constant 0 : index
    %c0_24 = arith.constant 0 : index
    %c16 = arith.constant 16 : index
    %73 = vector.load %arg15[%c0_23, %c0_24, %c16] : memref<2x8x32xf32, #tpu.memory_space<vmem>>, vector<2x8x8xf32>
    tpu.vector_store %arg15[%c0_23, %c0_24, %c16], %72 {strides = array<i32>} : memref<2x8x32xf32, #tpu.memory_space<vmem>>, vector<2x8x8xf32>,
    %74 = vector.extract_strided_slice %11 {offsets = [0, 0, 24], sizes = [2, 8, 8], strides = [1, 1, 1]} : vector<2x8x32xf32> to vector<2x8x8xf32>
    %75 = arith.truncf %74 : vector<2x8x8xf32> to vector<2x8x8xbf16>
    %76 = vector.extract_strided_slice %12 {offsets = [0, 0, 24], sizes = [2, 8, 8], strides = [1, 1, 1]} : vector<2x8x32xf32> to vector<2x8x8xf32>
    %77 = arith.truncf %76 : vector<2x8x8xf32> to vector<2x8x8xbf16>
    %78 = vector.extract_strided_slice %13 {offsets = [0, 0, 24], sizes = [2, 8, 8], strides = [1, 1, 1]} : vector<2x8x32xf32> to vector<2x8x8xf32>
    %79 = arith.truncf %78 : vector<2x8x8xf32> to vector<2x8x8xbf16>
    "tpu.trace_start"() <{level = 10 : i32, message = "bqd,bkd->bqk"}> : () -> ()
    %cst_25 = arith.constant dense<0.000000e+00> : vector<2x8x8xf32>
    %80 = tpu.matmul %75, %77, %cst_25 {dimension_numbers = #tpu.dot_dimension_numbers<[2], [2], [1], [1], [0, 0, 0, 1, 1, 1], [0], [0]>} : vector<2x8x8xbf16>, vector<2x8x8xbf16>, vector<2x8x8xf32> -> vector<2x8x8xf32>
    "tpu.trace_stop"() : () -> ()
    %cst_26 = arith.constant dense<0xFF800000> : vector<2x8xf32>
    %81 = vector.multi_reduction <maximumf>, %80, %cst_26 [2] : vector<2x8x8xf32> to vector<2x8xf32>
    %82 = vector.shape_cast %81 : vector<2x8xf32> to vector<2x8x1xf32>
    %83 = vector.broadcast %82 : vector<2x8x1xf32> to vector<2x8x8xf32>
    %84 = arith.subf %80, %83 : vector<2x8x8xf32>
    %85 = math.exp %84 : vector<2x8x8xf32>
    %cst_27 = arith.constant dense<0.000000e+00> : vector<2x8xf32>
    %86 = vector.multi_reduction <add>, %85, %cst_27 [2] : vector<2x8x8xf32> to vector<2x8xf32>
    %87 = vector.shape_cast %86 : vector<2x8xf32> to vector<2x8x1xf32>
    %88 = tpu.reciprocal %87 {approx = true} : vector<2x8x1xf32> -> vector<2x8x1xf32>
    %89 = vector.broadcast %88 : vector<2x8x1xf32> to vector<2x8x8xf32>
    %90 = arith.mulf %85, %89 : vector<2x8x8xf32>
    %91 = arith.truncf %90 : vector<2x8x8xf32> to vector<2x8x8xbf16>
    "tpu.trace_start"() <{level = 10 : i32, message = "bqk,bkd->bqd"}> : () -> ()
    %cst_28 = arith.constant dense<0.000000e+00> : vector<2x8x8xf32>
    %92 = tpu.matmul %91, %79, %cst_28 {dimension_numbers = #tpu.dot_dimension_numbers<[2], [1], [1], [2], [0, 0, 0, 1, 1, 2], [0], [0]>} : vector<2x8x8xbf16>, vector<2x8x8xbf16>, vector<2x8x8xf32> -> vector<2x8x8xf32>
    "tpu.trace_stop"() : () -> ()
    %c0_29 = arith.constant 0 : index
    %c0_30 = arith.constant 0 : index
    %c24 = arith.constant 24 : index
    %93 = vector.load %arg15[%c0_29, %c0_30, %c24] : memref<2x8x32xf32, #tpu.memory_space<vmem>>, vector<2x8x8xf32>
    tpu.vector_store %arg15[%c0_29, %c0_30, %c24], %92 {strides = array<i32>} : memref<2x8x32xf32, #tpu.memory_space<vmem>>, vector<2x8x8xf32>,
    %c0_31 = arith.constant 0 : index
    %c0_32 = arith.constant 0 : index
    %c0_33 = arith.constant 0 : index
    %94 = vector.load %arg15[%c0_31, %c0_32, %c0_33] : memref<2x8x32xf32, #tpu.memory_space<vmem>>, vector<2x8x32xf32>
    %95 = vector.shape_cast %94 : vector<2x8x32xf32> to vector<16x32xf32>
    %96 = arith.truncf %95 : vector<16x32xf32> to vector<16x32xbf16>
    %c0_34 = arith.constant 0 : index
    %c0_35 = arith.constant 0 : index
    %97 = vector.load %arg4[%c0_34, %c0_35] : memref<32x32xbf16, #tpu.memory_space<vmem>>, vector<32x32xbf16>
    %cst_36 = arith.constant dense<0.000000e+00> : vector<16x32xf32>
    %98 = tpu.matmul %96, %97, %cst_36 {dimension_numbers = #tpu.dot_dimension_numbers<[1], [0], [0], [1], [0, 0, 1, 1], [], []>} : vector<16x32xbf16>, vector<32x32xbf16>, vector<16x32xf32> -> vector<16x32xf32>
    %c0_37 = arith.constant 0 : index
    %c0_38 = arith.constant 0 : index
    %99 = vector.load %arg5[%c0_37, %c0_38] : memref<1x32xf32, #tpu.memory_space<vmem>>, vector<1x32xf32>
    %100 = vector.broadcast %99 : vector<1x32xf32> to vector<16x32xf32>
    %101 = arith.addf %98, %100 : vector<16x32xf32>
    %102 = arith.addf %1, %101 : vector<16x32xf32>
    %c0_39 = arith.constant 0 : index
    %c0_40 = arith.constant 0 : index
    %103 = vector.load %arg6[%c0_39, %c0_40] : memref<1x32xf32, #tpu.memory_space<vmem>>, vector<1x32xf32>
    %c0_41 = arith.constant 0 : index
    %c0_42 = arith.constant 0 : index
    %104 = vector.load %arg7[%c0_41, %c0_42] : memref<1x32xf32, #tpu.memory_space<vmem>>, vector<1x32xf32>
    %cst_43 = arith.constant dense<0.000000e+00> : vector<16xf32>
    %105 = vector.multi_reduction <add>, %102, %cst_43 [1] : vector<16x32xf32> to vector<16xf32>
    %106 = vector.shape_cast %105 : vector<16xf32> to vector<16x1xf32>
    %cst_44 = arith.constant 3.200000e+01 : f32
    %107 = vector.broadcast %cst_44 : f32 to vector<16x1xf32>
    %108 = arith.divf %106, %107 : vector<16x1xf32>
    %109 = vector.broadcast %108 : vector<16x1xf32> to vector<16x32xf32>
    %110 = arith.subf %102, %109 : vector<16x32xf32>
    %111 = arith.mulf %110, %110 : vector<16x32xf32>
    %cst_45 = arith.constant dense<0.000000e+00> : vector<16xf32>
    %112 = vector.multi_reduction <add>, %111, %cst_45 [1] : vector<16x32xf32> to vector<16xf32>
    %113 = vector.shape_cast %112 : vector<16xf32> to vector<16x1xf32>
    %cst_46 = arith.constant 3.200000e+01 : f32
    %114 = vector.broadcast %cst_46 : f32 to vector<16x1xf32>
    %115 = arith.divf %113, %114 : vector<16x1xf32>
    %116 = vector.broadcast %108 : vector<16x1xf32> to vector<16x32xf32>
    %117 = arith.subf %102, %116 : vector<16x32xf32>
    %cst_47 = arith.constant 9.99999974E-6 : f32
    %118 = vector.broadcast %cst_47 : f32 to vector<16x1xf32>
    %119 = arith.addf %115, %118 : vector<16x1xf32>
    %120 = math.rsqrt %119 : vector<16x1xf32>
    %121 = vector.broadcast %120 : vector<16x1xf32> to vector<16x32xf32>
    %122 = arith.mulf %117, %121 : vector<16x32xf32>
    %123 = vector.broadcast %103 : vector<1x32xf32> to vector<16x32xf32>
    %124 = arith.mulf %122, %123 : vector<16x32xf32>
    %125 = vector.broadcast %104 : vector<1x32xf32> to vector<16x32xf32>
    %126 = arith.addf %124, %125 : vector<16x32xf32>
    %127 = arith.truncf %126 : vector<16x32xf32> to vector<16x32xbf16>
    %c0_48 = arith.constant 0 : index
    %c0_49 = arith.constant 0 : index
    %128 = vector.load %arg8[%c0_48, %c0_49] : memref<32x64xbf16, #tpu.memory_space<vmem>>, vector<32x64xbf16>
    %cst_50 = arith.constant dense<0.000000e+00> : vector<16x64xf32>
    %129 = tpu.matmul %127, %128, %cst_50 {dimension_numbers = #tpu.dot_dimension_numbers<[1], [0], [0], [1], [0, 0, 1, 1], [], []>} : vector<16x32xbf16>, vector<32x64xbf16>, vector<16x64xf32> -> vector<16x64xf32>
    %c0_51 = arith.constant 0 : index
    %c0_52 = arith.constant 0 : index
    %130 = vector.load %arg9[%c0_51, %c0_52] : memref<1x64xf32, #tpu.memory_space<vmem>>, vector<1x64xf32>
    %131 = vector.broadcast %130 : vector<1x64xf32> to vector<16x64xf32>
    %132 = arith.addf %129, %131 : vector<16x64xf32>
    %cst_53 = arith.constant 0.000000e+00 : f32
    %133 = vector.broadcast %cst_53 : f32 to vector<16x64xf32>
    %134 = arith.maximumf %132, %133 : vector<16x64xf32>
    %135 = arith.truncf %134 : vector<16x64xf32> to vector<16x64xbf16>
    %c0_54 = arith.constant 0 : index
    %c0_55 = arith.constant 0 : index
    %136 = vector.load %arg10[%c0_54, %c0_55] : memref<64x32xbf16, #tpu.memory_space<vmem>>, vector<64x32xbf16>
    %cst_56 = arith.constant dense<0.000000e+00> : vector<16x32xf32>
    %137 = tpu.matmul %135, %136, %cst_56 {dimension_numbers = #tpu.dot_dimension_numbers<[1], [0], [0], [1], [0, 0, 1, 1], [], []>} : vector<16x64xbf16>, vector<64x32xbf16>, vector<16x32xf32> -> vector<16x32xf32>
    %c0_57 = arith.constant 0 : index
    %c0_58 = arith.constant 0 : index
    %138 = vector.load %arg11[%c0_57, %c0_58] : memref<1x32xf32, #tpu.memory_space<vmem>>, vector<1x32xf32>
    %139 = vector.broadcast %138 : vector<1x32xf32> to vector<16x32xf32>
    %140 = arith.addf %137, %139 : vector<16x32xf32>
    %141 = arith.addf %126, %140 : vector<16x32xf32>
    %c0_59 = arith.constant 0 : index
    %c0_60 = arith.constant 0 : index
    %142 = vector.load %arg12[%c0_59, %c0_60] : memref<1x32xf32, #tpu.memory_space<vmem>>, vector<1x32xf32>
    %c0_61 = arith.constant 0 : index
    %c0_62 = arith.constant 0 : index
    %143 = vector.load %arg13[%c0_61, %c0_62] : memref<1x32xf32, #tpu.memory_space<vmem>>, vector<1x32xf32>
    %cst_63 = arith.constant dense<0.000000e+00> : vector<16xf32>
    %144 = vector.multi_reduction <add>, %141, %cst_63 [1] : vector<16x32xf32> to vector<16xf32>
    %145 = vector.shape_cast %144 : vector<16xf32> to vector<16x1xf32>
    %cst_64 = arith.constant 3.200000e+01 : f32
    %146 = vector.broadcast %cst_64 : f32 to vector<16x1xf32>
    %147 = arith.divf %145, %146 : vector<16x1xf32>
    %148 = vector.broadcast %147 : vector<16x1xf32> to vector<16x32xf32>
    %149 = arith.subf %141, %148 : vector<16x32xf32>
    %150 = arith.mulf %149, %149 : vector<16x32xf32>
    %cst_65 = arith.constant dense<0.000000e+00> : vector<16xf32>
    %151 = vector.multi_reduction <add>, %150, %cst_65 [1] : vector<16x32xf32> to vector<16xf32>
    %152 = vector.shape_cast %151 : vector<16xf32> to vector<16x1xf32>
    %cst_66 = arith.constant 3.200000e+01 : f32
    %153 = vector.broadcast %cst_66 : f32 to vector<16x1xf32>
    %154 = arith.divf %152, %153 : vector<16x1xf32>
    %155 = vector.broadcast %147 : vector<16x1xf32> to vector<16x32xf32>
    %156 = arith.subf %141, %155 : vector<16x32xf32>
    %cst_67 = arith.constant 9.99999974E-6 : f32
    %157 = vector.broadcast %cst_67 : f32 to vector<16x1xf32>
    %158 = arith.addf %154, %157 : vector<16x1xf32>
    %159 = math.rsqrt %158 : vector<16x1xf32>
    %160 = vector.broadcast %159 : vector<16x1xf32> to vector<16x32xf32>
    %161 = arith.mulf %156, %160 : vector<16x32xf32>
    %162 = vector.broadcast %142 : vector<1x32xf32> to vector<16x32xf32>
    %163 = arith.mulf %161, %162 : vector<16x32xf32>
    %164 = vector.broadcast %143 : vector<1x32xf32> to vector<16x32xf32>
    %165 = arith.addf %163, %164 : vector<16x32xf32>
    %166 = vector.shape_cast %165 : vector<16x32xf32> to vector<2x256xf32>
    %167 = arith.truncf %166 : vector<2x256xf32> to vector<2x256xbf16>
    %c0_68 = arith.constant 0 : index
    %c0_69 = arith.constant 0 : index
    %168 = vector.load %arg14[%c0_68, %c0_69] : memref<2x256xbf16, #tpu.memory_space<vmem>>, vector<2x256xbf16>
    tpu.vector_store %arg14[%c0_68, %c0_69], %167 {strides = array<i32>} : memref<2x256xbf16, #tpu.memory_space<vmem>>, vector<2x256xbf16>,
    return
  }
  func.func @transform_0(%arg0: i32) -> (i32, i32) {
    %c0_i32 = arith.constant 0 : i32
    %c0_i32_0 = arith.constant 0 : i32
    return %arg0, %c0_i32 : i32, i32
  }
  func.func @transform_1(%arg0: i32) -> (i32, i32) {
    %c0_i32 = arith.constant 0 : i32
    %c0_i32_0 = arith.constant 0 : i32
    %c0_i32_1 = arith.constant 0 : i32
    return %c0_i32, %c0_i32_0 : i32, i32
  }
  func.func @transform_2(%arg0: i32) -> (i32, i32) {
    %c0_i32 = arith.constant 0 : i32
    %c0_i32_0 = arith.constant 0 : i32
    %c0_i32_1 = arith.constant 0 : i32
    return %c0_i32, %c0_i32_0 : i32, i32
  }
  func.func @transform_3(%arg0: i32) -> (i32, i32) {
    %c0_i32 = arith.constant 0 : i32
    %c0_i32_0 = arith.constant 0 : i32
    %c0_i32_1 = arith.constant 0 : i32
    return %c0_i32, %c0_i32_0 : i32, i32
  }
  func.func @transform_4(%arg0: i32) -> (i32, i32) {
    %c0_i32 = arith.constant 0 : i32
    %c0_i32_0 = arith.constant 0 : i32
    %c0_i32_1 = arith.constant 0 : i32
    return %c0_i32, %c0_i32_0 : i32, i32
  }
  func.func @transform_5(%arg0: i32) -> (i32, i32) {
    %c0_i32 = arith.constant 0 : i32
    %c0_i32_0 = arith.constant 0 : i32
    %c0_i32_1 = arith.constant 0 : i32
    return %c0_i32, %c0_i32_0 : i32, i32
  }
  func.func @transform_6(%arg0: i32) -> (i32, i32) {
    %c0_i32 = arith.constant 0 : i32
    %c0_i32_0 = arith.constant 0 : i32
    %c0_i32_1 = arith.constant 0 : i32
    return %c0_i32, %c0_i32_0 : i32, i32
  }
  func.func @transform_7(%arg0: i32) -> (i32, i32) {
    %c0_i32 = arith.constant 0 : i32
    %c0_i32_0 = arith.constant 0 : i32
    %c0_i32_1 = arith.constant 0 : i32
    return %c0_i32, %c0_i32_0 : i32, i32
  }
  func.func @transform_8(%arg0: i32) -> (i32, i32) {
    %c0_i32 = arith.constant 0 : i32
    %c0_i32_0 = arith.constant 0 : i32
    %c0_i32_1 = arith.constant 0 : i32
    return %c0_i32, %c0_i32_0 : i32, i32
  }
  func.func @transform_9(%arg0: i32) -> (i32, i32) {
    %c0_i32 = arith.constant 0 : i32
    %c0_i32_0 = arith.constant 0 : i32
    %c0_i32_1 = arith.constant 0 : i32
    return %c0_i32, %c0_i32_0 : i32, i32
  }
  func.func @transform_10(%arg0: i32) -> (i32, i32) {
    %c0_i32 = arith.constant 0 : i32
    %c0_i32_0 = arith.constant 0 : i32
    %c0_i32_1 = arith.constant 0 : i32
    return %c0_i32, %c0_i32_0 : i32, i32
  }
  func.func @transform_11(%arg0: i32) -> (i32, i32) {
    %c0_i32 = arith.constant 0 : i32
    %c0_i32_0 = arith.constant 0 : i32
    %c0_i32_1 = arith.constant 0 : i32
    return %c0_i32, %c0_i32_0 : i32, i32
  }
  func.func @transform_12(%arg0: i32) -> (i32, i32) {
    %c0_i32 = arith.constant 0 : i32
    %c0_i32_0 = arith.constant 0 : i32
    %c0_i32_1 = arith.constant 0 : i32
    return %c0_i32, %c0_i32_0 : i32, i32
  }
  func.func @transform_13(%arg0: i32) -> (i32, i32) {
    %c0_i32 = arith.constant 0 : i32
    %c0_i32_0 = arith.constant 0 : i32
    return %arg0, %c0_i32 : i32, i32
  }
}

module attributes {stable_mosaic.version = 11 : i64} {
  func.func @encoder_layer_kernel(%arg0: i32, %arg1: memref<2x8x32xf32, #tpu.memory_space<vmem>>, %arg2: memref<32x96xbf16, #tpu.memory_space<vmem>>, %arg3: memref<1x96xf32, #tpu.memory_space<vmem>>, %arg4: memref<32x32xbf16, #tpu.memory_space<vmem>>, %arg5: memref<1x32xf32, #tpu.memory_space<vmem>>, %arg6: memref<1x32xf32, #tpu.memory_space<vmem>>, %arg7: memref<1x32xf32, #tpu.memory_space<vmem>>, %arg8: memref<32x64xbf16, #tpu.memory_space<vmem>>, %arg9: memref<1x64xf32, #tpu.memory_space<vmem>>, %arg10: memref<64x32xbf16, #tpu.memory_space<vmem>>, %arg11: memref<1x32xf32, #tpu.memory_space<vmem>>, %arg12: memref<1x32xf32, #tpu.memory_space<vmem>>, %arg13: memref<1x32xf32, #tpu.memory_space<vmem>>, %arg14: memref<2x8x32xbf16, #tpu.memory_space<vmem>>, %arg15: memref<2x8x32xf32, #tpu.memory_space<vmem>>) attributes {dimension_semantics = [#tpu.dimension_semantics<parallel>], iteration_bounds = array<i64: 1>, scalar_prefetch = 0 : i64, scratch_operands = 1 : i64, tpu.core_type = #tpu.core_type<tc>, window_params = [{transform_indices = @transform_0, window_bounds = array<i64: 2, 8, 32>}, {pipeline_mode = #tpu.pipeline_mode<synchronous>, transform_indices = @transform_1, window_bounds = array<i64: 32, 96>}, {pipeline_mode = #tpu.pipeline_mode<synchronous>, transform_indices = @transform_2, window_bounds = array<i64: 1, 96>}, {pipeline_mode = #tpu.pipeline_mode<synchronous>, transform_indices = @transform_3, window_bounds = array<i64: 32, 32>}, {pipeline_mode = #tpu.pipeline_mode<synchronous>, transform_indices = @transform_4, window_bounds = array<i64: 1, 32>}, {pipeline_mode = #tpu.pipeline_mode<synchronous>, transform_indices = @transform_5, window_bounds = array<i64: 1, 32>}, {pipeline_mode = #tpu.pipeline_mode<synchronous>, transform_indices = @transform_6, window_bounds = array<i64: 1, 32>}, {pipeline_mode = #tpu.pipeline_mode<synchronous>, transform_indices = @transform_7, window_bounds = array<i64: 32, 64>}, {pipeline_mode = #tpu.pipeline_mode<synchronous>, transform_indices = @transform_8, window_bounds = array<i64: 1, 64>}, {pipeline_mode = #tpu.pipeline_mode<synchronous>, transform_indices = @transform_9, window_bounds = array<i64: 64, 32>}, {pipeline_mode = #tpu.pipeline_mode<synchronous>, transform_indices = @transform_10, window_bounds = array<i64: 1, 32>}, {pipeline_mode = #tpu.pipeline_mode<synchronous>, transform_indices = @transform_11, window_bounds = array<i64: 1, 32>}, {pipeline_mode = #tpu.pipeline_mode<synchronous>, transform_indices = @transform_12, window_bounds = array<i64: 1, 32>}, {transform_indices = @transform_13, window_bounds = array<i64: 2, 8, 32>}]} {
    %c0 = arith.constant 0 : index
    %c0_0 = arith.constant 0 : index
    %c0_1 = arith.constant 0 : index
    %0 = vector.load %arg1[%c0, %c0_0, %c0_1] : memref<2x8x32xf32, #tpu.memory_space<vmem>>, vector<2x8x32xf32>
    %1 = vector.shape_cast %0 : vector<2x8x32xf32> to vector<16x32xf32>
    %2 = arith.truncf %1 : vector<16x32xf32> to vector<16x32xbf16>
    %c0_2 = arith.constant 0 : index
    %c0_3 = arith.constant 0 : index
    %3 = vector.load %arg2[%c0_2, %c0_3] : memref<32x96xbf16, #tpu.memory_space<vmem>>, vector<32x96xbf16>
    %cst = arith.constant dense<0.000000e+00> : vector<16x96xf32>
    %4 = tpu.matmul %2, %3, %cst {dimension_numbers = #tpu.dot_dimension_numbers<[1], [0], [0], [1], [0, 0, 1, 1], [], []>} : vector<16x32xbf16>, vector<32x96xbf16>, vector<16x96xf32> -> vector<16x96xf32>
    %c0_4 = arith.constant 0 : index
    %c0_5 = arith.constant 0 : index
    %5 = vector.load %arg3[%c0_4, %c0_5] : memref<1x96xf32, #tpu.memory_space<vmem>>, vector<1x96xf32>
    %6 = vector.broadcast %5 : vector<1x96xf32> to vector<16x96xf32>
    %7 = arith.addf %4, %6 : vector<16x96xf32>
    %8 = vector.shape_cast %7 : vector<16x96xf32> to vector<2x8x96xf32>
    %9 = vector.extract_strided_slice %8 {offsets = [0, 0, 0], sizes = [2, 8, 32], strides = [1, 1, 1]} : vector<2x8x96xf32> to vector<2x8x32xf32>
    %cst_6 = arith.constant 0.353553385 : f32
    %10 = vector.broadcast %cst_6 : f32 to vector<2x8x32xf32>
    %11 = arith.mulf %9, %10 : vector<2x8x32xf32>
    %12 = vector.extract_strided_slice %8 {offsets = [0, 0, 32], sizes = [2, 8, 32], strides = [1, 1, 1]} : vector<2x8x96xf32> to vector<2x8x32xf32>
    %13 = vector.extract_strided_slice %8 {offsets = [0, 0, 64], sizes = [2, 8, 32], strides = [1, 1, 1]} : vector<2x8x96xf32> to vector<2x8x32xf32>
    %14 = vector.extract_strided_slice %11 {offsets = [0, 0, 0], sizes = [2, 8, 8], strides = [1, 1, 1]} : vector<2x8x32xf32> to vector<2x8x8xf32>
    %15 = arith.truncf %14 : vector<2x8x8xf32> to vector<2x8x8xbf16>
    %16 = vector.extract_strided_slice %12 {offsets = [0, 0, 0], sizes = [2, 8, 8], strides = [1, 1, 1]} : vector<2x8x32xf32> to vector<2x8x8xf32>
    %17 = arith.truncf %16 : vector<2x8x8xf32> to vector<2x8x8xbf16>
    %18 = vector.extract_strided_slice %13 {offsets = [0, 0, 0], sizes = [2, 8, 8], strides = [1, 1, 1]} : vector<2x8x32xf32> to vector<2x8x8xf32>
    %19 = arith.truncf %18 : vector<2x8x8xf32> to vector<2x8x8xbf16>
    "tpu.trace_start"() <{level = 10 : i32, message = "bqd,bkd->bqk"}> : () -> ()
    %cst_7 = arith.constant dense<0.000000e+00> : vector<2x8x8xf32>
    %20 = tpu.matmul %15, %17, %cst_7 {dimension_numbers = #tpu.dot_dimension_numbers<[2], [2], [1], [1], [0, 0, 0, 1, 1, 1], [0], [0]>} : vector<2x8x8xbf16>, vector<2x8x8xbf16>, vector<2x8x8xf32> -> vector<2x8x8xf32>
    "tpu.trace_stop"() : () -> ()
    %cst_8 = arith.constant dense<0xFF800000> : vector<2x8xf32>
    %21 = vector.multi_reduction <maximumf>, %20, %cst_8 [2] : vector<2x8x8xf32> to vector<2x8xf32>
    %22 = vector.shape_cast %21 : vector<2x8xf32> to vector<2x8x1xf32>
    %23 = vector.broadcast %22 : vector<2x8x1xf32> to vector<2x8x8xf32>
    %24 = arith.subf %20, %23 : vector<2x8x8xf32>
    %25 = math.exp %24 : vector<2x8x8xf32>
    %cst_9 = arith.constant dense<0.000000e+00> : vector<2x8xf32>
    %26 = vector.multi_reduction <add>, %25, %cst_9 [2] : vector<2x8x8xf32> to vector<2x8xf32>
    %27 = vector.shape_cast %26 : vector<2x8xf32> to vector<2x8x1xf32>
    %28 = tpu.reciprocal %27 {approx = true} : vector<2x8x1xf32> -> vector<2x8x1xf32>
    %29 = vector.broadcast %28 : vector<2x8x1xf32> to vector<2x8x8xf32>
    %30 = arith.mulf %25, %29 : vector<2x8x8xf32>
    %31 = arith.truncf %30 : vector<2x8x8xf32> to vector<2x8x8xbf16>
    "tpu.trace_start"() <{level = 10 : i32, message = "bqk,bkd->bqd"}> : () -> ()
    %cst_10 = arith.constant dense<0.000000e+00> : vector<2x8x8xf32>
    %32 = tpu.matmul %31, %19, %cst_10 {dimension_numbers = #tpu.dot_dimension_numbers<[2], [1], [1], [2], [0, 0, 0, 1, 1, 2], [0], [0]>} : vector<2x8x8xbf16>, vector<2x8x8xbf16>, vector<2x8x8xf32> -> vector<2x8x8xf32>
    "tpu.trace_stop"() : () -> ()
    %c0_11 = arith.constant 0 : index
    %c0_12 = arith.constant 0 : index
    %c0_13 = arith.constant 0 : index
    %33 = vector.load %arg15[%c0_11, %c0_12, %c0_13] : memref<2x8x32xf32, #tpu.memory_space<vmem>>, vector<2x8x8xf32>
    tpu.vector_store %arg15[%c0_11, %c0_12, %c0_13], %32 {strides = array<i32>} : memref<2x8x32xf32, #tpu.memory_space<vmem>>, vector<2x8x8xf32>,
    %34 = vector.extract_strided_slice %11 {offsets = [0, 0, 8], sizes = [2, 8, 8], strides = [1, 1, 1]} : vector<2x8x32xf32> to vector<2x8x8xf32>
    %35 = arith.truncf %34 : vector<2x8x8xf32> to vector<2x8x8xbf16>
    %36 = vector.extract_strided_slice %12 {offsets = [0, 0, 8], sizes = [2, 8, 8], strides = [1, 1, 1]} : vector<2x8x32xf32> to vector<2x8x8xf32>
    %37 = arith.truncf %36 : vector<2x8x8xf32> to vector<2x8x8xbf16>
    %38 = vector.extract_strided_slice %13 {offsets = [0, 0, 8], sizes = [2, 8, 8], strides = [1, 1, 1]} : vector<2x8x32xf32> to vector<2x8x8xf32>
    %39 = arith.truncf %38 : vector<2x8x8xf32> to vector<2x8x8xbf16>
    "tpu.trace_start"() <{level = 10 : i32, message = "bqd,bkd->bqk"}> : () -> ()
    %cst_14 = arith.constant dense<0.000000e+00> : vector<2x8x8xf32>
    %40 = tpu.matmul %35, %37, %cst_14 {dimension_numbers = #tpu.dot_dimension_numbers<[2], [2], [1], [1], [0, 0, 0, 1, 1, 1], [0], [0]>} : vector<2x8x8xbf16>, vector<2x8x8xbf16>, vector<2x8x8xf32> -> vector<2x8x8xf32>
    "tpu.trace_stop"() : () -> ()
    %cst_15 = arith.constant dense<0xFF800000> : vector<2x8xf32>
    %41 = vector.multi_reduction <maximumf>, %40, %cst_15 [2] : vector<2x8x8xf32> to vector<2x8xf32>
    %42 = vector.shape_cast %41 : vector<2x8xf32> to vector<2x8x1xf32>
    %43 = vector.broadcast %42 : vector<2x8x1xf32> to vector<2x8x8xf32>
    %44 = arith.subf %40, %43 : vector<2x8x8xf32>
    %45 = math.exp %44 : vector<2x8x8xf32>
    %cst_16 = arith.constant dense<0.000000e+00> : vector<2x8xf32>
    %46 = vector.multi_reduction <add>, %45, %cst_16 [2] : vector<2x8x8xf32> to vector<2x8xf32>
    %47 = vector.shape_cast %46 : vector<2x8xf32> to vector<2x8x1xf32>
    %48 = tpu.reciprocal %47 {approx = true} : vector<2x8x1xf32> -> vector<2x8x1xf32>
    %49 = vector.broadcast %48 : vector<2x8x1xf32> to vector<2x8x8xf32>
    %50 = arith.mulf %45, %49 : vector<2x8x8xf32>
    %51 = arith.truncf %50 : vector<2x8x8xf32> to vector<2x8x8xbf16>
    "tpu.trace_start"() <{level = 10 : i32, message = "bqk,bkd->bqd"}> : () -> ()
    %cst_17 = arith.constant dense<0.000000e+00> : vector<2x8x8xf32>
    %52 = tpu.matmul %51, %39, %cst_17 {dimension_numbers = #tpu.dot_dimension_numbers<[2], [1], [1], [2], [0, 0, 0, 1, 1, 2], [0], [0]>} : vector<2x8x8xbf16>, vector<2x8x8xbf16>, vector<2x8x8xf32> -> vector<2x8x8xf32>
    "tpu.trace_stop"() : () -> ()
    %c0_18 = arith.constant 0 : index
    %c0_19 = arith.constant 0 : index
    %c8 = arith.constant 8 : index
    %53 = vector.load %arg15[%c0_18, %c0_19, %c8] : memref<2x8x32xf32, #tpu.memory_space<vmem>>, vector<2x8x8xf32>
    tpu.vector_store %arg15[%c0_18, %c0_19, %c8], %52 {strides = array<i32>} : memref<2x8x32xf32, #tpu.memory_space<vmem>>, vector<2x8x8xf32>,
    %54 = vector.extract_strided_slice %11 {offsets = [0, 0, 16], sizes = [2, 8, 8], strides = [1, 1, 1]} : vector<2x8x32xf32> to vector<2x8x8xf32>
    %55 = arith.truncf %54 : vector<2x8x8xf32> to vector<2x8x8xbf16>
    %56 = vector.extract_strided_slice %12 {offsets = [0, 0, 16], sizes = [2, 8, 8], strides = [1, 1, 1]} : vector<2x8x32xf32> to vector<2x8x8xf32>
    %57 = arith.truncf %56 : vector<2x8x8xf32> to vector<2x8x8xbf16>
    %58 = vector.extract_strided_slice %13 {offsets = [0, 0, 16], sizes = [2, 8, 8], strides = [1, 1, 1]} : vector<2x8x32xf32> to vector<2x8x8xf32>
    %59 = arith.truncf %58 : vector<2x8x8xf32> to vector<2x8x8xbf16>
    "tpu.trace_start"() <{level = 10 : i32, message = "bqd,bkd->bqk"}> : () -> ()
    %cst_20 = arith.constant dense<0.000000e+00> : vector<2x8x8xf32>
    %60 = tpu.matmul %55, %57, %cst_20 {dimension_numbers = #tpu.dot_dimension_numbers<[2], [2], [1], [1], [0, 0, 0, 1, 1, 1], [0], [0]>} : vector<2x8x8xbf16>, vector<2x8x8xbf16>, vector<2x8x8xf32> -> vector<2x8x8xf32>
    "tpu.trace_stop"() : () -> ()
    %cst_21 = arith.constant dense<0xFF800000> : vector<2x8xf32>
    %61 = vector.multi_reduction <maximumf>, %60, %cst_21 [2] : vector<2x8x8xf32> to vector<2x8xf32>
    %62 = vector.shape_cast %61 : vector<2x8xf32> to vector<2x8x1xf32>
    %63 = vector.broadcast %62 : vector<2x8x1xf32> to vector<2x8x8xf32>
    %64 = arith.subf %60, %63 : vector<2x8x8xf32>
    %65 = math.exp %64 : vector<2x8x8xf32>
    %cst_22 = arith.constant dense<0.000000e+00> : vector<2x8xf32>
    %66 = vector.multi_reduction <add>, %65, %cst_22 [2] : vector<2x8x8xf32> to vector<2x8xf32>
    %67 = vector.shape_cast %66 : vector<2x8xf32> to vector<2x8x1xf32>
    %68 = tpu.reciprocal %67 {approx = true} : vector<2x8x1xf32> -> vector<2x8x1xf32>
    %69 = vector.broadcast %68 : vector<2x8x1xf32> to vector<2x8x8xf32>
    %70 = arith.mulf %65, %69 : vector<2x8x8xf32>
    %71 = arith.truncf %70 : vector<2x8x8xf32> to vector<2x8x8xbf16>
    "tpu.trace_start"() <{level = 10 : i32, message = "bqk,bkd->bqd"}> : () -> ()
    %cst_23 = arith.constant dense<0.000000e+00> : vector<2x8x8xf32>
    %72 = tpu.matmul %71, %59, %cst_23 {dimension_numbers = #tpu.dot_dimension_numbers<[2], [1], [1], [2], [0, 0, 0, 1, 1, 2], [0], [0]>} : vector<2x8x8xbf16>, vector<2x8x8xbf16>, vector<2x8x8xf32> -> vector<2x8x8xf32>
    "tpu.trace_stop"() : () -> ()
    %c0_24 = arith.constant 0 : index
    %c0_25 = arith.constant 0 : index
    %c16 = arith.constant 16 : index
    %73 = vector.load %arg15[%c0_24, %c0_25, %c16] : memref<2x8x32xf32, #tpu.memory_space<vmem>>, vector<2x8x8xf32>
    tpu.vector_store %arg15[%c0_24, %c0_25, %c16], %72 {strides = array<i32>} : memref<2x8x32xf32, #tpu.memory_space<vmem>>, vector<2x8x8xf32>,
    %74 = vector.extract_strided_slice %11 {offsets = [0, 0, 24], sizes = [2, 8, 8], strides = [1, 1, 1]} : vector<2x8x32xf32> to vector<2x8x8xf32>
    %75 = arith.truncf %74 : vector<2x8x8xf32> to vector<2x8x8xbf16>
    %76 = vector.extract_strided_slice %12 {offsets = [0, 0, 24], sizes = [2, 8, 8], strides = [1, 1, 1]} : vector<2x8x32xf32> to vector<2x8x8xf32>
    %77 = arith.truncf %76 : vector<2x8x8xf32> to vector<2x8x8xbf16>
    %78 = vector.extract_strided_slice %13 {offsets = [0, 0, 24], sizes = [2, 8, 8], strides = [1, 1, 1]} : vector<2x8x32xf32> to vector<2x8x8xf32>
    %79 = arith.truncf %78 : vector<2x8x8xf32> to vector<2x8x8xbf16>
    "tpu.trace_start"() <{level = 10 : i32, message = "bqd,bkd->bqk"}> : () -> ()
    %cst_26 = arith.constant dense<0.000000e+00> : vector<2x8x8xf32>
    %80 = tpu.matmul %75, %77, %cst_26 {dimension_numbers = #tpu.dot_dimension_numbers<[2], [2], [1], [1], [0, 0, 0, 1, 1, 1], [0], [0]>} : vector<2x8x8xbf16>, vector<2x8x8xbf16>, vector<2x8x8xf32> -> vector<2x8x8xf32>
    "tpu.trace_stop"() : () -> ()
    %cst_27 = arith.constant dense<0xFF800000> : vector<2x8xf32>
    %81 = vector.multi_reduction <maximumf>, %80, %cst_27 [2] : vector<2x8x8xf32> to vector<2x8xf32>
    %82 = vector.shape_cast %81 : vector<2x8xf32> to vector<2x8x1xf32>
    %83 = vector.broadcast %82 : vector<2x8x1xf32> to vector<2x8x8xf32>
    %84 = arith.subf %80, %83 : vector<2x8x8xf32>
    %85 = math.exp %84 : vector<2x8x8xf32>
    %cst_28 = arith.constant dense<0.000000e+00> : vector<2x8xf32>
    %86 = vector.multi_reduction <add>, %85, %cst_28 [2] : vector<2x8x8xf32> to vector<2x8xf32>
    %87 = vector.shape_cast %86 : vector<2x8xf32> to vector<2x8x1xf32>
    %88 = tpu.reciprocal %87 {approx = true} : vector<2x8x1xf32> -> vector<2x8x1xf32>
    %89 = vector.broadcast %88 : vector<2x8x1xf32> to vector<2x8x8xf32>
    %90 = arith.mulf %85, %89 : vector<2x8x8xf32>
    %91 = arith.truncf %90 : vector<2x8x8xf32> to vector<2x8x8xbf16>
    "tpu.trace_start"() <{level = 10 : i32, message = "bqk,bkd->bqd"}> : () -> ()
    %cst_29 = arith.constant dense<0.000000e+00> : vector<2x8x8xf32>
    %92 = tpu.matmul %91, %79, %cst_29 {dimension_numbers = #tpu.dot_dimension_numbers<[2], [1], [1], [2], [0, 0, 0, 1, 1, 2], [0], [0]>} : vector<2x8x8xbf16>, vector<2x8x8xbf16>, vector<2x8x8xf32> -> vector<2x8x8xf32>
    "tpu.trace_stop"() : () -> ()
    %c0_30 = arith.constant 0 : index
    %c0_31 = arith.constant 0 : index
    %c24 = arith.constant 24 : index
    %93 = vector.load %arg15[%c0_30, %c0_31, %c24] : memref<2x8x32xf32, #tpu.memory_space<vmem>>, vector<2x8x8xf32>
    tpu.vector_store %arg15[%c0_30, %c0_31, %c24], %92 {strides = array<i32>} : memref<2x8x32xf32, #tpu.memory_space<vmem>>, vector<2x8x8xf32>,
    %c0_32 = arith.constant 0 : index
    %c0_33 = arith.constant 0 : index
    %c0_34 = arith.constant 0 : index
    %94 = vector.load %arg15[%c0_32, %c0_33, %c0_34] : memref<2x8x32xf32, #tpu.memory_space<vmem>>, vector<2x8x32xf32>
    %95 = vector.shape_cast %94 : vector<2x8x32xf32> to vector<16x32xf32>
    %96 = arith.truncf %95 : vector<16x32xf32> to vector<16x32xbf16>
    %c0_35 = arith.constant 0 : index
    %c0_36 = arith.constant 0 : index
    %97 = vector.load %arg4[%c0_35, %c0_36] : memref<32x32xbf16, #tpu.memory_space<vmem>>, vector<32x32xbf16>
    %cst_37 = arith.constant dense<0.000000e+00> : vector<16x32xf32>
    %98 = tpu.matmul %96, %97, %cst_37 {dimension_numbers = #tpu.dot_dimension_numbers<[1], [0], [0], [1], [0, 0, 1, 1], [], []>} : vector<16x32xbf16>, vector<32x32xbf16>, vector<16x32xf32> -> vector<16x32xf32>
    %c0_38 = arith.constant 0 : index
    %c0_39 = arith.constant 0 : index
    %99 = vector.load %arg5[%c0_38, %c0_39] : memref<1x32xf32, #tpu.memory_space<vmem>>, vector<1x32xf32>
    %100 = vector.broadcast %99 : vector<1x32xf32> to vector<16x32xf32>
    %101 = arith.addf %98, %100 : vector<16x32xf32>
    %102 = arith.addf %1, %101 : vector<16x32xf32>
    %c0_40 = arith.constant 0 : index
    %c0_41 = arith.constant 0 : index
    %103 = vector.load %arg6[%c0_40, %c0_41] : memref<1x32xf32, #tpu.memory_space<vmem>>, vector<1x32xf32>
    %c0_42 = arith.constant 0 : index
    %c0_43 = arith.constant 0 : index
    %104 = vector.load %arg7[%c0_42, %c0_43] : memref<1x32xf32, #tpu.memory_space<vmem>>, vector<1x32xf32>
    %cst_44 = arith.constant dense<0.000000e+00> : vector<16xf32>
    %105 = vector.multi_reduction <add>, %102, %cst_44 [1] : vector<16x32xf32> to vector<16xf32>
    %106 = vector.shape_cast %105 : vector<16xf32> to vector<16x1xf32>
    %cst_45 = arith.constant 3.200000e+01 : f32
    %107 = vector.broadcast %cst_45 : f32 to vector<16x1xf32>
    %108 = arith.divf %106, %107 : vector<16x1xf32>
    %109 = vector.broadcast %108 : vector<16x1xf32> to vector<16x32xf32>
    %110 = arith.subf %102, %109 : vector<16x32xf32>
    %111 = arith.mulf %110, %110 : vector<16x32xf32>
    %cst_46 = arith.constant dense<0.000000e+00> : vector<16xf32>
    %112 = vector.multi_reduction <add>, %111, %cst_46 [1] : vector<16x32xf32> to vector<16xf32>
    %113 = vector.shape_cast %112 : vector<16xf32> to vector<16x1xf32>
    %cst_47 = arith.constant 3.200000e+01 : f32
    %114 = vector.broadcast %cst_47 : f32 to vector<16x1xf32>
    %115 = arith.divf %113, %114 : vector<16x1xf32>
    %116 = vector.broadcast %108 : vector<16x1xf32> to vector<16x32xf32>
    %117 = arith.subf %102, %116 : vector<16x32xf32>
    %cst_48 = arith.constant 9.99999974E-6 : f32
    %118 = vector.broadcast %cst_48 : f32 to vector<16x1xf32>
    %119 = arith.addf %115, %118 : vector<16x1xf32>
    %120 = math.rsqrt %119 : vector<16x1xf32>
    %121 = vector.broadcast %120 : vector<16x1xf32> to vector<16x32xf32>
    %122 = arith.mulf %117, %121 : vector<16x32xf32>
    %123 = vector.broadcast %103 : vector<1x32xf32> to vector<16x32xf32>
    %124 = arith.mulf %122, %123 : vector<16x32xf32>
    %125 = vector.broadcast %104 : vector<1x32xf32> to vector<16x32xf32>
    %126 = arith.addf %124, %125 : vector<16x32xf32>
    %127 = arith.truncf %126 : vector<16x32xf32> to vector<16x32xbf16>
    %c0_49 = arith.constant 0 : index
    %c0_50 = arith.constant 0 : index
    %128 = vector.load %arg8[%c0_49, %c0_50] : memref<32x64xbf16, #tpu.memory_space<vmem>>, vector<32x64xbf16>
    %cst_51 = arith.constant dense<0.000000e+00> : vector<16x64xf32>
    %129 = tpu.matmul %127, %128, %cst_51 {dimension_numbers = #tpu.dot_dimension_numbers<[1], [0], [0], [1], [0, 0, 1, 1], [], []>} : vector<16x32xbf16>, vector<32x64xbf16>, vector<16x64xf32> -> vector<16x64xf32>
    %c0_52 = arith.constant 0 : index
    %c0_53 = arith.constant 0 : index
    %130 = vector.load %arg9[%c0_52, %c0_53] : memref<1x64xf32, #tpu.memory_space<vmem>>, vector<1x64xf32>
    %131 = vector.broadcast %130 : vector<1x64xf32> to vector<16x64xf32>
    %132 = arith.addf %129, %131 : vector<16x64xf32>
    %cst_54 = arith.constant 0.000000e+00 : f32
    %133 = vector.broadcast %cst_54 : f32 to vector<16x64xf32>
    %134 = arith.maximumf %132, %133 : vector<16x64xf32>
    %135 = arith.truncf %134 : vector<16x64xf32> to vector<16x64xbf16>
    %c0_55 = arith.constant 0 : index
    %c0_56 = arith.constant 0 : index
    %136 = vector.load %arg10[%c0_55, %c0_56] : memref<64x32xbf16, #tpu.memory_space<vmem>>, vector<64x32xbf16>
    %cst_57 = arith.constant dense<0.000000e+00> : vector<16x32xf32>
    %137 = tpu.matmul %135, %136, %cst_57 {dimension_numbers = #tpu.dot_dimension_numbers<[1], [0], [0], [1], [0, 0, 1, 1], [], []>} : vector<16x64xbf16>, vector<64x32xbf16>, vector<16x32xf32> -> vector<16x32xf32>
    %c0_58 = arith.constant 0 : index
    %c0_59 = arith.constant 0 : index
    %138 = vector.load %arg11[%c0_58, %c0_59] : memref<1x32xf32, #tpu.memory_space<vmem>>, vector<1x32xf32>
    %139 = vector.broadcast %138 : vector<1x32xf32> to vector<16x32xf32>
    %140 = arith.addf %137, %139 : vector<16x32xf32>
    %141 = arith.addf %126, %140 : vector<16x32xf32>
    %c0_60 = arith.constant 0 : index
    %c0_61 = arith.constant 0 : index
    %142 = vector.load %arg12[%c0_60, %c0_61] : memref<1x32xf32, #tpu.memory_space<vmem>>, vector<1x32xf32>
    %c0_62 = arith.constant 0 : index
    %c0_63 = arith.constant 0 : index
    %143 = vector.load %arg13[%c0_62, %c0_63] : memref<1x32xf32, #tpu.memory_space<vmem>>, vector<1x32xf32>
    %cst_64 = arith.constant dense<0.000000e+00> : vector<16xf32>
    %144 = vector.multi_reduction <add>, %141, %cst_64 [1] : vector<16x32xf32> to vector<16xf32>
    %145 = vector.shape_cast %144 : vector<16xf32> to vector<16x1xf32>
    %cst_65 = arith.constant 3.200000e+01 : f32
    %146 = vector.broadcast %cst_65 : f32 to vector<16x1xf32>
    %147 = arith.divf %145, %146 : vector<16x1xf32>
    %148 = vector.broadcast %147 : vector<16x1xf32> to vector<16x32xf32>
    %149 = arith.subf %141, %148 : vector<16x32xf32>
    %150 = arith.mulf %149, %149 : vector<16x32xf32>
    %cst_66 = arith.constant dense<0.000000e+00> : vector<16xf32>
    %151 = vector.multi_reduction <add>, %150, %cst_66 [1] : vector<16x32xf32> to vector<16xf32>
    %152 = vector.shape_cast %151 : vector<16xf32> to vector<16x1xf32>
    %cst_67 = arith.constant 3.200000e+01 : f32
    %153 = vector.broadcast %cst_67 : f32 to vector<16x1xf32>
    %154 = arith.divf %152, %153 : vector<16x1xf32>
    %155 = vector.broadcast %147 : vector<16x1xf32> to vector<16x32xf32>
    %156 = arith.subf %141, %155 : vector<16x32xf32>
    %cst_68 = arith.constant 9.99999974E-6 : f32
    %157 = vector.broadcast %cst_68 : f32 to vector<16x1xf32>
    %158 = arith.addf %154, %157 : vector<16x1xf32>
    %159 = math.rsqrt %158 : vector<16x1xf32>
    %160 = vector.broadcast %159 : vector<16x1xf32> to vector<16x32xf32>
    %161 = arith.mulf %156, %160 : vector<16x32xf32>
    %162 = vector.broadcast %142 : vector<1x32xf32> to vector<16x32xf32>
    %163 = arith.mulf %161, %162 : vector<16x32xf32>
    %164 = vector.broadcast %143 : vector<1x32xf32> to vector<16x32xf32>
    %165 = arith.addf %163, %164 : vector<16x32xf32>
    %166 = vector.shape_cast %165 : vector<16x32xf32> to vector<2x8x32xf32>
    %167 = arith.truncf %166 : vector<2x8x32xf32> to vector<2x8x32xbf16>
    %c0_69 = arith.constant 0 : index
    %c0_70 = arith.constant 0 : index
    %c0_71 = arith.constant 0 : index
    %168 = vector.load %arg14[%c0_69, %c0_70, %c0_71] : memref<2x8x32xbf16, #tpu.memory_space<vmem>>, vector<2x8x32xbf16>
    tpu.vector_store %arg14[%c0_69, %c0_70, %c0_71], %167 {strides = array<i32>} : memref<2x8x32xbf16, #tpu.memory_space<vmem>>, vector<2x8x32xbf16>,
    return
  }
  func.func @transform_0(%arg0: i32) -> (i32, i32, i32) {
    %c0_i32 = arith.constant 0 : i32
    %c0_i32_0 = arith.constant 0 : i32
    %c0_i32_1 = arith.constant 0 : i32
    return %arg0, %c0_i32, %c0_i32_0 : i32, i32, i32
  }
  func.func @transform_1(%arg0: i32) -> (i32, i32) {
    %c0_i32 = arith.constant 0 : i32
    %c0_i32_0 = arith.constant 0 : i32
    %c0_i32_1 = arith.constant 0 : i32
    return %c0_i32, %c0_i32_0 : i32, i32
  }
  func.func @transform_2(%arg0: i32) -> (i32, i32) {
    %c0_i32 = arith.constant 0 : i32
    %c0_i32_0 = arith.constant 0 : i32
    %c0_i32_1 = arith.constant 0 : i32
    return %c0_i32, %c0_i32_0 : i32, i32
  }
  func.func @transform_3(%arg0: i32) -> (i32, i32) {
    %c0_i32 = arith.constant 0 : i32
    %c0_i32_0 = arith.constant 0 : i32
    %c0_i32_1 = arith.constant 0 : i32
    return %c0_i32, %c0_i32_0 : i32, i32
  }
  func.func @transform_4(%arg0: i32) -> (i32, i32) {
    %c0_i32 = arith.constant 0 : i32
    %c0_i32_0 = arith.constant 0 : i32
    %c0_i32_1 = arith.constant 0 : i32
    return %c0_i32, %c0_i32_0 : i32, i32
  }
  func.func @transform_5(%arg0: i32) -> (i32, i32) {
    %c0_i32 = arith.constant 0 : i32
    %c0_i32_0 = arith.constant 0 : i32
    %c0_i32_1 = arith.constant 0 : i32
    return %c0_i32, %c0_i32_0 : i32, i32
  }
  func.func @transform_6(%arg0: i32) -> (i32, i32) {
    %c0_i32 = arith.constant 0 : i32
    %c0_i32_0 = arith.constant 0 : i32
    %c0_i32_1 = arith.constant 0 : i32
    return %c0_i32, %c0_i32_0 : i32, i32
  }
  func.func @transform_7(%arg0: i32) -> (i32, i32) {
    %c0_i32 = arith.constant 0 : i32
    %c0_i32_0 = arith.constant 0 : i32
    %c0_i32_1 = arith.constant 0 : i32
    return %c0_i32, %c0_i32_0 : i32, i32
  }
  func.func @transform_8(%arg0: i32) -> (i32, i32) {
    %c0_i32 = arith.constant 0 : i32
    %c0_i32_0 = arith.constant 0 : i32
    %c0_i32_1 = arith.constant 0 : i32
    return %c0_i32, %c0_i32_0 : i32, i32
  }
  func.func @transform_9(%arg0: i32) -> (i32, i32) {
    %c0_i32 = arith.constant 0 : i32
    %c0_i32_0 = arith.constant 0 : i32
    %c0_i32_1 = arith.constant 0 : i32
    return %c0_i32, %c0_i32_0 : i32, i32
  }
  func.func @transform_10(%arg0: i32) -> (i32, i32) {
    %c0_i32 = arith.constant 0 : i32
    %c0_i32_0 = arith.constant 0 : i32
    %c0_i32_1 = arith.constant 0 : i32
    return %c0_i32, %c0_i32_0 : i32, i32
  }
  func.func @transform_11(%arg0: i32) -> (i32, i32) {
    %c0_i32 = arith.constant 0 : i32
    %c0_i32_0 = arith.constant 0 : i32
    %c0_i32_1 = arith.constant 0 : i32
    return %c0_i32, %c0_i32_0 : i32, i32
  }
  func.func @transform_12(%arg0: i32) -> (i32, i32) {
    %c0_i32 = arith.constant 0 : i32
    %c0_i32_0 = arith.constant 0 : i32
    %c0_i32_1 = arith.constant 0 : i32
    return %c0_i32, %c0_i32_0 : i32, i32
  }
  func.func @transform_13(%arg0: i32) -> (i32, i32, i32) {
    %c0_i32 = arith.constant 0 : i32
    %c0_i32_0 = arith.constant 0 : i32
    %c0_i32_1 = arith.constant 0 : i32
    return %arg0, %c0_i32, %c0_i32_0 : i32, i32, i32
  }
}

module attributes {stable_mosaic.version = 11 : i64} {
  func.func @encoder_layer_kernel(%arg0: i32, %arg1: memref<2x8x32xf32, #tpu.memory_space<vmem>>, %arg2: memref<32x96xbf16, #tpu.memory_space<vmem>>, %arg3: memref<1x96xf32, #tpu.memory_space<vmem>>, %arg4: memref<32x32xbf16, #tpu.memory_space<vmem>>, %arg5: memref<1x32xf32, #tpu.memory_space<vmem>>, %arg6: memref<1x32xf32, #tpu.memory_space<vmem>>, %arg7: memref<1x32xf32, #tpu.memory_space<vmem>>, %arg8: memref<32x64xbf16, #tpu.memory_space<vmem>>, %arg9: memref<1x64xf32, #tpu.memory_space<vmem>>, %arg10: memref<64x32xbf16, #tpu.memory_space<vmem>>, %arg11: memref<1x32xf32, #tpu.memory_space<vmem>>, %arg12: memref<1x32xf32, #tpu.memory_space<vmem>>, %arg13: memref<1x32xf32, #tpu.memory_space<vmem>>, %arg14: memref<2x8x32xbf16, #tpu.memory_space<vmem>>, %arg15: memref<2x8x32xf32, #tpu.memory_space<vmem>>) attributes {dimension_semantics = [#tpu.dimension_semantics<parallel>], iteration_bounds = array<i64: 1>, scalar_prefetch = 0 : i64, scratch_operands = 1 : i64, tpu.core_type = #tpu.core_type<tc>, window_params = [{transform_indices = @transform_0, window_bounds = array<i64: 2, 8, 32>}, {pipeline_mode = #tpu.pipeline_mode<synchronous>, transform_indices = @transform_1, window_bounds = array<i64: 32, 96>}, {pipeline_mode = #tpu.pipeline_mode<synchronous>, transform_indices = @transform_2, window_bounds = array<i64: 1, 96>}, {pipeline_mode = #tpu.pipeline_mode<synchronous>, transform_indices = @transform_3, window_bounds = array<i64: 32, 32>}, {pipeline_mode = #tpu.pipeline_mode<synchronous>, transform_indices = @transform_4, window_bounds = array<i64: 1, 32>}, {pipeline_mode = #tpu.pipeline_mode<synchronous>, transform_indices = @transform_5, window_bounds = array<i64: 1, 32>}, {pipeline_mode = #tpu.pipeline_mode<synchronous>, transform_indices = @transform_6, window_bounds = array<i64: 1, 32>}, {pipeline_mode = #tpu.pipeline_mode<synchronous>, transform_indices = @transform_7, window_bounds = array<i64: 32, 64>}, {pipeline_mode = #tpu.pipeline_mode<synchronous>, transform_indices = @transform_8, window_bounds = array<i64: 1, 64>}, {pipeline_mode = #tpu.pipeline_mode<synchronous>, transform_indices = @transform_9, window_bounds = array<i64: 64, 32>}, {pipeline_mode = #tpu.pipeline_mode<synchronous>, transform_indices = @transform_10, window_bounds = array<i64: 1, 32>}, {pipeline_mode = #tpu.pipeline_mode<synchronous>, transform_indices = @transform_11, window_bounds = array<i64: 1, 32>}, {pipeline_mode = #tpu.pipeline_mode<synchronous>, transform_indices = @transform_12, window_bounds = array<i64: 1, 32>}, {transform_indices = @transform_13, window_bounds = array<i64: 2, 8, 32>}]} {
    %c0 = arith.constant 0 : index
    %c0_0 = arith.constant 0 : index
    %c0_1 = arith.constant 0 : index
    %0 = vector.load %arg1[%c0, %c0_0, %c0_1] : memref<2x8x32xf32, #tpu.memory_space<vmem>>, vector<2x8x32xf32>
    %1 = vector.shape_cast %0 : vector<2x8x32xf32> to vector<16x32xf32>
    %2 = arith.truncf %1 : vector<16x32xf32> to vector<16x32xbf16>
    %c0_2 = arith.constant 0 : index
    %c0_3 = arith.constant 0 : index
    %3 = vector.load %arg2[%c0_2, %c0_3] : memref<32x96xbf16, #tpu.memory_space<vmem>>, vector<32x96xbf16>
    %cst = arith.constant dense<0.000000e+00> : vector<16x96xf32>
    %4 = tpu.matmul %2, %3, %cst {dimension_numbers = #tpu.dot_dimension_numbers<[1], [0], [0], [1], [0, 0, 1, 1], [], []>} : vector<16x32xbf16>, vector<32x96xbf16>, vector<16x96xf32> -> vector<16x96xf32>
    %c0_4 = arith.constant 0 : index
    %c0_5 = arith.constant 0 : index
    %5 = vector.load %arg3[%c0_4, %c0_5] : memref<1x96xf32, #tpu.memory_space<vmem>>, vector<1x96xf32>
    %6 = vector.broadcast %5 : vector<1x96xf32> to vector<16x96xf32>
    %7 = arith.addf %4, %6 : vector<16x96xf32>
    %8 = vector.shape_cast %7 : vector<16x96xf32> to vector<2x8x96xf32>
    %9 = vector.extract_strided_slice %8 {offsets = [0, 0, 0], sizes = [2, 8, 32], strides = [1, 1, 1]} : vector<2x8x96xf32> to vector<2x8x32xf32>
    %cst_6 = arith.constant 0.353553385 : f32
    %10 = vector.broadcast %cst_6 : f32 to vector<2x8x32xf32>
    %11 = arith.mulf %9, %10 : vector<2x8x32xf32>
    %12 = vector.extract_strided_slice %8 {offsets = [0, 0, 32], sizes = [2, 8, 32], strides = [1, 1, 1]} : vector<2x8x96xf32> to vector<2x8x32xf32>
    %13 = vector.extract_strided_slice %8 {offsets = [0, 0, 64], sizes = [2, 8, 32], strides = [1, 1, 1]} : vector<2x8x96xf32> to vector<2x8x32xf32>
    %14 = vector.extract_strided_slice %11 {offsets = [0, 0, 0], sizes = [2, 8, 8], strides = [1, 1, 1]} : vector<2x8x32xf32> to vector<2x8x8xf32>
    %15 = arith.truncf %14 : vector<2x8x8xf32> to vector<2x8x8xbf16>
    %16 = vector.extract_strided_slice %12 {offsets = [0, 0, 0], sizes = [2, 8, 8], strides = [1, 1, 1]} : vector<2x8x32xf32> to vector<2x8x8xf32>
    %17 = arith.truncf %16 : vector<2x8x8xf32> to vector<2x8x8xbf16>
    %18 = vector.extract_strided_slice %13 {offsets = [0, 0, 0], sizes = [2, 8, 8], strides = [1, 1, 1]} : vector<2x8x32xf32> to vector<2x8x8xf32>
    %19 = arith.truncf %18 : vector<2x8x8xf32> to vector<2x8x8xbf16>
    "tpu.trace_start"() <{level = 10 : i32, message = "bqd,bkd->bqk"}> : () -> ()
    %cst_7 = arith.constant dense<0.000000e+00> : vector<2x8x8xf32>
    %20 = tpu.matmul %15, %17, %cst_7 {dimension_numbers = #tpu.dot_dimension_numbers<[2], [2], [1], [1], [0, 0, 0, 1, 1, 1], [0], [0]>} : vector<2x8x8xbf16>, vector<2x8x8xbf16>, vector<2x8x8xf32> -> vector<2x8x8xf32>
    "tpu.trace_stop"() : () -> ()
    %cst_8 = arith.constant dense<0xFF800000> : vector<2x8xf32>
    %21 = vector.multi_reduction <maximumf>, %20, %cst_8 [2] : vector<2x8x8xf32> to vector<2x8xf32>
    %22 = vector.shape_cast %21 : vector<2x8xf32> to vector<2x8x1xf32>
    %23 = vector.broadcast %22 : vector<2x8x1xf32> to vector<2x8x8xf32>
    %24 = arith.subf %20, %23 : vector<2x8x8xf32>
    %25 = math.exp %24 : vector<2x8x8xf32>
    %cst_9 = arith.constant dense<0.000000e+00> : vector<2x8xf32>
    %26 = vector.multi_reduction <add>, %25, %cst_9 [2] : vector<2x8x8xf32> to vector<2x8xf32>
    %27 = vector.shape_cast %26 : vector<2x8xf32> to vector<2x8x1xf32>
    %28 = tpu.reciprocal %27 {approx = true} : vector<2x8x1xf32> -> vector<2x8x1xf32>
    %29 = vector.broadcast %28 : vector<2x8x1xf32> to vector<2x8x8xf32>
    %30 = arith.mulf %25, %29 : vector<2x8x8xf32>
    %31 = arith.truncf %30 : vector<2x8x8xf32> to vector<2x8x8xbf16>
    "tpu.trace_start"() <{level = 10 : i32, message = "bqk,bkd->bqd"}> : () -> ()
    %cst_10 = arith.constant dense<0.000000e+00> : vector<2x8x8xf32>
    %32 = tpu.matmul %31, %19, %cst_10 {dimension_numbers = #tpu.dot_dimension_numbers<[2], [1], [1], [2], [0, 0, 0, 1, 1, 2], [0], [0]>} : vector<2x8x8xbf16>, vector<2x8x8xbf16>, vector<2x8x8xf32> -> vector<2x8x8xf32>
    "tpu.trace_stop"() : () -> ()
    %c0_11 = arith.constant 0 : index
    %c0_12 = arith.constant 0 : index
    %c0_13 = arith.constant 0 : index
    %33 = vector.load %arg15[%c0_11, %c0_12, %c0_13] : memref<2x8x32xf32, #tpu.memory_space<vmem>>, vector<2x8x8xf32>
    tpu.vector_store %arg15[%c0_11, %c0_12, %c0_13], %32 {strides = array<i32>} : memref<2x8x32xf32, #tpu.memory_space<vmem>>, vector<2x8x8xf32>,
    %34 = vector.extract_strided_slice %11 {offsets = [0, 0, 8], sizes = [2, 8, 8], strides = [1, 1, 1]} : vector<2x8x32xf32> to vector<2x8x8xf32>
    %35 = arith.truncf %34 : vector<2x8x8xf32> to vector<2x8x8xbf16>
    %36 = vector.extract_strided_slice %12 {offsets = [0, 0, 8], sizes = [2, 8, 8], strides = [1, 1, 1]} : vector<2x8x32xf32> to vector<2x8x8xf32>
    %37 = arith.truncf %36 : vector<2x8x8xf32> to vector<2x8x8xbf16>
    %38 = vector.extract_strided_slice %13 {offsets = [0, 0, 8], sizes = [2, 8, 8], strides = [1, 1, 1]} : vector<2x8x32xf32> to vector<2x8x8xf32>
    %39 = arith.truncf %38 : vector<2x8x8xf32> to vector<2x8x8xbf16>
    "tpu.trace_start"() <{level = 10 : i32, message = "bqd,bkd->bqk"}> : () -> ()
    %cst_14 = arith.constant dense<0.000000e+00> : vector<2x8x8xf32>
    %40 = tpu.matmul %35, %37, %cst_14 {dimension_numbers = #tpu.dot_dimension_numbers<[2], [2], [1], [1], [0, 0, 0, 1, 1, 1], [0], [0]>} : vector<2x8x8xbf16>, vector<2x8x8xbf16>, vector<2x8x8xf32> -> vector<2x8x8xf32>
    "tpu.trace_stop"() : () -> ()
    %cst_15 = arith.constant dense<0xFF800000> : vector<2x8xf32>
    %41 = vector.multi_reduction <maximumf>, %40, %cst_15 [2] : vector<2x8x8xf32> to vector<2x8xf32>
    %42 = vector.shape_cast %41 : vector<2x8xf32> to vector<2x8x1xf32>
    %43 = vector.broadcast %42 : vector<2x8x1xf32> to vector<2x8x8xf32>
    %44 = arith.subf %40, %43 : vector<2x8x8xf32>
    %45 = math.exp %44 : vector<2x8x8xf32>
    %cst_16 = arith.constant dense<0.000000e+00> : vector<2x8xf32>
    %46 = vector.multi_reduction <add>, %45, %cst_16 [2] : vector<2x8x8xf32> to vector<2x8xf32>
    %47 = vector.shape_cast %46 : vector<2x8xf32> to vector<2x8x1xf32>
    %48 = tpu.reciprocal %47 {approx = true} : vector<2x8x1xf32> -> vector<2x8x1xf32>
    %49 = vector.broadcast %48 : vector<2x8x1xf32> to vector<2x8x8xf32>
    %50 = arith.mulf %45, %49 : vector<2x8x8xf32>
    %51 = arith.truncf %50 : vector<2x8x8xf32> to vector<2x8x8xbf16>
    "tpu.trace_start"() <{level = 10 : i32, message = "bqk,bkd->bqd"}> : () -> ()
    %cst_17 = arith.constant dense<0.000000e+00> : vector<2x8x8xf32>
    %52 = tpu.matmul %51, %39, %cst_17 {dimension_numbers = #tpu.dot_dimension_numbers<[2], [1], [1], [2], [0, 0, 0, 1, 1, 2], [0], [0]>} : vector<2x8x8xbf16>, vector<2x8x8xbf16>, vector<2x8x8xf32> -> vector<2x8x8xf32>
    "tpu.trace_stop"() : () -> ()
    %c0_18 = arith.constant 0 : index
    %c0_19 = arith.constant 0 : index
    %c8 = arith.constant 8 : index
    %53 = vector.load %arg15[%c0_18, %c0_19, %c8] : memref<2x8x32xf32, #tpu.memory_space<vmem>>, vector<2x8x8xf32>
    tpu.vector_store %arg15[%c0_18, %c0_19, %c8], %52 {strides = array<i32>} : memref<2x8x32xf32, #tpu.memory_space<vmem>>, vector<2x8x8xf32>,
    %54 = vector.extract_strided_slice %11 {offsets = [0, 0, 16], sizes = [2, 8, 8], strides = [1, 1, 1]} : vector<2x8x32xf32> to vector<2x8x8xf32>
    %55 = arith.truncf %54 : vector<2x8x8xf32> to vector<2x8x8xbf16>
    %56 = vector.extract_strided_slice %12 {offsets = [0, 0, 16], sizes = [2, 8, 8], strides = [1, 1, 1]} : vector<2x8x32xf32> to vector<2x8x8xf32>
    %57 = arith.truncf %56 : vector<2x8x8xf32> to vector<2x8x8xbf16>
    %58 = vector.extract_strided_slice %13 {offsets = [0, 0, 16], sizes = [2, 8, 8], strides = [1, 1, 1]} : vector<2x8x32xf32> to vector<2x8x8xf32>
    %59 = arith.truncf %58 : vector<2x8x8xf32> to vector<2x8x8xbf16>
    "tpu.trace_start"() <{level = 10 : i32, message = "bqd,bkd->bqk"}> : () -> ()
    %cst_20 = arith.constant dense<0.000000e+00> : vector<2x8x8xf32>
    %60 = tpu.matmul %55, %57, %cst_20 {dimension_numbers = #tpu.dot_dimension_numbers<[2], [2], [1], [1], [0, 0, 0, 1, 1, 1], [0], [0]>} : vector<2x8x8xbf16>, vector<2x8x8xbf16>, vector<2x8x8xf32> -> vector<2x8x8xf32>
    "tpu.trace_stop"() : () -> ()
    %cst_21 = arith.constant dense<0xFF800000> : vector<2x8xf32>
    %61 = vector.multi_reduction <maximumf>, %60, %cst_21 [2] : vector<2x8x8xf32> to vector<2x8xf32>
    %62 = vector.shape_cast %61 : vector<2x8xf32> to vector<2x8x1xf32>
    %63 = vector.broadcast %62 : vector<2x8x1xf32> to vector<2x8x8xf32>
    %64 = arith.subf %60, %63 : vector<2x8x8xf32>
    %65 = math.exp %64 : vector<2x8x8xf32>
    %cst_22 = arith.constant dense<0.000000e+00> : vector<2x8xf32>
    %66 = vector.multi_reduction <add>, %65, %cst_22 [2] : vector<2x8x8xf32> to vector<2x8xf32>
    %67 = vector.shape_cast %66 : vector<2x8xf32> to vector<2x8x1xf32>
    %68 = tpu.reciprocal %67 {approx = true} : vector<2x8x1xf32> -> vector<2x8x1xf32>
    %69 = vector.broadcast %68 : vector<2x8x1xf32> to vector<2x8x8xf32>
    %70 = arith.mulf %65, %69 : vector<2x8x8xf32>
    %71 = arith.truncf %70 : vector<2x8x8xf32> to vector<2x8x8xbf16>
    "tpu.trace_start"() <{level = 10 : i32, message = "bqk,bkd->bqd"}> : () -> ()
    %cst_23 = arith.constant dense<0.000000e+00> : vector<2x8x8xf32>
    %72 = tpu.matmul %71, %59, %cst_23 {dimension_numbers = #tpu.dot_dimension_numbers<[2], [1], [1], [2], [0, 0, 0, 1, 1, 2], [0], [0]>} : vector<2x8x8xbf16>, vector<2x8x8xbf16>, vector<2x8x8xf32> -> vector<2x8x8xf32>
    "tpu.trace_stop"() : () -> ()
    %c0_24 = arith.constant 0 : index
    %c0_25 = arith.constant 0 : index
    %c16 = arith.constant 16 : index
    %73 = vector.load %arg15[%c0_24, %c0_25, %c16] : memref<2x8x32xf32, #tpu.memory_space<vmem>>, vector<2x8x8xf32>
    tpu.vector_store %arg15[%c0_24, %c0_25, %c16], %72 {strides = array<i32>} : memref<2x8x32xf32, #tpu.memory_space<vmem>>, vector<2x8x8xf32>,
    %74 = vector.extract_strided_slice %11 {offsets = [0, 0, 24], sizes = [2, 8, 8], strides = [1, 1, 1]} : vector<2x8x32xf32> to vector<2x8x8xf32>
    %75 = arith.truncf %74 : vector<2x8x8xf32> to vector<2x8x8xbf16>
    %76 = vector.extract_strided_slice %12 {offsets = [0, 0, 24], sizes = [2, 8, 8], strides = [1, 1, 1]} : vector<2x8x32xf32> to vector<2x8x8xf32>
    %77 = arith.truncf %76 : vector<2x8x8xf32> to vector<2x8x8xbf16>
    %78 = vector.extract_strided_slice %13 {offsets = [0, 0, 24], sizes = [2, 8, 8], strides = [1, 1, 1]} : vector<2x8x32xf32> to vector<2x8x8xf32>
    %79 = arith.truncf %78 : vector<2x8x8xf32> to vector<2x8x8xbf16>
    "tpu.trace_start"() <{level = 10 : i32, message = "bqd,bkd->bqk"}> : () -> ()
    %cst_26 = arith.constant dense<0.000000e+00> : vector<2x8x8xf32>
    %80 = tpu.matmul %75, %77, %cst_26 {dimension_numbers = #tpu.dot_dimension_numbers<[2], [2], [1], [1], [0, 0, 0, 1, 1, 1], [0], [0]>} : vector<2x8x8xbf16>, vector<2x8x8xbf16>, vector<2x8x8xf32> -> vector<2x8x8xf32>
    "tpu.trace_stop"() : () -> ()
    %cst_27 = arith.constant dense<0xFF800000> : vector<2x8xf32>
    %81 = vector.multi_reduction <maximumf>, %80, %cst_27 [2] : vector<2x8x8xf32> to vector<2x8xf32>
    %82 = vector.shape_cast %81 : vector<2x8xf32> to vector<2x8x1xf32>
    %83 = vector.broadcast %82 : vector<2x8x1xf32> to vector<2x8x8xf32>
    %84 = arith.subf %80, %83 : vector<2x8x8xf32>
    %85 = math.exp %84 : vector<2x8x8xf32>
    %cst_28 = arith.constant dense<0.000000e+00> : vector<2x8xf32>
    %86 = vector.multi_reduction <add>, %85, %cst_28 [2] : vector<2x8x8xf32> to vector<2x8xf32>
    %87 = vector.shape_cast %86 : vector<2x8xf32> to vector<2x8x1xf32>
    %88 = tpu.reciprocal %87 {approx = true} : vector<2x8x1xf32> -> vector<2x8x1xf32>
    %89 = vector.broadcast %88 : vector<2x8x1xf32> to vector<2x8x8xf32>
    %90 = arith.mulf %85, %89 : vector<2x8x8xf32>
    %91 = arith.truncf %90 : vector<2x8x8xf32> to vector<2x8x8xbf16>
    "tpu.trace_start"() <{level = 10 : i32, message = "bqk,bkd->bqd"}> : () -> ()
    %cst_29 = arith.constant dense<0.000000e+00> : vector<2x8x8xf32>
    %92 = tpu.matmul %91, %79, %cst_29 {dimension_numbers = #tpu.dot_dimension_numbers<[2], [1], [1], [2], [0, 0, 0, 1, 1, 2], [0], [0]>} : vector<2x8x8xbf16>, vector<2x8x8xbf16>, vector<2x8x8xf32> -> vector<2x8x8xf32>
    "tpu.trace_stop"() : () -> ()
    %c0_30 = arith.constant 0 : index
    %c0_31 = arith.constant 0 : index
    %c24 = arith.constant 24 : index
    %93 = vector.load %arg15[%c0_30, %c0_31, %c24] : memref<2x8x32xf32, #tpu.memory_space<vmem>>, vector<2x8x8xf32>
    tpu.vector_store %arg15[%c0_30, %c0_31, %c24], %92 {strides = array<i32>} : memref<2x8x32xf32, #tpu.memory_space<vmem>>, vector<2x8x8xf32>,
    %c0_32 = arith.constant 0 : index
    %c0_33 = arith.constant 0 : index
    %c0_34 = arith.constant 0 : index
    %94 = vector.load %arg15[%c0_32, %c0_33, %c0_34] : memref<2x8x32xf32, #tpu.memory_space<vmem>>, vector<2x8x32xf32>
    %95 = vector.shape_cast %94 : vector<2x8x32xf32> to vector<16x32xf32>
    %96 = arith.truncf %95 : vector<16x32xf32> to vector<16x32xbf16>
    %c0_35 = arith.constant 0 : index
    %c0_36 = arith.constant 0 : index
    %97 = vector.load %arg4[%c0_35, %c0_36] : memref<32x32xbf16, #tpu.memory_space<vmem>>, vector<32x32xbf16>
    %cst_37 = arith.constant dense<0.000000e+00> : vector<16x32xf32>
    %98 = tpu.matmul %96, %97, %cst_37 {dimension_numbers = #tpu.dot_dimension_numbers<[1], [0], [0], [1], [0, 0, 1, 1], [], []>} : vector<16x32xbf16>, vector<32x32xbf16>, vector<16x32xf32> -> vector<16x32xf32>
    %c0_38 = arith.constant 0 : index
    %c0_39 = arith.constant 0 : index
    %99 = vector.load %arg5[%c0_38, %c0_39] : memref<1x32xf32, #tpu.memory_space<vmem>>, vector<1x32xf32>
    %100 = vector.broadcast %99 : vector<1x32xf32> to vector<16x32xf32>
    %101 = arith.addf %98, %100 : vector<16x32xf32>
    %102 = arith.addf %1, %101 : vector<16x32xf32>
    %c0_40 = arith.constant 0 : index
    %c0_41 = arith.constant 0 : index
    %103 = vector.load %arg6[%c0_40, %c0_41] : memref<1x32xf32, #tpu.memory_space<vmem>>, vector<1x32xf32>
    %c0_42 = arith.constant 0 : index
    %c0_43 = arith.constant 0 : index
    %104 = vector.load %arg7[%c0_42, %c0_43] : memref<1x32xf32, #tpu.memory_space<vmem>>, vector<1x32xf32>
    %cst_44 = arith.constant dense<0.000000e+00> : vector<16xf32>
    %105 = vector.multi_reduction <add>, %102, %cst_44 [1] : vector<16x32xf32> to vector<16xf32>
    %106 = vector.shape_cast %105 : vector<16xf32> to vector<16x1xf32>
    %cst_45 = arith.constant 3.200000e+01 : f32
    %107 = vector.broadcast %cst_45 : f32 to vector<16x1xf32>
    %108 = arith.divf %106, %107 : vector<16x1xf32>
    %109 = vector.broadcast %108 : vector<16x1xf32> to vector<16x32xf32>
    %110 = arith.subf %102, %109 : vector<16x32xf32>
    %111 = arith.mulf %110, %110 : vector<16x32xf32>
    %cst_46 = arith.constant dense<0.000000e+00> : vector<16xf32>
    %112 = vector.multi_reduction <add>, %111, %cst_46 [1] : vector<16x32xf32> to vector<16xf32>
    %113 = vector.shape_cast %112 : vector<16xf32> to vector<16x1xf32>
    %cst_47 = arith.constant 3.200000e+01 : f32
    %114 = vector.broadcast %cst_47 : f32 to vector<16x1xf32>
    %115 = arith.divf %113, %114 : vector<16x1xf32>
    %116 = vector.broadcast %108 : vector<16x1xf32> to vector<16x32xf32>
    %117 = arith.subf %102, %116 : vector<16x32xf32>
    %cst_48 = arith.constant 9.99999974E-6 : f32
    %118 = vector.broadcast %cst_48 : f32 to vector<16x1xf32>
    %119 = arith.addf %115, %118 : vector<16x1xf32>
    %120 = math.rsqrt %119 : vector<16x1xf32>
    %121 = vector.broadcast %120 : vector<16x1xf32> to vector<16x32xf32>
    %122 = arith.mulf %117, %121 : vector<16x32xf32>
    %123 = vector.broadcast %103 : vector<1x32xf32> to vector<16x32xf32>
    %124 = arith.mulf %122, %123 : vector<16x32xf32>
    %125 = vector.broadcast %104 : vector<1x32xf32> to vector<16x32xf32>
    %126 = arith.addf %124, %125 : vector<16x32xf32>
    %127 = arith.truncf %126 : vector<16x32xf32> to vector<16x32xbf16>
    %c0_49 = arith.constant 0 : index
    %c0_50 = arith.constant 0 : index
    %128 = vector.load %arg8[%c0_49, %c0_50] : memref<32x64xbf16, #tpu.memory_space<vmem>>, vector<32x64xbf16>
    %cst_51 = arith.constant dense<0.000000e+00> : vector<16x64xf32>
    %129 = tpu.matmul %127, %128, %cst_51 {dimension_numbers = #tpu.dot_dimension_numbers<[1], [0], [0], [1], [0, 0, 1, 1], [], []>} : vector<16x32xbf16>, vector<32x64xbf16>, vector<16x64xf32> -> vector<16x64xf32>
    %c0_52 = arith.constant 0 : index
    %c0_53 = arith.constant 0 : index
    %130 = vector.load %arg9[%c0_52, %c0_53] : memref<1x64xf32, #tpu.memory_space<vmem>>, vector<1x64xf32>
    %131 = vector.broadcast %130 : vector<1x64xf32> to vector<16x64xf32>
    %132 = arith.addf %129, %131 : vector<16x64xf32>
    %cst_54 = arith.constant 0.000000e+00 : f32
    %133 = vector.broadcast %cst_54 : f32 to vector<16x64xf32>
    %134 = arith.maximumf %132, %133 : vector<16x64xf32>
    %135 = arith.truncf %134 : vector<16x64xf32> to vector<16x64xbf16>
    %c0_55 = arith.constant 0 : index
    %c0_56 = arith.constant 0 : index
    %136 = vector.load %arg10[%c0_55, %c0_56] : memref<64x32xbf16, #tpu.memory_space<vmem>>, vector<64x32xbf16>
    %cst_57 = arith.constant dense<0.000000e+00> : vector<16x32xf32>
    %137 = tpu.matmul %135, %136, %cst_57 {dimension_numbers = #tpu.dot_dimension_numbers<[1], [0], [0], [1], [0, 0, 1, 1], [], []>} : vector<16x64xbf16>, vector<64x32xbf16>, vector<16x32xf32> -> vector<16x32xf32>
    %c0_58 = arith.constant 0 : index
    %c0_59 = arith.constant 0 : index
    %138 = vector.load %arg11[%c0_58, %c0_59] : memref<1x32xf32, #tpu.memory_space<vmem>>, vector<1x32xf32>
    %139 = vector.broadcast %138 : vector<1x32xf32> to vector<16x32xf32>
    %140 = arith.addf %137, %139 : vector<16x32xf32>
    %141 = arith.addf %126, %140 : vector<16x32xf32>
    %c0_60 = arith.constant 0 : index
    %c0_61 = arith.constant 0 : index
    %142 = vector.load %arg12[%c0_60, %c0_61] : memref<1x32xf32, #tpu.memory_space<vmem>>, vector<1x32xf32>
    %c0_62 = arith.constant 0 : index
    %c0_63 = arith.constant 0 : index
    %143 = vector.load %arg13[%c0_62, %c0_63] : memref<1x32xf32, #tpu.memory_space<vmem>>, vector<1x32xf32>
    %cst_64 = arith.constant dense<0.000000e+00> : vector<16xf32>
    %144 = vector.multi_reduction <add>, %141, %cst_64 [1] : vector<16x32xf32> to vector<16xf32>
    %145 = vector.shape_cast %144 : vector<16xf32> to vector<16x1xf32>
    %cst_65 = arith.constant 3.200000e+01 : f32
    %146 = vector.broadcast %cst_65 : f32 to vector<16x1xf32>
    %147 = arith.divf %145, %146 : vector<16x1xf32>
    %148 = vector.broadcast %147 : vector<16x1xf32> to vector<16x32xf32>
    %149 = arith.subf %141, %148 : vector<16x32xf32>
    %150 = arith.mulf %149, %149 : vector<16x32xf32>
    %cst_66 = arith.constant dense<0.000000e+00> : vector<16xf32>
    %151 = vector.multi_reduction <add>, %150, %cst_66 [1] : vector<16x32xf32> to vector<16xf32>
    %152 = vector.shape_cast %151 : vector<16xf32> to vector<16x1xf32>
    %cst_67 = arith.constant 3.200000e+01 : f32
    %153 = vector.broadcast %cst_67 : f32 to vector<16x1xf32>
    %154 = arith.divf %152, %153 : vector<16x1xf32>
    %155 = vector.broadcast %147 : vector<16x1xf32> to vector<16x32xf32>
    %156 = arith.subf %141, %155 : vector<16x32xf32>
    %cst_68 = arith.constant 9.99999974E-6 : f32
    %157 = vector.broadcast %cst_68 : f32 to vector<16x1xf32>
    %158 = arith.addf %154, %157 : vector<16x1xf32>
    %159 = math.rsqrt %158 : vector<16x1xf32>
    %160 = vector.broadcast %159 : vector<16x1xf32> to vector<16x32xf32>
    %161 = arith.mulf %156, %160 : vector<16x32xf32>
    %162 = vector.broadcast %142 : vector<1x32xf32> to vector<16x32xf32>
    %163 = arith.mulf %161, %162 : vector<16x32xf32>
    %164 = vector.broadcast %143 : vector<1x32xf32> to vector<16x32xf32>
    %165 = arith.addf %163, %164 : vector<16x32xf32>
    %166 = vector.shape_cast %165 : vector<16x32xf32> to vector<2x8x32xf32>
    %167 = arith.truncf %166 : vector<2x8x32xf32> to vector<2x8x32xbf16>
    %c0_69 = arith.constant 0 : index
    %c0_70 = arith.constant 0 : index
    %c0_71 = arith.constant 0 : index
    %168 = vector.load %arg14[%c0_69, %c0_70, %c0_71] : memref<2x8x32xbf16, #tpu.memory_space<vmem>>, vector<2x8x32xbf16>
    tpu.vector_store %arg14[%c0_69, %c0_70, %c0_71], %167 {strides = array<i32>} : memref<2x8x32xbf16, #tpu.memory_space<vmem>>, vector<2x8x32xbf16>,
    return
  }
  func.func @transform_0(%arg0: i32) -> (i32, i32, i32) {
    %c0_i32 = arith.constant 0 : i32
    %c0_i32_0 = arith.constant 0 : i32
    %c0_i32_1 = arith.constant 0 : i32
    return %arg0, %c0_i32, %c0_i32_0 : i32, i32, i32
  }
  func.func @transform_1(%arg0: i32) -> (i32, i32) {
    %c0_i32 = arith.constant 0 : i32
    %c0_i32_0 = arith.constant 0 : i32
    %c0_i32_1 = arith.constant 0 : i32
    return %c0_i32, %c0_i32_0 : i32, i32
  }
  func.func @transform_2(%arg0: i32) -> (i32, i32) {
    %c0_i32 = arith.constant 0 : i32
    %c0_i32_0 = arith.constant 0 : i32
    %c0_i32_1 = arith.constant 0 : i32
    return %c0_i32, %c0_i32_0 : i32, i32
  }
  func.func @transform_3(%arg0: i32) -> (i32, i32) {
    %c0_i32 = arith.constant 0 : i32
    %c0_i32_0 = arith.constant 0 : i32
    %c0_i32_1 = arith.constant 0 : i32
    return %c0_i32, %c0_i32_0 : i32, i32
  }
  func.func @transform_4(%arg0: i32) -> (i32, i32) {
    %c0_i32 = arith.constant 0 : i32
    %c0_i32_0 = arith.constant 0 : i32
    %c0_i32_1 = arith.constant 0 : i32
    return %c0_i32, %c0_i32_0 : i32, i32
  }
  func.func @transform_5(%arg0: i32) -> (i32, i32) {
    %c0_i32 = arith.constant 0 : i32
    %c0_i32_0 = arith.constant 0 : i32
    %c0_i32_1 = arith.constant 0 : i32
    return %c0_i32, %c0_i32_0 : i32, i32
  }
  func.func @transform_6(%arg0: i32) -> (i32, i32) {
    %c0_i32 = arith.constant 0 : i32
    %c0_i32_0 = arith.constant 0 : i32
    %c0_i32_1 = arith.constant 0 : i32
    return %c0_i32, %c0_i32_0 : i32, i32
  }
  func.func @transform_7(%arg0: i32) -> (i32, i32) {
    %c0_i32 = arith.constant 0 : i32
    %c0_i32_0 = arith.constant 0 : i32
    %c0_i32_1 = arith.constant 0 : i32
    return %c0_i32, %c0_i32_0 : i32, i32
  }
  func.func @transform_8(%arg0: i32) -> (i32, i32) {
    %c0_i32 = arith.constant 0 : i32
    %c0_i32_0 = arith.constant 0 : i32
    %c0_i32_1 = arith.constant 0 : i32
    return %c0_i32, %c0_i32_0 : i32, i32
  }
  func.func @transform_9(%arg0: i32) -> (i32, i32) {
    %c0_i32 = arith.constant 0 : i32
    %c0_i32_0 = arith.constant 0 : i32
    %c0_i32_1 = arith.constant 0 : i32
    return %c0_i32, %c0_i32_0 : i32, i32
  }
  func.func @transform_10(%arg0: i32) -> (i32, i32) {
    %c0_i32 = arith.constant 0 : i32
    %c0_i32_0 = arith.constant 0 : i32
    %c0_i32_1 = arith.constant 0 : i32
    return %c0_i32, %c0_i32_0 : i32, i32
  }
  func.func @transform_11(%arg0: i32) -> (i32, i32) {
    %c0_i32 = arith.constant 0 : i32
    %c0_i32_0 = arith.constant 0 : i32
    %c0_i32_1 = arith.constant 0 : i32
    return %c0_i32, %c0_i32_0 : i32, i32
  }
  func.func @transform_12(%arg0: i32) -> (i32, i32) {
    %c0_i32 = arith.constant 0 : i32
    %c0_i32_0 = arith.constant 0 : i32
    %c0_i32_1 = arith.constant 0 : i32
    return %c0_i32, %c0_i32_0 : i32, i32
  }
  func.func @transform_13(%arg0: i32) -> (i32, i32, i32) {
    %c0_i32 = arith.constant 0 : i32
    %c0_i32_0 = arith.constant 0 : i32
    %c0_i32_1 = arith.constant 0 : i32
    return %arg0, %c0_i32, %c0_i32_0 : i32, i32, i32
  }
}

</mosaic_0001>

<llo_original>
// kernel: tpu_custom_call.1
$region0: #{tpu_custom_call.1}
  #allocation0 [shape = 'u32[]', space=smem, size = 0x4, offset = 0x4, fixed_abs, tag = 'smem constant byte address 0x4 - core index']
  #allocation1 [shape = 'u32[144,128]{1,0:T(1,128)}', space=vmem, size = 0x12000, scoped, tag = 'internal scratch']
  #allocation2 [shape = 'f32[2,8,32]{2,1,0:T(8,128)}', space=vmem, size = 0x2000, scoped, tag = 'scratch operand']
  %s0 = inlined_call_operand.hbm [shape: f32[2,8,32], index: 0, kind: input, shape index: {}]
  %s1 = inlined_call_operand.hbm [shape: bf16[32,96], index: 1, kind: input, shape index: {}]
  %s2 = inlined_call_operand.hbm [shape: f32[1,96], index: 2, kind: input, shape index: {}]
  %s3 = inlined_call_operand.hbm [shape: bf16[32,32], index: 3, kind: input, shape index: {}]
  %s4 = inlined_call_operand.hbm [shape: f32[1,32], index: 4, kind: input, shape index: {}]
  %s5 = inlined_call_operand.hbm [shape: f32[1,32], index: 5, kind: input, shape index: {}]
  %s6 = inlined_call_operand.hbm [shape: f32[1,32], index: 6, kind: input, shape index: {}]
  %s7 = inlined_call_operand.hbm [shape: bf16[32,64], index: 7, kind: input, shape index: {}]
  %s8 = inlined_call_operand.hbm [shape: f32[1,64], index: 8, kind: input, shape index: {}]
  %s9 = inlined_call_operand.hbm [shape: bf16[64,32], index: 9, kind: input, shape index: {}]
  %s10 = inlined_call_operand.hbm [shape: f32[1,32], index: 10, kind: input, shape index: {}]
  %s11 = inlined_call_operand.hbm [shape: f32[1,32], index: 11, kind: input, shape index: {}]
  %s12 = inlined_call_operand.hbm [shape: f32[1,32], index: 12, kind: input, shape index: {}]
  %s13 = inlined_call_operand.hbm [shape: bf16[2,8,32], index: 13, kind: output, shape index: {}]
  %s14 = sld [smem:[#allocation0]]
  $region114: #{tpu_custom_call.1} parent=0
    _
  %s16 = ssub.s32 1, %s14
  %s17 = scalar_select 0, %s16, %s14
  $region1: #{tpu_custom_call.1} parent=0
    #allocation3 [shape = 'u8[8192]{0}', space=vmem, size = 0x2000, scoped, tag = 'input window, operand 0, single buffered']
    #allocation4 [shape = 's32[1]{0}', space=sflag, size = 0x4, scoped, tag = 'scoped memory for tpu_custom_call.1']
    #allocation5 [shape = 's32[1]{0}', space=sflag, size = 0x4, scoped, tag = 'scoped memory for tpu_custom_call.1']
    #allocation6 [shape = 'u8[8192]{0}', space=vmem, size = 0x2000, scoped, tag = 'input window, operand 1, single buffered']
    #allocation7 [shape = 's32[1]{0}', space=sflag, size = 0x4, scoped, tag = 'scoped memory for tpu_custom_call.1']
    #allocation8 [shape = 'u8[512]{0}', space=vmem, size = 0x400, scoped, tag = 'input window, operand 2, single buffered']
    #allocation9 [shape = 'u8[8192]{0}', space=vmem, size = 0x2000, scoped, tag = 'input window, operand 3, single buffered']
    #allocation10 [shape = 's32[1]{0}', space=sflag, size = 0x4, scoped, tag = 'scoped memory for tpu_custom_call.1']
    #allocation11 [shape = 'u8[512]{0}', space=vmem, size = 0x400, scoped, tag = 'input window, operand 4, single buffered']
    #allocation12 [shape = 'u8[512]{0}', space=vmem, size = 0x400, scoped, tag = 'input window, operand 5, single buffered']
    #allocation13 [shape = 's32[1]{0}', space=sflag, size = 0x4, scoped, tag = 'scoped memory for tpu_custom_call.1']
    #allocation14 [shape = 'u8[512]{0}', space=vmem, size = 0x400, scoped, tag = 'input window, operand 6, single buffered']
    #allocation15 [shape = 'u8[8192]{0}', space=vmem, size = 0x2000, scoped, tag = 'input window, operand 7, single buffered']
    #allocation16 [shape = 's32[1]{0}', space=sflag, size = 0x4, scoped, tag = 'scoped memory for tpu_custom_call.1']
    #allocation17 [shape = 'u8[512]{0}', space=vmem, size = 0x400, scoped, tag = 'input window, operand 8, single buffered']
    #allocation18 [shape = 'u8[16384]{0}', space=vmem, size = 0x4000, scoped, tag = 'input window, operand 9, single buffered']
    #allocation19 [shape = 's32[1]{0}', space=sflag, size = 0x4, scoped, tag = 'scoped memory for tpu_custom_call.1']
    #allocation20 [shape = 'u8[512]{0}', space=vmem, size = 0x400, scoped, tag = 'input window, operand 10, single buffered']
    #allocation21 [shape = 'u8[512]{0}', space=vmem, size = 0x400, scoped, tag = 'input window, operand 11, single buffered']
    #allocation22 [shape = 's32[1]{0}', space=sflag, size = 0x4, scoped, tag = 'scoped memory for tpu_custom_call.1']
    #allocation23 [shape = 'u8[512]{0}', space=vmem, size = 0x400, scoped, tag = 'input window, operand 12, single buffered']
    #allocation24 [shape = 'u8[4096]{0}', space=vmem, size = 0x1000, scoped, tag = 'output window, operand 0, single buffered']
    %18 = vsyncpa [#allocation4], 0
    %19 = vsyncpa [#allocation7], 0
    %20 = vsyncpa [#allocation10], 0
    %21 = vsyncpa [#allocation13], 0
    %22 = vsyncpa [#allocation16], 0
    %23 = vsyncpa [#allocation19], 0
    %24 = vsyncpa [#allocation22], 0
    %25 = vsyncpa [#allocation5], 0
    // Predicated region
    $region2: #{tpu_custom_call.1} parent=1 // pred_check
      _
    $region3: #{tpu_custom_call.1} parent=1 // pred_check_branch
      %27 = sbr.rel (0) target = $region5
    $region4: #{tpu_custom_call.1} parent=1 // pred_region
      %s29 = ssub.s32 256, 256
      %30 = vsyncadd [#allocation4], %s29
      %s31 = sshll.u32 [#allocation3], 4
      %s32 = int_to_ptr.vmem [resolvable:$true] %s31
      %37 = dma.hbm_to_vmem [thread:$0]  %s0, 256, %s32, [#allocation4], 128, 128, 8
    $region5: #{tpu_custom_call.1} parent=1 // pred_fallthru
      _
    // Predicated region
    $region6: #{tpu_custom_call.1} parent=1 // pred_check
      _
    $region7: #{tpu_custom_call.1} parent=1 // pred_check_branch
      %39 = sbr.rel (0) target = $region9
    $region8: #{tpu_custom_call.1} parent=1 // pred_region
      %s41 = ssub.s32 256, 256
      %42 = vsyncadd [#allocation7], %s41
      %s43 = sshll.u32 [#allocation6], 4
      %s44 = int_to_ptr.vmem [resolvable:$true] %s43
      %49 = dma.hbm_to_vmem [thread:$0]  %s1, 256, %s44, [#allocation7], 64, 64, 4
    $region9: #{tpu_custom_call.1} parent=1 // pred_fallthru
      _
    // Predicated region
    $region10: #{tpu_custom_call.1} parent=1 // pred_check
      _
    $region11: #{tpu_custom_call.1} parent=1 // pred_check_branch
      %51 = sbr.rel (0) target = $region13
    $region12: #{tpu_custom_call.1} parent=1 // pred_region
      %s53 = ssub.s32 16, 16
      %54 = vsyncadd [#allocation7], %s53
      %s56 = sshll.u32 [#allocation8], 4
      %s57 = int_to_ptr.vmem [resolvable:$true] %s56
      %59 = dma.hbm_to_vmem [thread:$0]  %s2, 16, %s57, [#allocation7]
    $region13: #{tpu_custom_call.1} parent=1 // pred_fallthru
      _
    // Predicated region
    $region14: #{tpu_custom_call.1} parent=1 // pred_check
      _
    $region15: #{tpu_custom_call.1} parent=1 // pred_check_branch
      %61 = sbr.rel (0) target = $region17
    $region16: #{tpu_custom_call.1} parent=1 // pred_region
      %s63 = ssub.s32 256, 256
      %64 = vsyncadd [#allocation10], %s63
      %s65 = sshll.u32 [#allocation9], 4
      %s66 = int_to_ptr.vmem [resolvable:$true] %s65
      %71 = dma.hbm_to_vmem [thread:$0]  %s3, 256, %s66, [#allocation10], 64, 64, 4
    $region17: #{tpu_custom_call.1} parent=1 // pred_fallthru
      _
    // Predicated region
    $region18: #{tpu_custom_call.1} parent=1 // pred_check
      _
    $region19: #{tpu_custom_call.1} parent=1 // pred_check_branch
      %73 = sbr.rel (0) target = $region21
    $region20: #{tpu_custom_call.1} parent=1 // pred_region
      %s75 = ssub.s32 16, 16
      %76 = vsyncadd [#allocation10], %s75
      %s78 = sshll.u32 [#allocation11], 4
      %s79 = int_to_ptr.vmem [resolvable:$true] %s78
      %81 = dma.hbm_to_vmem [thread:$0]  %s4, 16, %s79, [#allocation10]
    $region21: #{tpu_custom_call.1} parent=1 // pred_fallthru
      _
    // Predicated region
    $region22: #{tpu_custom_call.1} parent=1 // pred_check
      _
    $region23: #{tpu_custom_call.1} parent=1 // pred_check_branch
      %83 = sbr.rel (0) target = $region25
    $region24: #{tpu_custom_call.1} parent=1 // pred_region
      %s85 = ssub.s32 16, 16
      %86 = vsyncadd [#allocation13], %s85
      %s88 = sshll.u32 [#allocation12], 4
      %s89 = int_to_ptr.vmem [resolvable:$true] %s88
      %91 = dma.hbm_to_vmem [thread:$0]  %s5, 16, %s89, [#allocation13]
    $region25: #{tpu_custom_call.1} parent=1 // pred_fallthru
      _
    // Predicated region
    $region26: #{tpu_custom_call.1} parent=1 // pred_check
      _
    $region27: #{tpu_custom_call.1} parent=1 // pred_check_branch
      %93 = sbr.rel (0) target = $region29
    $region28: #{tpu_custom_call.1} parent=1 // pred_region
      %s95 = ssub.s32 16, 16
      %96 = vsyncadd [#allocation13], %s95
      %s98 = sshll.u32 [#allocation14], 4
      %s99 = int_to_ptr.vmem [resolvable:$true] %s98
      %101 = dma.hbm_to_vmem [thread:$0]  %s6, 16, %s99, [#allocation13]
    $region29: #{tpu_custom_call.1} parent=1 // pred_fallthru
      _
    // Predicated region
    $region30: #{tpu_custom_call.1} parent=1 // pred_check
      _
    $region31: #{tpu_custom_call.1} parent=1 // pred_check_branch
      %103 = sbr.rel (0) target = $region33
    $region32: #{tpu_custom_call.1} parent=1 // pred_region
      %s105 = ssub.s32 256, 256
      %106 = vsyncadd [#allocation16], %s105
      %s107 = sshll.u32 [#allocation15], 4
      %s108 = int_to_ptr.vmem [resolvable:$true] %s107
      %113 = dma.hbm_to_vmem [thread:$0]  %s7, 256, %s108, [#allocation16], 64, 64, 4
    $region33: #{tpu_custom_call.1} parent=1 // pred_fallthru
      _
    // Predicated region
    $region34: #{tpu_custom_call.1} parent=1 // pred_check
      _
    $region35: #{tpu_custom_call.1} parent=1 // pred_check_branch
      %115 = sbr.rel (0) target = $region37
    $region36: #{tpu_custom_call.1} parent=1 // pred_region
      %s117 = ssub.s32 16, 16
      %118 = vsyncadd [#allocation16], %s117
      %s120 = sshll.u32 [#allocation17], 4
      %s121 = int_to_ptr.vmem [resolvable:$true] %s120
      %123 = dma.hbm_to_vmem [thread:$0]  %s8, 16, %s121, [#allocation16]
    $region37: #{tpu_custom_call.1} parent=1 // pred_fallthru
      _
    // Predicated region
    $region38: #{tpu_custom_call.1} parent=1 // pred_check
      _
    $region39: #{tpu_custom_call.1} parent=1 // pred_check_branch
      %125 = sbr.rel (0) target = $region41
    $region40: #{tpu_custom_call.1} parent=1 // pred_region
      %s127 = ssub.s32 512, 512
      %128 = vsyncadd [#allocation19], %s127
      %s129 = sshll.u32 [#allocation18], 4
      %s130 = int_to_ptr.vmem [resolvable:$true] %s129
      %135 = dma.hbm_to_vmem [thread:$0]  %s9, 512, %s130, [#allocation19], 64, 64, 4
    $region41: #{tpu_custom_call.1} parent=1 // pred_fallthru
      _
    // Predicated region
    $region42: #{tpu_custom_call.1} parent=1 // pred_check
      _
    $region43: #{tpu_custom_call.1} parent=1 // pred_check_branch
      %137 = sbr.rel (0) target = $region45
    $region44: #{tpu_custom_call.1} parent=1 // pred_region
      %s139 = ssub.s32 16, 16
      %140 = vsyncadd [#allocation19], %s139
      %s142 = sshll.u32 [#allocation20], 4
      %s143 = int_to_ptr.vmem [resolvable:$true] %s142
      %145 = dma.hbm_to_vmem [thread:$0]  %s10, 16, %s143, [#allocation19]
    $region45: #{tpu_custom_call.1} parent=1 // pred_fallthru
      _
    // Predicated region
    $region46: #{tpu_custom_call.1} parent=1 // pred_check
      _
    $region47: #{tpu_custom_call.1} parent=1 // pred_check_branch
      %147 = sbr.rel (0) target = $region49
    $region48: #{tpu_custom_call.1} parent=1 // pred_region
      %s149 = ssub.s32 16, 16
      %150 = vsyncadd [#allocation22], %s149
      %s152 = sshll.u32 [#allocation21], 4
      %s153 = int_to_ptr.vmem [resolvable:$true] %s152
      %155 = dma.hbm_to_vmem [thread:$0]  %s11, 16, %s153, [#allocation22]
    $region49: #{tpu_custom_call.1} parent=1 // pred_fallthru
      _
    // Predicated region
    $region50: #{tpu_custom_call.1} parent=1 // pred_check
      _
    $region51: #{tpu_custom_call.1} parent=1 // pred_check_branch
      %157 = sbr.rel (0) target = $region53
    $region52: #{tpu_custom_call.1} parent=1 // pred_region
      %s159 = ssub.s32 16, 16
      %160 = vsyncadd [#allocation22], %s159
      %s162 = sshll.u32 [#allocation23], 4
      %s163 = int_to_ptr.vmem [resolvable:$true] %s162
      %165 = dma.hbm_to_vmem [thread:$0]  %s12, 16, %s163, [#allocation22]
    $region53: #{tpu_custom_call.1} parent=1 // pred_fallthru
      _
    // Predicated region
    $region54: #{tpu_custom_call.1} parent=1 // pred_check
      _
    $region55: #{tpu_custom_call.1} parent=1 // pred_check_branch
      %167 = sbr.rel (0) target = $region57
    $region56: #{tpu_custom_call.1} parent=1 // pred_region
      %168 = dma.done [#allocation4], 256
    $region57: #{tpu_custom_call.1} parent=1 // pred_fallthru
      _
    // Predicated region
    $region58: #{tpu_custom_call.1} parent=1 // pred_check
      _
    $region59: #{tpu_custom_call.1} parent=1 // pred_check_branch
      %170 = sbr.rel (0) target = $region61
    $region60: #{tpu_custom_call.1} parent=1 // pred_region
      %171 = dma.done [#allocation7], 256
    $region61: #{tpu_custom_call.1} parent=1 // pred_fallthru
      _
    // Predicated region
    $region62: #{tpu_custom_call.1} parent=1 // pred_check
      _
    $region63: #{tpu_custom_call.1} parent=1 // pred_check_branch
      %173 = sbr.rel (0) target = $region65
    $region64: #{tpu_custom_call.1} parent=1 // pred_region
      %174 = dma.done [#allocation7], 16
    $region65: #{tpu_custom_call.1} parent=1 // pred_fallthru
      _
    // Predicated region
    $region66: #{tpu_custom_call.1} parent=1 // pred_check
      _
    $region67: #{tpu_custom_call.1} parent=1 // pred_check_branch
      %176 = sbr.rel (0) target = $region69
    $region68: #{tpu_custom_call.1} parent=1 // pred_region
      %177 = dma.done [#allocation10], 256
    $region69: #{tpu_custom_call.1} parent=1 // pred_fallthru
      _
    // Predicated region
    $region70: #{tpu_custom_call.1} parent=1 // pred_check
      _
    $region71: #{tpu_custom_call.1} parent=1 // pred_check_branch
      %179 = sbr.rel (0) target = $region73
    $region72: #{tpu_custom_call.1} parent=1 // pred_region
      %180 = dma.done [#allocation10], 16
    $region73: #{tpu_custom_call.1} parent=1 // pred_fallthru
      _
    // Predicated region
    $region74: #{tpu_custom_call.1} parent=1 // pred_check
      _
    $region75: #{tpu_custom_call.1} parent=1 // pred_check_branch
      %182 = sbr.rel (0) target = $region77
    $region76: #{tpu_custom_call.1} parent=1 // pred_region
      %183 = dma.done [#allocation13], 16
    $region77: #{tpu_custom_call.1} parent=1 // pred_fallthru
      _
    // Predicated region
    $region78: #{tpu_custom_call.1} parent=1 // pred_check
      _
    $region79: #{tpu_custom_call.1} parent=1 // pred_check_branch
      %185 = sbr.rel (0) target = $region81
    $region80: #{tpu_custom_call.1} parent=1 // pred_region
      %186 = dma.done [#allocation13], 16
    $region81: #{tpu_custom_call.1} parent=1 // pred_fallthru
      _
    // Predicated region
    $region82: #{tpu_custom_call.1} parent=1 // pred_check
      _
    $region83: #{tpu_custom_call.1} parent=1 // pred_check_branch
      %188 = sbr.rel (0) target = $region85
    $region84: #{tpu_custom_call.1} parent=1 // pred_region
      %189 = dma.done [#allocation16], 256
    $region85: #{tpu_custom_call.1} parent=1 // pred_fallthru
      _
    // Predicated region
    $region86: #{tpu_custom_call.1} parent=1 // pred_check
      _
    $region87: #{tpu_custom_call.1} parent=1 // pred_check_branch
      %191 = sbr.rel (0) target = $region89
    $region88: #{tpu_custom_call.1} parent=1 // pred_region
      %192 = dma.done [#allocation16], 16
    $region89: #{tpu_custom_call.1} parent=1 // pred_fallthru
      _
    // Predicated region
    $region90: #{tpu_custom_call.1} parent=1 // pred_check
      _
    $region91: #{tpu_custom_call.1} parent=1 // pred_check_branch
      %194 = sbr.rel (0) target = $region93
    $region92: #{tpu_custom_call.1} parent=1 // pred_region
      %195 = dma.done [#allocation19], 512
    $region93: #{tpu_custom_call.1} parent=1 // pred_fallthru
      _
    // Predicated region
    $region94: #{tpu_custom_call.1} parent=1 // pred_check
      _
    $region95: #{tpu_custom_call.1} parent=1 // pred_check_branch
      %197 = sbr.rel (0) target = $region97
    $region96: #{tpu_custom_call.1} parent=1 // pred_region
      %198 = dma.done [#allocation19], 16
    $region97: #{tpu_custom_call.1} parent=1 // pred_fallthru
      _
    // Predicated region
    $region98: #{tpu_custom_call.1} parent=1 // pred_check
      _
    $region99: #{tpu_custom_call.1} parent=1 // pred_check_branch
      %200 = sbr.rel (0) target = $region101
    $region100: #{tpu_custom_call.1} parent=1 // pred_region
      %201 = dma.done [#allocation22], 16
    $region101: #{tpu_custom_call.1} parent=1 // pred_fallthru
      _
    // Predicated region
    $region102: #{tpu_custom_call.1} parent=1 // pred_check
      _
    $region103: #{tpu_custom_call.1} parent=1 // pred_check_branch
      %203 = sbr.rel (0) target = $region105
    $region104: #{tpu_custom_call.1} parent=1 // pred_region
      %204 = dma.done [#allocation22], 16
    $region105: #{tpu_custom_call.1} parent=1 // pred_fallthru
      _
    %v206 = vld [vmem:[#allocation3] sm:$0xff]
    %v207 = vld [vmem:[#allocation3 + $0x8] sm:$0xff]
    %v208 = vpack.c.bf16 %v207, %v206
    %v209 = vld [vmem:[#allocation6] sm:$0xf]
    %v210 = vld [vmem:[#allocation6 + $0x4] sm:$0xf]
    %v211 = vld [vmem:[#allocation6 + $0x8] sm:$0xf]
    %v212 = vld [vmem:[#allocation6 + $0xc] sm:$0xf]
    %v213 = vld [vmem:[#allocation8] sm:$0x1]
    %v215 = vlaneseq
    %v216 = vshrl.u32 %v215, 7
    %v217 = vsub.s32 0, %v216
    %v218 = vrot.slane %v213, %v217
    %v224 = vunpack.c.l.b16 %v209
    %v225 = vunpack.c.l.b16 %v210
    %v226 = vunpack.c.l.b16 %v211
    %v227 = vunpack.c.l.b16 %v212
    %v228 = vpack.c.b16 %v225, %v224
    %v229 = vpack.c.b16 %v227, %v226
    %vm232 = vcmask 261120
    %v234 = vsel %vm232, %v208, 0
    %236 = vmatprep.subr.bf16.mxu0 0
    %237 = vmatpush1.bf16.msra.mxu0 %v228
    %238 = vmatprep.subr.bf16.mxu0 0
    %239 = vmatpush1.bf16.msra.mxu0 %v229
    %240 = vmatprep.subr.bf16.mxu0 0
    %241 = vmatpush1.bf16.msra.mxu0 0
    %242 = vmatprep.subr.bf16.mxu0 0
    %243 = vmatpush1.bf16.msra.mxu0 0
    %244 = vmatprep.subr.bf16.mxu0 0
    %245 = vmatpush1.bf16.msra.mxu0 0
    %246 = vmatprep.subr.bf16.mxu0 0
    %247 = vmatpush1.bf16.msra.mxu0 0
    %248 = vmatprep.subr.bf16.mxu0 0
    %249 = vmatpush1.bf16.msra.mxu0 0
    %250 = vmatprep.subr.bf16.mxu0 0
    %251 = vmatpush1.bf16.msra.mxu0 0
    %252 = vmatprep.subr.bf16.mxu0 0
    %253 = vmatpush1.bf16.msra.mxu0 0
    %254 = vmatprep.subr.bf16.mxu0 0
    %255 = vmatpush1.bf16.msra.mxu0 0
    %256 = vmatprep.subr.bf16.mxu0 0
    %257 = vmatpush1.bf16.msra.mxu0 0
    %258 = vmatprep.subr.bf16.mxu0 0
    %259 = vmatpush1.bf16.msra.mxu0 0
    %260 = vmatprep.subr.bf16.mxu0 0
    %261 = vmatpush1.bf16.msra.mxu0 0
    %262 = vmatprep.subr.bf16.mxu0 0
    %263 = vmatpush1.bf16.msra.mxu0 0
    %264 = vmatprep.subr.bf16.mxu0 0
    %265 = vmatpush1.bf16.msra.mxu0 0
    %266 = vmatprep.subr.bf16.mxu0 0
    %267 = vmatpush1.bf16.msra.mxu0 0
    %268 = vmatprep.mubr.bf16.mxu0 0
    %269 = vmatmul.mubr.bf16.gmra.mrb[0].mxu0 %v234
    %v270 = vpop.f32.mrb[0].mxu0
    %v271 = vadd.f32 %v218, %v270
    %v272 = vpop.f32.mrb[0].mxu0
    %v273 = vpop.f32.mrb[0].mxu0
    %v274 = vadd.f32 %v218, %v273
    %v275 = vpop.f32.mrb[0].mxu0
    %276 = vdwg.mxu0
    %v277 = vmul.f32 %v271, 0.35355338
    %v278 = vmul.f32 %v274, 0.35355338
    %v279 = vpack.c.bf16 %v277, %v277
    %v280 = vpack.c.bf16 %v278, %v278
    %v281 = vpack.c.bf16 %v271, %v271
    %v282 = vpack.c.bf16 %v274, %v274
    %284 = vrot.lane.b32.xlu0 %v281, 96
    %v285 = vpop.permute.xlu0 %284
    %vm286 = vcmask 64512
    %v288 = vsel %vm286, %v279, 0
    %v291 = vsel %vm286, %v285, 0
    %293 = vmatprep.subr.bf16.mxu0 0
    %294 = vmatpush1.bf16.xpose.msra.mxu0 %v291
    %295 = vmatprep.subr.bf16.mxu0 0
    %296 = vmatpush1.bf16.xpose.msra.mxu0 0
    %297 = vmatprep.subr.bf16.mxu0 0
    %298 = vmatpush1.bf16.xpose.msra.mxu0 0
    %299 = vmatprep.subr.bf16.mxu0 0
    %300 = vmatpush1.bf16.xpose.msra.mxu0 0
    %301 = vmatprep.subr.bf16.mxu0 0
    %302 = vmatpush1.bf16.xpose.msra.mxu0 0
    %303 = vmatprep.subr.bf16.mxu0 0
    %304 = vmatpush1.bf16.xpose.msra.mxu0 0
    %305 = vmatprep.subr.bf16.mxu0 0
    %306 = vmatpush1.bf16.xpose.msra.mxu0 0
    %307 = vmatprep.subr.bf16.mxu0 0
    %308 = vmatpush1.bf16.xpose.msra.mxu0 0
    %309 = vmatprep.subr.bf16.mxu0 0
    %310 = vmatpush1.bf16.xpose.msra.mxu0 0
    %311 = vmatprep.subr.bf16.mxu0 0
    %312 = vmatpush1.bf16.xpose.msra.mxu0 0
    %313 = vmatprep.subr.bf16.mxu0 0
    %314 = vmatpush1.bf16.xpose.msra.mxu0 0
    %315 = vmatprep.subr.bf16.mxu0 0
    %316 = vmatpush1.bf16.xpose.msra.mxu0 0
    %317 = vmatprep.subr.bf16.mxu0 0
    %318 = vmatpush1.bf16.xpose.msra.mxu0 0
    %319 = vmatprep.subr.bf16.mxu0 0
    %320 = vmatpush1.bf16.xpose.msra.mxu0 0
    %321 = vmatprep.subr.bf16.mxu0 0
    %322 = vmatpush1.bf16.xpose.msra.mxu0 0
    %323 = vmatprep.subr.bf16.mxu0 0
    %324 = vmatpush1.bf16.xpose.msra.mxu0 0
    %325 = vmatprep.mubr.bf16.mxu0 0
    %326 = vmatmul.mubr.bf16.gmra.mrb[0].mxu0 %v288
    %v327 = vpop.f32.mrb[0].mxu0
    %v328 = vadd.f32 0.0, %v327
    %v329 = vpop.f32.mrb[0].mxu0
    %v330 = vpop.f32.mrb[0].mxu0
    %v331 = vpop.f32.mrb[0].mxu0
    %332 = vdwg.mxu0
    %334 = vrot.lane.b32.xlu0 %v282, 96
    %v335 = vpop.permute.xlu0 %334
    %v337 = vsel %vm286, %v280, 0
    %v340 = vsel %vm286, %v335, 0
    %342 = vmatprep.subr.bf16.mxu0 0
    %343 = vmatpush1.bf16.xpose.msra.mxu0 %v340
    %344 = vmatprep.subr.bf16.mxu0 0
    %345 = vmatpush1.bf16.xpose.msra.mxu0 0
    %346 = vmatprep.subr.bf16.mxu0 0
    %347 = vmatpush1.bf16.xpose.msra.mxu0 0
    %348 = vmatprep.subr.bf16.mxu0 0
    %349 = vmatpush1.bf16.xpose.msra.mxu0 0
    %350 = vmatprep.subr.bf16.mxu0 0
    %351 = vmatpush1.bf16.xpose.msra.mxu0 0
    %352 = vmatprep.subr.bf16.mxu0 0
    %353 = vmatpush1.bf16.xpose.msra.mxu0 0
    %354 = vmatprep.subr.bf16.mxu0 0
    %355 = vmatpush1.bf16.xpose.msra.mxu0 0
    %356 = vmatprep.subr.bf16.mxu0 0
    %357 = vmatpush1.bf16.xpose.msra.mxu0 0
    %358 = vmatprep.subr.bf16.mxu0 0
    %359 = vmatpush1.bf16.xpose.msra.mxu0 0
    %360 = vmatprep.subr.bf16.mxu0 0
    %361 = vmatpush1.bf16.xpose.msra.mxu0 0
    %362 = vmatprep.subr.bf16.mxu0 0
    %363 = vmatpush1.bf16.xpose.msra.mxu0 0
    %364 = vmatprep.subr.bf16.mxu0 0
    %365 = vmatpush1.bf16.xpose.msra.mxu0 0
    %366 = vmatprep.subr.bf16.mxu0 0
    %367 = vmatpush1.bf16.xpose.msra.mxu0 0
    %368 = vmatprep.subr.bf16.mxu0 0
    %369 = vmatpush1.bf16.xpose.msra.mxu0 0
    %370 = vmatprep.subr.bf16.mxu0 0
    %371 = vmatpush1.bf16.xpose.msra.mxu0 0
    %372 = vmatprep.subr.bf16.mxu0 0
    %373 = vmatpush1.bf16.xpose.msra.mxu0 0
    %374 = vmatprep.mubr.bf16.mxu0 0
    %375 = vmatmul.mubr.bf16.gmra.mrb[0].mxu0 %v337
    %v376 = vpop.f32.mrb[0].mxu0
    %v377 = vadd.f32 0.0, %v376
    %v378 = vpop.f32.mrb[0].mxu0
    %v379 = vpop.f32.mrb[0].mxu0
    %v380 = vpop.f32.mrb[0].mxu0
    %381 = vdwg.mxu0
    %v382 = vsel %vm286, %v328, -inf
    %383 = vmax.xlane.f32.xlu0 %v382
    %v384 = vpop.xlane.xlu0 %383
    %v385 = vsel %vm286, %v377, -inf
    %386 = vmax.xlane.f32.xlu0 %v385
    %v387 = vpop.xlane.xlu0 %386
    %v388 = vsub.f32 %v328, %v384
    %v389 = vsub.f32 %v377, %v387
    %v390 = vmul.f32 %v388, 1.442695
    %v391 = vpow.pop %v390
    %v392 = vmul.f32 %v389, 1.442695
    %v393 = vpow.pop %v392
    %v394 = vsel %vm286, %v391, 0.0
    %395 = vadd.xlane.f32.xlu0 %v394
    %v396 = vpop.xlane.xlu0 %395
    %v397 = vsel %vm286, %v393, 0.0
    %398 = vadd.xlane.f32.xlu0 %v397
    %v399 = vpop.xlane.xlu0 %398
    %v400 = vrcp.pop %v396
    %v401 = vrcp.pop %v399
    %v402 = vmul.f32 %v391, %v400
    %v403 = vmul.f32 %v393, %v401
    %v404 = vpack.c.bf16 %v402, %v402
    %v405 = vpack.c.bf16 %v403, %v403
    %406 = vrot.lane.b32.xlu0 %v281, 64
    %v407 = vpop.permute.xlu0 %406
    %v409 = vsel %vm286, %v404, 0
    %vm411 = vcmask 1043456
    %v413 = vsel %vm411, %v407, 0
    %415 = vmatprep.subr.bf16.mxu0 0
    %416 = vmatpush1.bf16.msra.mxu0 %v413
    %417 = vmatprep.subr.bf16.mxu0 0
    %418 = vmatpush1.bf16.msra.mxu0 0
    %419 = vmatprep.subr.bf16.mxu0 0
    %420 = vmatpush1.bf16.msra.mxu0 0
    %421 = vmatprep.subr.bf16.mxu0 0
    %422 = vmatpush1.bf16.msra.mxu0 0
    %423 = vmatprep.subr.bf16.mxu0 0
    %424 = vmatpush1.bf16.msra.mxu0 0
    %425 = vmatprep.subr.bf16.mxu0 0
    %426 = vmatpush1.bf16.msra.mxu0 0
    %427 = vmatprep.subr.bf16.mxu0 0
    %428 = vmatpush1.bf16.msra.mxu0 0
    %429 = vmatprep.subr.bf16.mxu0 0
    %430 = vmatpush1.bf16.msra.mxu0 0
    %431 = vmatprep.subr.bf16.mxu0 0
    %432 = vmatpush1.bf16.msra.mxu0 0
    %433 = vmatprep.subr.bf16.mxu0 0
    %434 = vmatpush1.bf16.msra.mxu0 0
    %435 = vmatprep.subr.bf16.mxu0 0
    %436 = vmatpush1.bf16.msra.mxu0 0
    %437 = vmatprep.subr.bf16.mxu0 0
    %438 = vmatpush1.bf16.msra.mxu0 0
    %439 = vmatprep.subr.bf16.mxu0 0
    %440 = vmatpush1.bf16.msra.mxu0 0
    %441 = vmatprep.subr.bf16.mxu0 0
    %442 = vmatpush1.bf16.msra.mxu0 0
    %443 = vmatprep.subr.bf16.mxu0 0
    %444 = vmatpush1.bf16.msra.mxu0 0
    %445 = vmatprep.subr.bf16.mxu0 0
    %446 = vmatpush1.bf16.msra.mxu0 0
    %447 = vmatprep.mubr.bf16.mxu0 0
    %448 = vmatmul.mubr.bf16.gmra.mrb[0].mxu0 %v409
    %v449 = vpop.f32.mrb[0].mxu0
    %v450 = vadd.f32 0.0, %v449
    %v451 = vpop.f32.mrb[0].mxu0
    %v452 = vpop.f32.mrb[0].mxu0
    %v453 = vpop.f32.mrb[0].mxu0
    %454 = vdwg.mxu0
    %455 = vrot.lane.b32.xlu0 %v282, 64
    %v456 = vpop.permute.xlu0 %455
    %v458 = vsel %vm286, %v405, 0
    %v461 = vsel %vm411, %v456, 0
    %463 = vmatprep.subr.bf16.mxu0 0
    %464 = vmatpush1.bf16.msra.mxu0 %v461
    %465 = vmatprep.subr.bf16.mxu0 0
    %466 = vmatpush1.bf16.msra.mxu0 0
    %467 = vmatprep.subr.bf16.mxu0 0
    %468 = vmatpush1.bf16.msra.mxu0 0
    %469 = vmatprep.subr.bf16.mxu0 0
    %470 = vmatpush1.bf16.msra.mxu0 0
    %471 = vmatprep.subr.bf16.mxu0 0
    %472 = vmatpush1.bf16.msra.mxu0 0
    %473 = vmatprep.subr.bf16.mxu0 0
    %474 = vmatpush1.bf16.msra.mxu0 0
    %475 = vmatprep.subr.bf16.mxu0 0
    %476 = vmatpush1.bf16.msra.mxu0 0
    %477 = vmatprep.subr.bf16.mxu0 0
    %478 = vmatpush1.bf16.msra.mxu0 0
    %479 = vmatprep.subr.bf16.mxu0 0
    %480 = vmatpush1.bf16.msra.mxu0 0
    %481 = vmatprep.subr.bf16.mxu0 0
    %482 = vmatpush1.bf16.msra.mxu0 0
    %483 = vmatprep.subr.bf16.mxu0 0
    %484 = vmatpush1.bf16.msra.mxu0 0
    %485 = vmatprep.subr.bf16.mxu0 0
    %486 = vmatpush1.bf16.msra.mxu0 0
    %487 = vmatprep.subr.bf16.mxu0 0
    %488 = vmatpush1.bf16.msra.mxu0 0
    %489 = vmatprep.subr.bf16.mxu0 0
    %490 = vmatpush1.bf16.msra.mxu0 0
    %491 = vmatprep.subr.bf16.mxu0 0
    %492 = vmatpush1.bf16.msra.mxu0 0
    %493 = vmatprep.subr.bf16.mxu0 0
    %494 = vmatpush1.bf16.msra.mxu0 0
    %495 = vmatprep.mubr.bf16.mxu0 0
    %496 = vmatmul.mubr.bf16.gmra.mrb[0].mxu0 %v458
    %v497 = vpop.f32.mrb[0].mxu0
    %v498 = vadd.f32 0.0, %v497
    %v499 = vpop.f32.mrb[0].mxu0
    %v500 = vpop.f32.mrb[0].mxu0
    %v501 = vpop.f32.mrb[0].mxu0
    %502 = vdwg.mxu0
    %503 = vst.msk [vmem:[#allocation2] sm:$0xff] %vm286, %v450
    %504 = vst.msk [vmem:[#allocation2 + $0x8] sm:$0xff] %vm286, %v498
    %506 = vrot.lane.b32.xlu0 %v279, 120
    %v507 = vpop.permute.xlu0 %506
    %508 = vrot.lane.b32.xlu0 %v281, 88
    %v509 = vpop.permute.xlu0 %508
    %v511 = vsel %vm286, %v507, 0
    %v514 = vsel %vm286, %v509, 0
    %516 = vmatprep.subr.bf16.mxu0 0
    %517 = vmatpush1.bf16.xpose.msra.mxu0 %v514
    %518 = vmatprep.subr.bf16.mxu0 0
    %519 = vmatpush1.bf16.xpose.msra.mxu0 0
    %520 = vmatprep.subr.bf16.mxu0 0
    %521 = vmatpush1.bf16.xpose.msra.mxu0 0
    %522 = vmatprep.subr.bf16.mxu0 0
    %523 = vmatpush1.bf16.xpose.msra.mxu0 0
    %524 = vmatprep.subr.bf16.mxu0 0
    %525 = vmatpush1.bf16.xpose.msra.mxu0 0
    %526 = vmatprep.subr.bf16.mxu0 0
    %527 = vmatpush1.bf16.xpose.msra.mxu0 0
    %528 = vmatprep.subr.bf16.mxu0 0
    %529 = vmatpush1.bf16.xpose.msra.mxu0 0
    %530 = vmatprep.subr.bf16.mxu0 0
    %531 = vmatpush1.bf16.xpose.msra.mxu0 0
    %532 = vmatprep.subr.bf16.mxu0 0
    %533 = vmatpush1.bf16.xpose.msra.mxu0 0
    %534 = vmatprep.subr.bf16.mxu0 0
    %535 = vmatpush1.bf16.xpose.msra.mxu0 0
    %536 = vmatprep.subr.bf16.mxu0 0
    %537 = vmatpush1.bf16.xpose.msra.mxu0 0
    %538 = vmatprep.subr.bf16.mxu0 0
    %539 = vmatpush1.bf16.xpose.msra.mxu0 0
    %540 = vmatprep.subr.bf16.mxu0 0
    %541 = vmatpush1.bf16.xpose.msra.mxu0 0
    %542 = vmatprep.subr.bf16.mxu0 0
    %543 = vmatpush1.bf16.xpose.msra.mxu0 0
    %544 = vmatprep.subr.bf16.mxu0 0
    %545 = vmatpush1.bf16.xpose.msra.mxu0 0
    %546 = vmatprep.subr.bf16.mxu0 0
    %547 = vmatpush1.bf16.xpose.msra.mxu0 0
    %548 = vmatprep.mubr.bf16.mxu0 0
    %549 = vmatmul.mubr.bf16.gmra.mrb[0].mxu0 %v511
    %v550 = vpop.f32.mrb[0].mxu0
    %v551 = vadd.f32 0.0, %v550
    %v552 = vpop.f32.mrb[0].mxu0
    %v553 = vpop.f32.mrb[0].mxu0
    %v554 = vpop.f32.mrb[0].mxu0
    %555 = vdwg.mxu0
    %557 = vrot.lane.b32.xlu0 %v280, 120
    %v558 = vpop.permute.xlu0 %557
    %559 = vrot.lane.b32.xlu0 %v282, 88
    %v560 = vpop.permute.xlu0 %559
    %v562 = vsel %vm286, %v558, 0
    %v565 = vsel %vm286, %v560, 0
    %567 = vmatprep.subr.bf16.mxu0 0
    %568 = vmatpush1.bf16.xpose.msra.mxu0 %v565
    %569 = vmatprep.subr.bf16.mxu0 0
    %570 = vmatpush1.bf16.xpose.msra.mxu0 0
    %571 = vmatprep.subr.bf16.mxu0 0
    %572 = vmatpush1.bf16.xpose.msra.mxu0 0
    %573 = vmatprep.subr.bf16.mxu0 0
    %574 = vmatpush1.bf16.xpose.msra.mxu0 0
    %575 = vmatprep.subr.bf16.mxu0 0
    %576 = vmatpush1.bf16.xpose.msra.mxu0 0
    %577 = vmatprep.subr.bf16.mxu0 0
    %578 = vmatpush1.bf16.xpose.msra.mxu0 0
    %579 = vmatprep.subr.bf16.mxu0 0
    %580 = vmatpush1.bf16.xpose.msra.mxu0 0
    %581 = vmatprep.subr.bf16.mxu0 0
    %582 = vmatpush1.bf16.xpose.msra.mxu0 0
    %583 = vmatprep.subr.bf16.mxu0 0
    %584 = vmatpush1.bf16.xpose.msra.mxu0 0
    %585 = vmatprep.subr.bf16.mxu0 0
    %586 = vmatpush1.bf16.xpose.msra.mxu0 0
    %587 = vmatprep.subr.bf16.mxu0 0
    %588 = vmatpush1.bf16.xpose.msra.mxu0 0
    %589 = vmatprep.subr.bf16.mxu0 0
    %590 = vmatpush1.bf16.xpose.msra.mxu0 0
    %591 = vmatprep.subr.bf16.mxu0 0
    %592 = vmatpush1.bf16.xpose.msra.mxu0 0
    %593 = vmatprep.subr.bf16.mxu0 0
    %594 = vmatpush1.bf16.xpose.msra.mxu0 0
    %595 = vmatprep.subr.bf16.mxu0 0
    %596 = vmatpush1.bf16.xpose.msra.mxu0 0
    %597 = vmatprep.subr.bf16.mxu0 0
    %598 = vmatpush1.bf16.xpose.msra.mxu0 0
    %599 = vmatprep.mubr.bf16.mxu0 0
    %600 = vmatmul.mubr.bf16.gmra.mrb[0].mxu0 %v562
    %v601 = vpop.f32.mrb[0].mxu0
    %v602 = vadd.f32 0.0, %v601
    %v603 = vpop.f32.mrb[0].mxu0
    %v604 = vpop.f32.mrb[0].mxu0
    %v605 = vpop.f32.mrb[0].mxu0
    %606 = vdwg.mxu0
    %v607 = vsel %vm286, %v551, -inf
    %608 = vmax.xlane.f32.xlu0 %v607
    %v609 = vpop.xlane.xlu0 %608
    %v610 = vsel %vm286, %v602, -inf
    %611 = vmax.xlane.f32.xlu0 %v610
    %v612 = vpop.xlane.xlu0 %611
    %v613 = vsub.f32 %v551, %v609
    %v614 = vsub.f32 %v602, %v612
    %v615 = vmul.f32 %v613, 1.442695
    %v616 = vpow.pop %v615
    %v617 = vmul.f32 %v614, 1.442695
    %v618 = vpow.pop %v617
    %v619 = vsel %vm286, %v616, 0.0
    %620 = vadd.xlane.f32.xlu0 %v619
    %v621 = vpop.xlane.xlu0 %620
    %v622 = vsel %vm286, %v618, 0.0
    %623 = vadd.xlane.f32.xlu0 %v622
    %v624 = vpop.xlane.xlu0 %623
    %v625 = vrcp.pop %v621
    %v626 = vrcp.pop %v624
    %v627 = vmul.f32 %v616, %v625
    %v628 = vmul.f32 %v618, %v626
    %v629 = vpack.c.bf16 %v627, %v627
    %v630 = vpack.c.bf16 %v628, %v628
    %631 = vrot.lane.b32.xlu0 %v281, 56
    %v632 = vpop.permute.xlu0 %631
    %v634 = vsel %vm286, %v629, 0
    %v637 = vsel %vm411, %v632, 0
    %639 = vmatprep.subr.bf16.mxu0 0
    %640 = vmatpush1.bf16.msra.mxu0 %v637
    %641 = vmatprep.subr.bf16.mxu0 0
    %642 = vmatpush1.bf16.msra.mxu0 0
    %643 = vmatprep.subr.bf16.mxu0 0
    %644 = vmatpush1.bf16.msra.mxu0 0
    %645 = vmatprep.subr.bf16.mxu0 0
    %646 = vmatpush1.bf16.msra.mxu0 0
    %647 = vmatprep.subr.bf16.mxu0 0
    %648 = vmatpush1.bf16.msra.mxu0 0
    %649 = vmatprep.subr.bf16.mxu0 0
    %650 = vmatpush1.bf16.msra.mxu0 0
    %651 = vmatprep.subr.bf16.mxu0 0
    %652 = vmatpush1.bf16.msra.mxu0 0
    %653 = vmatprep.subr.bf16.mxu0 0
    %654 = vmatpush1.bf16.msra.mxu0 0
    %655 = vmatprep.subr.bf16.mxu0 0
    %656 = vmatpush1.bf16.msra.mxu0 0
    %657 = vmatprep.subr.bf16.mxu0 0
    %658 = vmatpush1.bf16.msra.mxu0 0
    %659 = vmatprep.subr.bf16.mxu0 0
    %660 = vmatpush1.bf16.msra.mxu0 0
    %661 = vmatprep.subr.bf16.mxu0 0
    %662 = vmatpush1.bf16.msra.mxu0 0
    %663 = vmatprep.subr.bf16.mxu0 0
    %664 = vmatpush1.bf16.msra.mxu0 0
    %665 = vmatprep.subr.bf16.mxu0 0
    %666 = vmatpush1.bf16.msra.mxu0 0
    %667 = vmatprep.subr.bf16.mxu0 0
    %668 = vmatpush1.bf16.msra.mxu0 0
    %669 = vmatprep.subr.bf16.mxu0 0
    %670 = vmatpush1.bf16.msra.mxu0 0
    %671 = vmatprep.mubr.bf16.mxu0 0
    %672 = vmatmul.mubr.bf16.gmra.mrb[0].mxu0 %v634
    %v673 = vpop.f32.mrb[0].mxu0
    %v674 = vadd.f32 0.0, %v673
    %v675 = vpop.f32.mrb[0].mxu0
    %v676 = vpop.f32.mrb[0].mxu0
    %v677 = vpop.f32.mrb[0].mxu0
    %678 = vdwg.mxu0
    %679 = vrot.lane.b32.xlu0 %v282, 56
    %v680 = vpop.permute.xlu0 %679
    %v682 = vsel %vm286, %v630, 0
    %v685 = vsel %vm411, %v680, 0
    %687 = vmatprep.subr.bf16.mxu0 0
    %688 = vmatpush1.bf16.msra.mxu0 %v685
    %689 = vmatprep.subr.bf16.mxu0 0
    %690 = vmatpush1.bf16.msra.mxu0 0
    %691 = vmatprep.subr.bf16.mxu0 0
    %692 = vmatpush1.bf16.msra.mxu0 0
    %693 = vmatprep.subr.bf16.mxu0 0
    %694 = vmatpush1.bf16.msra.mxu0 0
    %695 = vmatprep.subr.bf16.mxu0 0
    %696 = vmatpush1.bf16.msra.mxu0 0
    %697 = vmatprep.subr.bf16.mxu0 0
    %698 = vmatpush1.bf16.msra.mxu0 0
    %699 = vmatprep.subr.bf16.mxu0 0
    %700 = vmatpush1.bf16.msra.mxu0 0
    %701 = vmatprep.subr.bf16.mxu0 0
    %702 = vmatpush1.bf16.msra.mxu0 0
    %703 = vmatprep.subr.bf16.mxu0 0
    %704 = vmatpush1.bf16.msra.mxu0 0
    %705 = vmatprep.subr.bf16.mxu0 0
    %706 = vmatpush1.bf16.msra.mxu0 0
    %707 = vmatprep.subr.bf16.mxu0 0
    %708 = vmatpush1.bf16.msra.mxu0 0
    %709 = vmatprep.subr.bf16.mxu0 0
    %710 = vmatpush1.bf16.msra.mxu0 0
    %711 = vmatprep.subr.bf16.mxu0 0
    %712 = vmatpush1.bf16.msra.mxu0 0
    %713 = vmatprep.subr.bf16.mxu0 0
    %714 = vmatpush1.bf16.msra.mxu0 0
    %715 = vmatprep.subr.bf16.mxu0 0
    %716 = vmatpush1.bf16.msra.mxu0 0
    %717 = vmatprep.subr.bf16.mxu0 0
    %718 = vmatpush1.bf16.msra.mxu0 0
    %719 = vmatprep.mubr.bf16.mxu0 0
    %720 = vmatmul.mubr.bf16.gmra.mrb[0].mxu0 %v682
    %v721 = vpop.f32.mrb[0].mxu0
    %v722 = vadd.f32 0.0, %v721
    %v723 = vpop.f32.mrb[0].mxu0
    %v724 = vpop.f32.mrb[0].mxu0
    %v725 = vpop.f32.mrb[0].mxu0
    %726 = vdwg.mxu0
    %729 = vrot.lane.b32.xlu0 %v674, 8
    %v730 = vpop.permute.xlu0 %729
    %731 = vrot.lane.b32.xlu0 %v722, 8
    %v732 = vpop.permute.xlu0 %731
    %vm735 = vcmask 130112
    %736 = vst.msk [vmem:[#allocation2] sm:$0xff] %vm735, %v730
    %737 = vst.msk [vmem:[#allocation2 + $0x8] sm:$0xff] %vm735, %v732
    %738 = vrot.lane.b32.xlu0 %v279, 112
    %v739 = vpop.permute.xlu0 %738
    %740 = vrot.lane.b32.xlu0 %v281, 80
    %v741 = vpop.permute.xlu0 %740
    %v743 = vsel %vm286, %v739, 0
    %v746 = vsel %vm286, %v741, 0
    %748 = vmatprep.subr.bf16.mxu0 0
    %749 = vmatpush1.bf16.xpose.msra.mxu0 %v746
    %750 = vmatprep.subr.bf16.mxu0 0
    %751 = vmatpush1.bf16.xpose.msra.mxu0 0
    %752 = vmatprep.subr.bf16.mxu0 0
    %753 = vmatpush1.bf16.xpose.msra.mxu0 0
    %754 = vmatprep.subr.bf16.mxu0 0
    %755 = vmatpush1.bf16.xpose.msra.mxu0 0
    %756 = vmatprep.subr.bf16.mxu0 0
    %757 = vmatpush1.bf16.xpose.msra.mxu0 0
    %758 = vmatprep.subr.bf16.mxu0 0
    %759 = vmatpush1.bf16.xpose.msra.mxu0 0
    %760 = vmatprep.subr.bf16.mxu0 0
    %761 = vmatpush1.bf16.xpose.msra.mxu0 0
    %762 = vmatprep.subr.bf16.mxu0 0
    %763 = vmatpush1.bf16.xpose.msra.mxu0 0
    %764 = vmatprep.subr.bf16.mxu0 0
    %765 = vmatpush1.bf16.xpose.msra.mxu0 0
    %766 = vmatprep.subr.bf16.mxu0 0
    %767 = vmatpush1.bf16.xpose.msra.mxu0 0
    %768 = vmatprep.subr.bf16.mxu0 0
    %769 = vmatpush1.bf16.xpose.msra.mxu0 0
    %770 = vmatprep.subr.bf16.mxu0 0
    %771 = vmatpush1.bf16.xpose.msra.mxu0 0
    %772 = vmatprep.subr.bf16.mxu0 0
    %773 = vmatpush1.bf16.xpose.msra.mxu0 0
    %774 = vmatprep.subr.bf16.mxu0 0
    %775 = vmatpush1.bf16.xpose.msra.mxu0 0
    %776 = vmatprep.subr.bf16.mxu0 0
    %777 = vmatpush1.bf16.xpose.msra.mxu0 0
    %778 = vmatprep.subr.bf16.mxu0 0
    %779 = vmatpush1.bf16.xpose.msra.mxu0 0
    %780 = vmatprep.mubr.bf16.mxu0 0
    %781 = vmatmul.mubr.bf16.gmra.mrb[0].mxu0 %v743
    %v782 = vpop.f32.mrb[0].mxu0
    %v783 = vadd.f32 0.0, %v782
    %v784 = vpop.f32.mrb[0].mxu0
    %v785 = vpop.f32.mrb[0].mxu0
    %v786 = vpop.f32.mrb[0].mxu0
    %787 = vdwg.mxu0
    %788 = vrot.lane.b32.xlu0 %v280, 112
    %v789 = vpop.permute.xlu0 %788
    %790 = vrot.lane.b32.xlu0 %v282, 80
    %v791 = vpop.permute.xlu0 %790
    %v793 = vsel %vm286, %v789, 0
    %v796 = vsel %vm286, %v791, 0
    %798 = vmatprep.subr.bf16.mxu0 0
    %799 = vmatpush1.bf16.xpose.msra.mxu0 %v796
    %800 = vmatprep.subr.bf16.mxu0 0
    %801 = vmatpush1.bf16.xpose.msra.mxu0 0
    %802 = vmatprep.subr.bf16.mxu0 0
    %803 = vmatpush1.bf16.xpose.msra.mxu0 0
    %804 = vmatprep.subr.bf16.mxu0 0
    %805 = vmatpush1.bf16.xpose.msra.mxu0 0
    %806 = vmatprep.subr.bf16.mxu0 0
    %807 = vmatpush1.bf16.xpose.msra.mxu0 0
    %808 = vmatprep.subr.bf16.mxu0 0
    %809 = vmatpush1.bf16.xpose.msra.mxu0 0
    %810 = vmatprep.subr.bf16.mxu0 0
    %811 = vmatpush1.bf16.xpose.msra.mxu0 0
    %812 = vmatprep.subr.bf16.mxu0 0
    %813 = vmatpush1.bf16.xpose.msra.mxu0 0
    %814 = vmatprep.subr.bf16.mxu0 0
    %815 = vmatpush1.bf16.xpose.msra.mxu0 0
    %816 = vmatprep.subr.bf16.mxu0 0
    %817 = vmatpush1.bf16.xpose.msra.mxu0 0
    %818 = vmatprep.subr.bf16.mxu0 0
    %819 = vmatpush1.bf16.xpose.msra.mxu0 0
    %820 = vmatprep.subr.bf16.mxu0 0
    %821 = vmatpush1.bf16.xpose.msra.mxu0 0
    %822 = vmatprep.subr.bf16.mxu0 0
    %823 = vmatpush1.bf16.xpose.msra.mxu0 0
    %824 = vmatprep.subr.bf16.mxu0 0
    %825 = vmatpush1.bf16.xpose.msra.mxu0 0
    %826 = vmatprep.subr.bf16.mxu0 0
    %827 = vmatpush1.bf16.xpose.msra.mxu0 0
    %828 = vmatprep.subr.bf16.mxu0 0
    %829 = vmatpush1.bf16.xpose.msra.mxu0 0
    %830 = vmatprep.mubr.bf16.mxu0 0
    %831 = vmatmul.mubr.bf16.gmra.mrb[0].mxu0 %v793
    %v832 = vpop.f32.mrb[0].mxu0
    %v833 = vadd.f32 0.0, %v832
    %v834 = vpop.f32.mrb[0].mxu0
    %v835 = vpop.f32.mrb[0].mxu0
    %v836 = vpop.f32.mrb[0].mxu0
    %837 = vdwg.mxu0
    %v838 = vsel %vm286, %v783, -inf
    %839 = vmax.xlane.f32.xlu0 %v838
    %v840 = vpop.xlane.xlu0 %839
    %v841 = vsel %vm286, %v833, -inf
    %842 = vmax.xlane.f32.xlu0 %v841
    %v843 = vpop.xlane.xlu0 %842
    %v844 = vsub.f32 %v783, %v840
    %v845 = vsub.f32 %v833, %v843
    %v846 = vmul.f32 %v844, 1.442695
    %v847 = vpow.pop %v846
    %v848 = vmul.f32 %v845, 1.442695
    %v849 = vpow.pop %v848
    %v850 = vsel %vm286, %v847, 0.0
    %851 = vadd.xlane.f32.xlu0 %v850
    %v852 = vpop.xlane.xlu0 %851
    %v853 = vsel %vm286, %v849, 0.0
    %854 = vadd.xlane.f32.xlu0 %v853
    %v855 = vpop.xlane.xlu0 %854
    %v856 = vrcp.pop %v852
    %v857 = vrcp.pop %v855
    %v858 = vmul.f32 %v847, %v856
    %v859 = vmul.f32 %v849, %v857
    %v860 = vpack.c.bf16 %v858, %v858
    %v861 = vpack.c.bf16 %v859, %v859
    %862 = vrot.lane.b32.xlu0 %v281, 48
    %v863 = vpop.permute.xlu0 %862
    %v865 = vsel %vm286, %v860, 0
    %v868 = vsel %vm411, %v863, 0
    %870 = vmatprep.subr.bf16.mxu0 0
    %871 = vmatpush1.bf16.msra.mxu0 %v868
    %872 = vmatprep.subr.bf16.mxu0 0
    %873 = vmatpush1.bf16.msra.mxu0 0
    %874 = vmatprep.subr.bf16.mxu0 0
    %875 = vmatpush1.bf16.msra.mxu0 0
    %876 = vmatprep.subr.bf16.mxu0 0
    %877 = vmatpush1.bf16.msra.mxu0 0
    %878 = vmatprep.subr.bf16.mxu0 0
    %879 = vmatpush1.bf16.msra.mxu0 0
    %880 = vmatprep.subr.bf16.mxu0 0
    %881 = vmatpush1.bf16.msra.mxu0 0
    %882 = vmatprep.subr.bf16.mxu0 0
    %883 = vmatpush1.bf16.msra.mxu0 0
    %884 = vmatprep.subr.bf16.mxu0 0
    %885 = vmatpush1.bf16.msra.mxu0 0
    %886 = vmatprep.subr.bf16.mxu0 0
    %887 = vmatpush1.bf16.msra.mxu0 0
    %888 = vmatprep.subr.bf16.mxu0 0
    %889 = vmatpush1.bf16.msra.mxu0 0
    %890 = vmatprep.subr.bf16.mxu0 0
    %891 = vmatpush1.bf16.msra.mxu0 0
    %892 = vmatprep.subr.bf16.mxu0 0
    %893 = vmatpush1.bf16.msra.mxu0 0
    %894 = vmatprep.subr.bf16.mxu0 0
    %895 = vmatpush1.bf16.msra.mxu0 0
    %896 = vmatprep.subr.bf16.mxu0 0
    %897 = vmatpush1.bf16.msra.mxu0 0
    %898 = vmatprep.subr.bf16.mxu0 0
    %899 = vmatpush1.bf16.msra.mxu0 0
    %900 = vmatprep.subr.bf16.mxu0 0
    %901 = vmatpush1.bf16.msra.mxu0 0
    %902 = vmatprep.mubr.bf16.mxu0 0
    %903 = vmatmul.mubr.bf16.gmra.mrb[0].mxu0 %v865
    %v904 = vpop.f32.mrb[0].mxu0
    %v905 = vadd.f32 0.0, %v904
    %v906 = vpop.f32.mrb[0].mxu0
    %v907 = vpop.f32.mrb[0].mxu0
    %v908 = vpop.f32.mrb[0].mxu0
    %909 = vdwg.mxu0
    %910 = vrot.lane.b32.xlu0 %v282, 48
    %v911 = vpop.permute.xlu0 %910
    %v913 = vsel %vm286, %v861, 0
    %v916 = vsel %vm411, %v911, 0
    %918 = vmatprep.subr.bf16.mxu0 0
    %919 = vmatpush1.bf16.msra.mxu0 %v916
    %920 = vmatprep.subr.bf16.mxu0 0
    %921 = vmatpush1.bf16.msra.mxu0 0
    %922 = vmatprep.subr.bf16.mxu0 0
    %923 = vmatpush1.bf16.msra.mxu0 0
    %924 = vmatprep.subr.bf16.mxu0 0
    %925 = vmatpush1.bf16.msra.mxu0 0
    %926 = vmatprep.subr.bf16.mxu0 0
    %927 = vmatpush1.bf16.msra.mxu0 0
    %928 = vmatprep.subr.bf16.mxu0 0
    %929 = vmatpush1.bf16.msra.mxu0 0
    %930 = vmatprep.subr.bf16.mxu0 0
    %931 = vmatpush1.bf16.msra.mxu0 0
    %932 = vmatprep.subr.bf16.mxu0 0
    %933 = vmatpush1.bf16.msra.mxu0 0
    %934 = vmatprep.subr.bf16.mxu0 0
    %935 = vmatpush1.bf16.msra.mxu0 0
    %936 = vmatprep.subr.bf16.mxu0 0
    %937 = vmatpush1.bf16.msra.mxu0 0
    %938 = vmatprep.subr.bf16.mxu0 0
    %939 = vmatpush1.bf16.msra.mxu0 0
    %940 = vmatprep.subr.bf16.mxu0 0
    %941 = vmatpush1.bf16.msra.mxu0 0
    %942 = vmatprep.subr.bf16.mxu0 0
    %943 = vmatpush1.bf16.msra.mxu0 0
    %944 = vmatprep.subr.bf16.mxu0 0
    %945 = vmatpush1.bf16.msra.mxu0 0
    %946 = vmatprep.subr.bf16.mxu0 0
    %947 = vmatpush1.bf16.msra.mxu0 0
    %948 = vmatprep.subr.bf16.mxu0 0
    %949 = vmatpush1.bf16.msra.mxu0 0
    %950 = vmatprep.mubr.bf16.mxu0 0
    %951 = vmatmul.mubr.bf16.gmra.mrb[0].mxu0 %v913
    %v952 = vpop.f32.mrb[0].mxu0
    %v953 = vadd.f32 0.0, %v952
    %v954 = vpop.f32.mrb[0].mxu0
    %v955 = vpop.f32.mrb[0].mxu0
    %v956 = vpop.f32.mrb[0].mxu0
    %957 = vdwg.mxu0
    %960 = vrot.lane.b32.xlu0 %v905, 16
    %v961 = vpop.permute.xlu0 %960
    %962 = vrot.lane.b32.xlu0 %v953, 16
    %v963 = vpop.permute.xlu0 %962
    %vm966 = vcmask 195712
    %967 = vst.msk [vmem:[#allocation2] sm:$0xff] %vm966, %v961
    %968 = vst.msk [vmem:[#allocation2 + $0x8] sm:$0xff] %vm966, %v963
    %969 = vrot.lane.b32.xlu0 %v279, 104
    %v970 = vpop.permute.xlu0 %969
    %971 = vrot.lane.b32.xlu0 %v281, 72
    %v972 = vpop.permute.xlu0 %971
    %v974 = vsel %vm286, %v970, 0
    %v977 = vsel %vm286, %v972, 0
    %979 = vmatprep.subr.bf16.mxu0 0
    %980 = vmatpush1.bf16.xpose.msra.mxu0 %v977
    %981 = vmatprep.subr.bf16.mxu0 0
    %982 = vmatpush1.bf16.xpose.msra.mxu0 0
    %983 = vmatprep.subr.bf16.mxu0 0
    %984 = vmatpush1.bf16.xpose.msra.mxu0 0
    %985 = vmatprep.subr.bf16.mxu0 0
    %986 = vmatpush1.bf16.xpose.msra.mxu0 0
    %987 = vmatprep.subr.bf16.mxu0 0
    %988 = vmatpush1.bf16.xpose.msra.mxu0 0
    %989 = vmatprep.subr.bf16.mxu0 0
    %990 = vmatpush1.bf16.xpose.msra.mxu0 0
    %991 = vmatprep.subr.bf16.mxu0 0
    %992 = vmatpush1.bf16.xpose.msra.mxu0 0
    %993 = vmatprep.subr.bf16.mxu0 0
    %994 = vmatpush1.bf16.xpose.msra.mxu0 0
    %995 = vmatprep.subr.bf16.mxu0 0
    %996 = vmatpush1.bf16.xpose.msra.mxu0 0
    %997 = vmatprep.subr.bf16.mxu0 0
    %998 = vmatpush1.bf16.xpose.msra.mxu0 0
    %999 = vmatprep.subr.bf16.mxu0 0
    %1000 = vmatpush1.bf16.xpose.msra.mxu0 0
    %1001 = vmatprep.subr.bf16.mxu0 0
    %1002 = vmatpush1.bf16.xpose.msra.mxu0 0
    %1003 = vmatprep.subr.bf16.mxu0 0
    %1004 = vmatpush1.bf16.xpose.msra.mxu0 0
    %1005 = vmatprep.subr.bf16.mxu0 0
    %1006 = vmatpush1.bf16.xpose.msra.mxu0 0
    %1007 = vmatprep.subr.bf16.mxu0 0
    %1008 = vmatpush1.bf16.xpose.msra.mxu0 0
    %1009 = vmatprep.subr.bf16.mxu0 0
    %1010 = vmatpush1.bf16.xpose.msra.mxu0 0
    %1011 = vmatprep.mubr.bf16.mxu0 0
    %1012 = vmatmul.mubr.bf16.gmra.mrb[0].mxu0 %v974
    %v1013 = vpop.f32.mrb[0].mxu0
    %v1014 = vadd.f32 0.0, %v1013
    %v1015 = vpop.f32.mrb[0].mxu0
    %v1016 = vpop.f32.mrb[0].mxu0
    %v1017 = vpop.f32.mrb[0].mxu0
    %1018 = vdwg.mxu0
    %1019 = vrot.lane.b32.xlu0 %v280, 104
    %v1020 = vpop.permute.xlu0 %1019
    %1021 = vrot.lane.b32.xlu0 %v282, 72
    %v1022 = vpop.permute.xlu0 %1021
    %v1024 = vsel %vm286, %v1020, 0
    %v1027 = vsel %vm286, %v1022, 0
    %1029 = vmatprep.subr.bf16.mxu0 0
    %1030 = vmatpush1.bf16.xpose.msra.mxu0 %v1027
    %1031 = vmatprep.subr.bf16.mxu0 0
    %1032 = vmatpush1.bf16.xpose.msra.mxu0 0
    %1033 = vmatprep.subr.bf16.mxu0 0
    %1034 = vmatpush1.bf16.xpose.msra.mxu0 0
    %1035 = vmatprep.subr.bf16.mxu0 0
    %1036 = vmatpush1.bf16.xpose.msra.mxu0 0
    %1037 = vmatprep.subr.bf16.mxu0 0
    %1038 = vmatpush1.bf16.xpose.msra.mxu0 0
    %1039 = vmatprep.subr.bf16.mxu0 0
    %1040 = vmatpush1.bf16.xpose.msra.mxu0 0
    %1041 = vmatprep.subr.bf16.mxu0 0
    %1042 = vmatpush1.bf16.xpose.msra.mxu0 0
    %1043 = vmatprep.subr.bf16.mxu0 0
    %1044 = vmatpush1.bf16.xpose.msra.mxu0 0
    %1045 = vmatprep.subr.bf16.mxu0 0
    %1046 = vmatpush1.bf16.xpose.msra.mxu0 0
    %1047 = vmatprep.subr.bf16.mxu0 0
    %1048 = vmatpush1.bf16.xpose.msra.mxu0 0
    %1049 = vmatprep.subr.bf16.mxu0 0
    %1050 = vmatpush1.bf16.xpose.msra.mxu0 0
    %1051 = vmatprep.subr.bf16.mxu0 0
    %1052 = vmatpush1.bf16.xpose.msra.mxu0 0
    %1053 = vmatprep.subr.bf16.mxu0 0
    %1054 = vmatpush1.bf16.xpose.msra.mxu0 0
    %1055 = vmatprep.subr.bf16.mxu0 0
    %1056 = vmatpush1.bf16.xpose.msra.mxu0 0
    %1057 = vmatprep.subr.bf16.mxu0 0
    %1058 = vmatpush1.bf16.xpose.msra.mxu0 0
    %1059 = vmatprep.subr.bf16.mxu0 0
    %1060 = vmatpush1.bf16.xpose.msra.mxu0 0
    %1061 = vmatprep.mubr.bf16.mxu0 0
    %1062 = vmatmul.mubr.bf16.gmra.mrb[0].mxu0 %v1024
    %v1063 = vpop.f32.mrb[0].mxu0
    %v1064 = vadd.f32 0.0, %v1063
    %v1065 = vpop.f32.mrb[0].mxu0
    %v1066 = vpop.f32.mrb[0].mxu0
    %v1067 = vpop.f32.mrb[0].mxu0
    %1068 = vdwg.mxu0
    %v1069 = vsel %vm286, %v1014, -inf
    %1070 = vmax.xlane.f32.xlu0 %v1069
    %v1071 = vpop.xlane.xlu0 %1070
    %v1072 = vsel %vm286, %v1064, -inf
    %1073 = vmax.xlane.f32.xlu0 %v1072
    %v1074 = vpop.xlane.xlu0 %1073
    %v1075 = vsub.f32 %v1014, %v1071
    %v1076 = vsub.f32 %v1064, %v1074
    %v1077 = vmul.f32 %v1075, 1.442695
    %v1078 = vpow.pop %v1077
    %v1079 = vmul.f32 %v1076, 1.442695
    %v1080 = vpow.pop %v1079
    %v1081 = vsel %vm286, %v1078, 0.0
    %1082 = vadd.xlane.f32.xlu0 %v1081
    %v1083 = vpop.xlane.xlu0 %1082
    %v1084 = vsel %vm286, %v1080, 0.0
    %1085 = vadd.xlane.f32.xlu0 %v1084
    %v1086 = vpop.xlane.xlu0 %1085
    %v1087 = vrcp.pop %v1083
    %v1088 = vrcp.pop %v1086
    %v1089 = vmul.f32 %v1078, %v1087
    %v1090 = vmul.f32 %v1080, %v1088
    %v1091 = vpack.c.bf16 %v1089, %v1089
    %v1092 = vpack.c.bf16 %v1090, %v1090
    %1093 = vrot.lane.b32.xlu0 %v281, 40
    %v1094 = vpop.permute.xlu0 %1093
    %v1096 = vsel %vm286, %v1091, 0
    %v1099 = vsel %vm411, %v1094, 0
    %1101 = vmatprep.subr.bf16.mxu0 0
    %1102 = vmatpush1.bf16.msra.mxu0 %v1099
    %1103 = vmatprep.subr.bf16.mxu0 0
    %1104 = vmatpush1.bf16.msra.mxu0 0
    %1105 = vmatprep.subr.bf16.mxu0 0
    %1106 = vmatpush1.bf16.msra.mxu0 0
    %1107 = vmatprep.subr.bf16.mxu0 0
    %1108 = vmatpush1.bf16.msra.mxu0 0
    %1109 = vmatprep.subr.bf16.mxu0 0
    %1110 = vmatpush1.bf16.msra.mxu0 0
    %1111 = vmatprep.subr.bf16.mxu0 0
    %1112 = vmatpush1.bf16.msra.mxu0 0
    %1113 = vmatprep.subr.bf16.mxu0 0
    %1114 = vmatpush1.bf16.msra.mxu0 0
    %1115 = vmatprep.subr.bf16.mxu0 0
    %1116 = vmatpush1.bf16.msra.mxu0 0
    %1117 = vmatprep.subr.bf16.mxu0 0
    %1118 = vmatpush1.bf16.msra.mxu0 0
    %1119 = vmatprep.subr.bf16.mxu0 0
    %1120 = vmatpush1.bf16.msra.mxu0 0
    %1121 = vmatprep.subr.bf16.mxu0 0
    %1122 = vmatpush1.bf16.msra.mxu0 0
    %1123 = vmatprep.subr.bf16.mxu0 0
    %1124 = vmatpush1.bf16.msra.mxu0 0
    %1125 = vmatprep.subr.bf16.mxu0 0
    %1126 = vmatpush1.bf16.msra.mxu0 0
    %1127 = vmatprep.subr.bf16.mxu0 0
    %1128 = vmatpush1.bf16.msra.mxu0 0
    %1129 = vmatprep.subr.bf16.mxu0 0
    %1130 = vmatpush1.bf16.msra.mxu0 0
    %1131 = vmatprep.subr.bf16.mxu0 0
    %1132 = vmatpush1.bf16.msra.mxu0 0
    %1133 = vmatprep.mubr.bf16.mxu0 0
    %1134 = vmatmul.mubr.bf16.gmra.mrb[0].mxu0 %v1096
    %v1135 = vpop.f32.mrb[0].mxu0
    %v1136 = vadd.f32 0.0, %v1135
    %v1137 = vpop.f32.mrb[0].mxu0
    %v1138 = vpop.f32.mrb[0].mxu0
    %v1139 = vpop.f32.mrb[0].mxu0
    %1140 = vdwg.mxu0
    %1141 = vrot.lane.b32.xlu0 %v282, 40
    %v1142 = vpop.permute.xlu0 %1141
    %v1144 = vsel %vm286, %v1092, 0
    %v1147 = vsel %vm411, %v1142, 0
    %1149 = vmatprep.subr.bf16.mxu0 0
    %1150 = vmatpush1.bf16.msra.mxu0 %v1147
    %1151 = vmatprep.subr.bf16.mxu0 0
    %1152 = vmatpush1.bf16.msra.mxu0 0
    %1153 = vmatprep.subr.bf16.mxu0 0
    %1154 = vmatpush1.bf16.msra.mxu0 0
    %1155 = vmatprep.subr.bf16.mxu0 0
    %1156 = vmatpush1.bf16.msra.mxu0 0
    %1157 = vmatprep.subr.bf16.mxu0 0
    %1158 = vmatpush1.bf16.msra.mxu0 0
    %1159 = vmatprep.subr.bf16.mxu0 0
    %1160 = vmatpush1.bf16.msra.mxu0 0
    %1161 = vmatprep.subr.bf16.mxu0 0
    %1162 = vmatpush1.bf16.msra.mxu0 0
    %1163 = vmatprep.subr.bf16.mxu0 0
    %1164 = vmatpush1.bf16.msra.mxu0 0
    %1165 = vmatprep.subr.bf16.mxu0 0
    %1166 = vmatpush1.bf16.msra.mxu0 0
    %1167 = vmatprep.subr.bf16.mxu0 0
    %1168 = vmatpush1.bf16.msra.mxu0 0
    %1169 = vmatprep.subr.bf16.mxu0 0
    %1170 = vmatpush1.bf16.msra.mxu0 0
    %1171 = vmatprep.subr.bf16.mxu0 0
    %1172 = vmatpush1.bf16.msra.mxu0 0
    %1173 = vmatprep.subr.bf16.mxu0 0
    %1174 = vmatpush1.bf16.msra.mxu0 0
    %1175 = vmatprep.subr.bf16.mxu0 0
    %1176 = vmatpush1.bf16.msra.mxu0 0
    %1177 = vmatprep.subr.bf16.mxu0 0
    %1178 = vmatpush1.bf16.msra.mxu0 0
    %1179 = vmatprep.subr.bf16.mxu0 0
    %1180 = vmatpush1.bf16.msra.mxu0 0
    %1181 = vmatprep.mubr.bf16.mxu0 0
    %1182 = vmatmul.mubr.bf16.gmra.mrb[0].mxu0 %v1144
    %v1183 = vpop.f32.mrb[0].mxu0
    %v1184 = vadd.f32 0.0, %v1183
    %v1185 = vpop.f32.mrb[0].mxu0
    %v1186 = vpop.f32.mrb[0].mxu0
    %v1187 = vpop.f32.mrb[0].mxu0
    %1188 = vdwg.mxu0
    %1191 = vrot.lane.b32.xlu0 %v1136, 24
    %v1192 = vpop.permute.xlu0 %1191
    %1193 = vrot.lane.b32.xlu0 %v1184, 24
    %v1194 = vpop.permute.xlu0 %1193
    %vm1197 = vcmask 261312
    %1198 = vst.msk [vmem:[#allocation2] sm:$0xff] %vm1197, %v1192
    %1199 = vst.msk [vmem:[#allocation2 + $0x8] sm:$0xff] %vm1197, %v1194
    %v1200 = vld [vmem:[#allocation2] sm:$0xff]
    %v1201 = vld [vmem:[#allocation2 + $0x8] sm:$0xff]
    %v1202 = vpack.c.bf16 %v1201, %v1200
    %v1203 = vld [vmem:[#allocation9] sm:$0xf]
    %v1204 = vld [vmem:[#allocation9 + $0x4] sm:$0xf]
    %v1205 = vld [vmem:[#allocation9 + $0x8] sm:$0xf]
    %v1206 = vld [vmem:[#allocation9 + $0xc] sm:$0xf]
    %v1207 = vld [vmem:[#allocation11] sm:$0x1]
    %v1209 = vlaneseq
    %v1210 = vshrl.u32 %v1209, 7
    %v1211 = vsub.s32 0, %v1210
    %v1212 = vrot.slane %v1207, %v1211
    %v1218 = vunpack.c.l.b16 %v1203
    %v1219 = vunpack.c.l.b16 %v1204
    %v1220 = vunpack.c.l.b16 %v1205
    %v1221 = vunpack.c.l.b16 %v1206
    %v1222 = vpack.c.b16 %v1219, %v1218
    %v1223 = vpack.c.b16 %v1221, %v1220
    %v1227 = vsel %vm232, %v1202, 0
    %1229 = vmatprep.subr.bf16.mxu0 0
    %1230 = vmatpush1.bf16.msra.mxu0 %v1222
    %1231 = vmatprep.subr.bf16.mxu0 0
    %1232 = vmatpush1.bf16.msra.mxu0 %v1223
    %1233 = vmatprep.subr.bf16.mxu0 0
    %1234 = vmatpush1.bf16.msra.mxu0 0
    %1235 = vmatprep.subr.bf16.mxu0 0
    %1236 = vmatpush1.bf16.msra.mxu0 0
    %1237 = vmatprep.subr.bf16.mxu0 0
    %1238 = vmatpush1.bf16.msra.mxu0 0
    %1239 = vmatprep.subr.bf16.mxu0 0
    %1240 = vmatpush1.bf16.msra.mxu0 0
    %1241 = vmatprep.subr.bf16.mxu0 0
    %1242 = vmatpush1.bf16.msra.mxu0 0
    %1243 = vmatprep.subr.bf16.mxu0 0
    %1244 = vmatpush1.bf16.msra.mxu0 0
    %1245 = vmatprep.subr.bf16.mxu0 0
    %1246 = vmatpush1.bf16.msra.mxu0 0
    %1247 = vmatprep.subr.bf16.mxu0 0
    %1248 = vmatpush1.bf16.msra.mxu0 0
    %1249 = vmatprep.subr.bf16.mxu0 0
    %1250 = vmatpush1.bf16.msra.mxu0 0
    %1251 = vmatprep.subr.bf16.mxu0 0
    %1252 = vmatpush1.bf16.msra.mxu0 0
    %1253 = vmatprep.subr.bf16.mxu0 0
    %1254 = vmatpush1.bf16.msra.mxu0 0
    %1255 = vmatprep.subr.bf16.mxu0 0
    %1256 = vmatpush1.bf16.msra.mxu0 0
    %1257 = vmatprep.subr.bf16.mxu0 0
    %1258 = vmatpush1.bf16.msra.mxu0 0
    %1259 = vmatprep.subr.bf16.mxu0 0
    %1260 = vmatpush1.bf16.msra.mxu0 0
    %1261 = vmatprep.mubr.bf16.mxu0 0
    %1262 = vmatmul.mubr.bf16.gmra.mrb[0].mxu0 %v1227
    %v1263 = vpop.f32.mrb[0].mxu0
    %v1264 = vadd.f32 %v1212, %v1263
    %v1265 = vpop.f32.mrb[0].mxu0
    %v1266 = vpop.f32.mrb[0].mxu0
    %v1267 = vadd.f32 %v1212, %v1266
    %v1268 = vpop.f32.mrb[0].mxu0
    %1269 = vdwg.mxu0
    %v1270 = vadd.f32 %v206, %v1264
    %v1271 = vadd.f32 %v207, %v1267
    %v1272 = vld [vmem:[#allocation12] sm:$0x1]
    %v1273 = vld [vmem:[#allocation14] sm:$0x1]
    %v1274 = vsel %vm232, %v1270, 0.0
    %1275 = vadd.xlane.f32.xlu0 %v1274
    %v1276 = vpop.xlane.xlu0 %1275
    %v1277 = vsel %vm232, %v1271, 0.0
    %1278 = vadd.xlane.f32.xlu0 %v1277
    %v1279 = vpop.xlane.xlu0 %1278
    %v1280 = vrcp.pop 32.0
    %v1281 = vmul.f32 %v1276, %v1280
    %v1282 = vmul.f32 %v1279, %v1280
    %v1283 = vsub.f32 %v1270, %v1281
    %v1284 = vsub.f32 %v1271, %v1282
    %v1285 = vmul.f32 %v1283, %v1283
    %v1286 = vmul.f32 %v1284, %v1284
    %v1287 = vsel %vm232, %v1285, 0.0
    %1288 = vadd.xlane.f32.xlu0 %v1287
    %v1289 = vpop.xlane.xlu0 %1288
    %v1290 = vsel %vm232, %v1286, 0.0
    %1291 = vadd.xlane.f32.xlu0 %v1290
    %v1292 = vpop.xlane.xlu0 %1291
    %v1293 = vmul.f32 %v1289, %v1280
    %v1294 = vmul.f32 %v1292, %v1280
    %v1295 = vadd.f32 %v1293, 1e-05
    %v1296 = vadd.f32 %v1294, 1e-05
    %v1297 = vrsqrt.pop %v1295
    %v1298 = vrsqrt.pop %v1296
    %v1299 = vmul.f32 %v1283, %v1297
    %v1300 = vmul.f32 %v1284, %v1298
    %v1302 = vlaneseq
    %v1303 = vshrl.u32 %v1302, 7
    %v1304 = vsub.s32 0, %v1303
    %v1305 = vrot.slane %v1272, %v1304
    %v1307 = vmul.f32 %v1299, %v1305
    %v1308 = vmul.f32 %v1300, %v1305
    %v1310 = vlaneseq
    %v1311 = vshrl.u32 %v1310, 7
    %v1312 = vsub.s32 0, %v1311
    %v1313 = vrot.slane %v1273, %v1312
    %v1315 = vadd.f32 %v1307, %v1313
    %v1316 = vadd.f32 %v1308, %v1313
    %v1317 = vpack.c.bf16 %v1316, %v1315
    %v1318 = vld [vmem:[#allocation15] sm:$0xf]
    %v1319 = vld [vmem:[#allocation15 + $0x4] sm:$0xf]
    %v1320 = vld [vmem:[#allocation15 + $0x8] sm:$0xf]
    %v1321 = vld [vmem:[#allocation15 + $0xc] sm:$0xf]
    %v1322 = vld [vmem:[#allocation17] sm:$0x1]
    %v1324 = vlaneseq
    %v1325 = vshrl.u32 %v1324, 7
    %v1326 = vsub.s32 0, %v1325
    %v1327 = vrot.slane %v1322, %v1326
    %v1333 = vunpack.c.l.b16 %v1318
    %v1334 = vunpack.c.l.b16 %v1319
    %v1335 = vunpack.c.l.b16 %v1320
    %v1336 = vunpack.c.l.b16 %v1321
    %v1337 = vpack.c.b16 %v1334, %v1333
    %v1338 = vpack.c.b16 %v1336, %v1335
    %v1342 = vsel %vm232, %v1317, 0
    %1344 = vmatprep.subr.bf16.mxu0 0
    %1345 = vmatpush1.bf16.msra.mxu0 %v1337
    %1346 = vmatprep.subr.bf16.mxu0 0
    %1347 = vmatpush1.bf16.msra.mxu0 %v1338
    %1348 = vmatprep.subr.bf16.mxu0 0
    %1349 = vmatpush1.bf16.msra.mxu0 0
    %1350 = vmatprep.subr.bf16.mxu0 0
    %1351 = vmatpush1.bf16.msra.mxu0 0
    %1352 = vmatprep.subr.bf16.mxu0 0
    %1353 = vmatpush1.bf16.msra.mxu0 0
    %1354 = vmatprep.subr.bf16.mxu0 0
    %1355 = vmatpush1.bf16.msra.mxu0 0
    %1356 = vmatprep.subr.bf16.mxu0 0
    %1357 = vmatpush1.bf16.msra.mxu0 0
    %1358 = vmatprep.subr.bf16.mxu0 0
    %1359 = vmatpush1.bf16.msra.mxu0 0
    %1360 = vmatprep.subr.bf16.mxu0 0
    %1361 = vmatpush1.bf16.msra.mxu0 0
    %1362 = vmatprep.subr.bf16.mxu0 0
    %1363 = vmatpush1.bf16.msra.mxu0 0
    %1364 = vmatprep.subr.bf16.mxu0 0
    %1365 = vmatpush1.bf16.msra.mxu0 0
    %1366 = vmatprep.subr.bf16.mxu0 0
    %1367 = vmatpush1.bf16.msra.mxu0 0
    %1368 = vmatprep.subr.bf16.mxu0 0
    %1369 = vmatpush1.bf16.msra.mxu0 0
    %1370 = vmatprep.subr.bf16.mxu0 0
    %1371 = vmatpush1.bf16.msra.mxu0 0
    %1372 = vmatprep.subr.bf16.mxu0 0
    %1373 = vmatpush1.bf16.msra.mxu0 0
    %1374 = vmatprep.subr.bf16.mxu0 0
    %1375 = vmatpush1.bf16.msra.mxu0 0
    %1376 = vmatprep.mubr.bf16.mxu0 0
    %1377 = vmatmul.mubr.bf16.gmra.mrb[0].mxu0 %v1342
    %v1378 = vpop.f32.mrb[0].mxu0
    %v1379 = vadd.f32 %v1327, %v1378
    %v1380 = vpop.f32.mrb[0].mxu0
    %v1381 = vpop.f32.mrb[0].mxu0
    %v1382 = vadd.f32 %v1327, %v1381
    %v1383 = vpop.f32.mrb[0].mxu0
    %1384 = vdwg.mxu0
    %v1385 = vmax.f32 %v1379, 0.0
    %v1386 = vmax.f32 %v1382, 0.0
    %v1387 = vpack.c.bf16 %v1386, %v1385
    %v1388 = vld [vmem:[#allocation18] sm:$0xf]
    %v1389 = vld [vmem:[#allocation18 + $0x4] sm:$0xf]
    %v1390 = vld [vmem:[#allocation18 + $0x8] sm:$0xf]
    %v1391 = vld [vmem:[#allocation18 + $0xc] sm:$0xf]
    %v1392 = vld [vmem:[#allocation18 + $0x10] sm:$0xf]
    %v1393 = vld [vmem:[#allocation18 + $0x14] sm:$0xf]
    %v1394 = vld [vmem:[#allocation18 + $0x18] sm:$0xf]
    %v1395 = vld [vmem:[#allocation18 + $0x1c] sm:$0xf]
    %v1396 = vld [vmem:[#allocation20] sm:$0x1]
    %v1398 = vlaneseq
    %v1399 = vshrl.u32 %v1398, 7
    %v1400 = vsub.s32 0, %v1399
    %v1401 = vrot.slane %v1396, %v1400
    %v1411 = vunpack.c.l.b16 %v1388
    %v1412 = vunpack.c.l.b16 %v1389
    %v1413 = vunpack.c.l.b16 %v1390
    %v1414 = vunpack.c.l.b16 %v1391
    %v1415 = vunpack.c.l.b16 %v1392
    %v1416 = vunpack.c.l.b16 %v1393
    %v1417 = vunpack.c.l.b16 %v1394
    %v1418 = vunpack.c.l.b16 %v1395
    %v1419 = vpack.c.b16 %v1412, %v1411
    %v1420 = vpack.c.b16 %v1414, %v1413
    %v1421 = vpack.c.b16 %v1416, %v1415
    %v1422 = vpack.c.b16 %v1418, %v1417
    %vm1427 = vcmask 523264
    %v1429 = vsel %vm1427, %v1387, 0
    %1431 = vmatprep.subr.bf16.mxu0 0
    %1432 = vmatpush1.bf16.msra.mxu0 %v1419
    %1433 = vmatprep.subr.bf16.mxu0 0
    %1434 = vmatpush1.bf16.msra.mxu0 %v1420
    %1435 = vmatprep.subr.bf16.mxu0 0
    %1436 = vmatpush1.bf16.msra.mxu0 %v1421
    %1437 = vmatprep.subr.bf16.mxu0 0
    %1438 = vmatpush1.bf16.msra.mxu0 %v1422
    %1439 = vmatprep.subr.bf16.mxu0 0
    %1440 = vmatpush1.bf16.msra.mxu0 0
    %1441 = vmatprep.subr.bf16.mxu0 0
    %1442 = vmatpush1.bf16.msra.mxu0 0
    %1443 = vmatprep.subr.bf16.mxu0 0
    %1444 = vmatpush1.bf16.msra.mxu0 0
    %1445 = vmatprep.subr.bf16.mxu0 0
    %1446 = vmatpush1.bf16.msra.mxu0 0
    %1447 = vmatprep.subr.bf16.mxu0 0
    %1448 = vmatpush1.bf16.msra.mxu0 0
    %1449 = vmatprep.subr.bf16.mxu0 0
    %1450 = vmatpush1.bf16.msra.mxu0 0
    %1451 = vmatprep.subr.bf16.mxu0 0
    %1452 = vmatpush1.bf16.msra.mxu0 0
    %1453 = vmatprep.subr.bf16.mxu0 0
    %1454 = vmatpush1.bf16.msra.mxu0 0
    %1455 = vmatprep.subr.bf16.mxu0 0
    %1456 = vmatpush1.bf16.msra.mxu0 0
    %1457 = vmatprep.subr.bf16.mxu0 0
    %1458 = vmatpush1.bf16.msra.mxu0 0
    %1459 = vmatprep.subr.bf16.mxu0 0
    %1460 = vmatpush1.bf16.msra.mxu0 0
    %1461 = vmatprep.subr.bf16.mxu0 0
    %1462 = vmatpush1.bf16.msra.mxu0 0
    %1463 = vmatprep.mubr.bf16.mxu0 0
    %1464 = vmatmul.mubr.bf16.gmra.mrb[0].mxu0 %v1429
    %v1465 = vpop.f32.mrb[0].mxu0
    %v1466 = vadd.f32 %v1401, %v1465
    %v1467 = vpop.f32.mrb[0].mxu0
    %v1468 = vpop.f32.mrb[0].mxu0
    %v1469 = vadd.f32 %v1401, %v1468
    %v1470 = vpop.f32.mrb[0].mxu0
    %1471 = vdwg.mxu0
    %v1472 = vadd.f32 %v1315, %v1466
    %v1473 = vadd.f32 %v1316, %v1469
    %v1474 = vld [vmem:[#allocation21] sm:$0x1]
    %v1475 = vld [vmem:[#allocation23] sm:$0x1]
    %v1476 = vsel %vm232, %v1472, 0.0
    %1477 = vadd.xlane.f32.xlu0 %v1476
    %v1478 = vpop.xlane.xlu0 %1477
    %v1479 = vsel %vm232, %v1473, 0.0
    %1480 = vadd.xlane.f32.xlu0 %v1479
    %v1481 = vpop.xlane.xlu0 %1480
    %v1482 = vmul.f32 %v1478, %v1280
    %v1483 = vmul.f32 %v1481, %v1280
    %v1484 = vsub.f32 %v1472, %v1482
    %v1485 = vsub.f32 %v1473, %v1483
    %v1486 = vmul.f32 %v1484, %v1484
    %v1487 = vmul.f32 %v1485, %v1485
    %v1488 = vsel %vm232, %v1486, 0.0
    %1489 = vadd.xlane.f32.xlu0 %v1488
    %v1490 = vpop.xlane.xlu0 %1489
    %v1491 = vsel %vm232, %v1487, 0.0
    %1492 = vadd.xlane.f32.xlu0 %v1491
    %v1493 = vpop.xlane.xlu0 %1492
    %v1494 = vmul.f32 %v1490, %v1280
    %v1495 = vmul.f32 %v1493, %v1280
    %v1496 = vadd.f32 %v1494, 1e-05
    %v1497 = vadd.f32 %v1495, 1e-05
    %v1498 = vrsqrt.pop %v1496
    %v1499 = vrsqrt.pop %v1497
    %v1500 = vmul.f32 %v1484, %v1498
    %v1501 = vmul.f32 %v1485, %v1499
    %v1503 = vlaneseq
    %v1504 = vshrl.u32 %v1503, 7
    %v1505 = vsub.s32 0, %v1504
    %v1506 = vrot.slane %v1474, %v1505
    %v1508 = vmul.f32 %v1500, %v1506
    %v1509 = vmul.f32 %v1501, %v1506
    %v1511 = vlaneseq
    %v1512 = vshrl.u32 %v1511, 7
    %v1513 = vsub.s32 0, %v1512
    %v1514 = vrot.slane %v1475, %v1513
    %v1516 = vadd.f32 %v1508, %v1514
    %v1517 = vadd.f32 %v1509, %v1514
    %v1518 = vpack.c.bf16 %v1516, %v1516
    %v1519 = vpack.c.bf16 %v1517, %v1517
    %vm1520 = vcmask 257024
    %1521 = vst.msk [vmem:[#allocation24] sm:$0xf] %vm1520, %v1518
    %1522 = vst.msk [vmem:[#allocation24 + $0x4] sm:$0xf] %vm1520, %v1519
    // Predicated region
    $region106: #{tpu_custom_call.1} parent=1 // pred_check
      _
    $region107: #{tpu_custom_call.1} parent=1 // pred_check_branch
      %1524 = sbr.rel (0) target = $region109
    $region108: #{tpu_custom_call.1} parent=1 // pred_region
      %s1526 = ssub.s32 128, 128
      %1527 = vsyncadd [#allocation5], %s1526
      %s1528 = sshll.u32 [#allocation24], 4
      %s1529 = int_to_ptr.vmem [resolvable:$true] %s1528
      %1534 = dma.vmem_to_hbm [thread:$0]  %s1529, 128, %s13, [#allocation5], 64, 64, 4
    $region109: #{tpu_custom_call.1} parent=1 // pred_fallthru
      _
    // Predicated region
    $region110: #{tpu_custom_call.1} parent=1 // pred_check
      _
    $region111: #{tpu_custom_call.1} parent=1 // pred_check_branch
      %1536 = sbr.rel (0) target = $region113
    $region112: #{tpu_custom_call.1} parent=1 // pred_region
      %1537 = dma.done [#allocation5], 128
    $region113: #{tpu_custom_call.1} parent=1 // pred_fallthru
      _
    %1538 = vsyncpa [#allocation4], 1
    %1539 = vsyncpa [#allocation7], 1
    %1540 = vsyncpa [#allocation10], 1
    %1541 = vsyncpa [#allocation13], 1
    %1542 = vsyncpa [#allocation16], 1
    %1543 = vsyncpa [#allocation19], 1
    %1544 = vsyncpa [#allocation22], 1
    %1545 = vsyncpa [#allocation5], 1

// kernel: tpu_custom_call.1
$region0: #{tpu_custom_call.1}
  #allocation0 [shape = 'u32[]', space=smem, size = 0x4, offset = 0x4, fixed_abs, tag = 'smem constant byte address 0x4 - core index']
  #allocation1 [shape = 'u32[144,128]{1,0:T(1,128)}', space=vmem, size = 0x12000, scoped, tag = 'internal scratch']
  #allocation2 [shape = 'f32[2,8,32]{2,1,0:T(8,128)}', space=vmem, size = 0x2000, scoped, tag = 'scratch operand']
  %s0 = inlined_call_operand.hbm [shape: f32[2,8,32], index: 0, kind: input, shape index: {}]
  %s1 = inlined_call_operand.hbm [shape: bf16[32,96], index: 1, kind: input, shape index: {}]
  %s2 = inlined_call_operand.hbm [shape: f32[1,96], index: 2, kind: input, shape index: {}]
  %s3 = inlined_call_operand.hbm [shape: bf16[32,32], index: 3, kind: input, shape index: {}]
  %s4 = inlined_call_operand.hbm [shape: f32[1,32], index: 4, kind: input, shape index: {}]
  %s5 = inlined_call_operand.hbm [shape: f32[1,32], index: 5, kind: input, shape index: {}]
  %s6 = inlined_call_operand.hbm [shape: f32[1,32], index: 6, kind: input, shape index: {}]
  %s7 = inlined_call_operand.hbm [shape: bf16[32,64], index: 7, kind: input, shape index: {}]
  %s8 = inlined_call_operand.hbm [shape: f32[1,64], index: 8, kind: input, shape index: {}]
  %s9 = inlined_call_operand.hbm [shape: bf16[64,32], index: 9, kind: input, shape index: {}]
  %s10 = inlined_call_operand.hbm [shape: f32[1,32], index: 10, kind: input, shape index: {}]
  %s11 = inlined_call_operand.hbm [shape: f32[1,32], index: 11, kind: input, shape index: {}]
  %s12 = inlined_call_operand.hbm [shape: f32[1,32], index: 12, kind: input, shape index: {}]
  %s13 = inlined_call_operand.hbm [shape: bf16[2,8,32], index: 13, kind: output, shape index: {}]
  %s14 = sld [smem:[#allocation0]]
  $region114: #{tpu_custom_call.1} parent=0
    _
  %s16 = ssub.s32 1, %s14
  %s17 = scalar_select 0, %s16, %s14
  $region1: #{tpu_custom_call.1} parent=0
    #allocation3 [shape = 'u8[8192]{0}', space=vmem, size = 0x2000, scoped, tag = 'input window, operand 0, single buffered']
    #allocation4 [shape = 's32[1]{0}', space=sflag, size = 0x4, scoped, tag = 'scoped memory for tpu_custom_call.1']
    #allocation5 [shape = 's32[1]{0}', space=sflag, size = 0x4, scoped, tag = 'scoped memory for tpu_custom_call.1']
    #allocation6 [shape = 'u8[8192]{0}', space=vmem, size = 0x2000, scoped, tag = 'input window, operand 1, single buffered']
    #allocation7 [shape = 's32[1]{0}', space=sflag, size = 0x4, scoped, tag = 'scoped memory for tpu_custom_call.1']
    #allocation8 [shape = 'u8[512]{0}', space=vmem, size = 0x400, scoped, tag = 'input window, operand 2, single buffered']
    #allocation9 [shape = 'u8[8192]{0}', space=vmem, size = 0x2000, scoped, tag = 'input window, operand 3, single buffered']
    #allocation10 [shape = 's32[1]{0}', space=sflag, size = 0x4, scoped, tag = 'scoped memory for tpu_custom_call.1']
    #allocation11 [shape = 'u8[512]{0}', space=vmem, size = 0x400, scoped, tag = 'input window, operand 4, single buffered']
    #allocation12 [shape = 'u8[512]{0}', space=vmem, size = 0x400, scoped, tag = 'input window, operand 5, single buffered']
    #allocation13 [shape = 's32[1]{0}', space=sflag, size = 0x4, scoped, tag = 'scoped memory for tpu_custom_call.1']
    #allocation14 [shape = 'u8[512]{0}', space=vmem, size = 0x400, scoped, tag = 'input window, operand 6, single buffered']
    #allocation15 [shape = 'u8[8192]{0}', space=vmem, size = 0x2000, scoped, tag = 'input window, operand 7, single buffered']
    #allocation16 [shape = 's32[1]{0}', space=sflag, size = 0x4, scoped, tag = 'scoped memory for tpu_custom_call.1']
    #allocation17 [shape = 'u8[512]{0}', space=vmem, size = 0x400, scoped, tag = 'input window, operand 8, single buffered']
    #allocation18 [shape = 'u8[16384]{0}', space=vmem, size = 0x4000, scoped, tag = 'input window, operand 9, single buffered']
    #allocation19 [shape = 's32[1]{0}', space=sflag, size = 0x4, scoped, tag = 'scoped memory for tpu_custom_call.1']
    #allocation20 [shape = 'u8[512]{0}', space=vmem, size = 0x400, scoped, tag = 'input window, operand 10, single buffered']
    #allocation21 [shape = 'u8[512]{0}', space=vmem, size = 0x400, scoped, tag = 'input window, operand 11, single buffered']
    #allocation22 [shape = 's32[1]{0}', space=sflag, size = 0x4, scoped, tag = 'scoped memory for tpu_custom_call.1']
    #allocation23 [shape = 'u8[512]{0}', space=vmem, size = 0x400, scoped, tag = 'input window, operand 12, single buffered']
    #allocation24 [shape = 'u8[4096]{0}', space=vmem, size = 0x1000, scoped, tag = 'output window, operand 0, single buffered']
    %18 = vsyncpa [#allocation4], 0
    %19 = vsyncpa [#allocation7], 0
    %20 = vsyncpa [#allocation10], 0
    %21 = vsyncpa [#allocation13], 0
    %22 = vsyncpa [#allocation16], 0
    %23 = vsyncpa [#allocation19], 0
    %24 = vsyncpa [#allocation22], 0
    %25 = vsyncpa [#allocation5], 0
    // Predicated region
    $region2: #{tpu_custom_call.1} parent=1 // pred_check
      _
    $region3: #{tpu_custom_call.1} parent=1 // pred_check_branch
      %27 = sbr.rel (0) target = $region5
    $region4: #{tpu_custom_call.1} parent=1 // pred_region
      %s29 = ssub.s32 256, 256
      %30 = vsyncadd [#allocation4], %s29
      %s31 = sshll.u32 [#allocation3], 4
      %s32 = int_to_ptr.vmem [resolvable:$true] %s31
      %37 = dma.hbm_to_vmem [thread:$0]  %s0, 256, %s32, [#allocation4], 128, 128, 8
    $region5: #{tpu_custom_call.1} parent=1 // pred_fallthru
      _
    // Predicated region
    $region6: #{tpu_custom_call.1} parent=1 // pred_check
      _
    $region7: #{tpu_custom_call.1} parent=1 // pred_check_branch
      %39 = sbr.rel (0) target = $region9
    $region8: #{tpu_custom_call.1} parent=1 // pred_region
      %s41 = ssub.s32 256, 256
      %42 = vsyncadd [#allocation7], %s41
      %s43 = sshll.u32 [#allocation6], 4
      %s44 = int_to_ptr.vmem [resolvable:$true] %s43
      %49 = dma.hbm_to_vmem [thread:$0]  %s1, 256, %s44, [#allocation7], 64, 64, 4
    $region9: #{tpu_custom_call.1} parent=1 // pred_fallthru
      _
    // Predicated region
    $region10: #{tpu_custom_call.1} parent=1 // pred_check
      _
    $region11: #{tpu_custom_call.1} parent=1 // pred_check_branch
      %51 = sbr.rel (0) target = $region13
    $region12: #{tpu_custom_call.1} parent=1 // pred_region
      %s53 = ssub.s32 16, 16
      %54 = vsyncadd [#allocation7], %s53
      %s56 = sshll.u32 [#allocation8], 4
      %s57 = int_to_ptr.vmem [resolvable:$true] %s56
      %59 = dma.hbm_to_vmem [thread:$0]  %s2, 16, %s57, [#allocation7]
    $region13: #{tpu_custom_call.1} parent=1 // pred_fallthru
      _
    // Predicated region
    $region14: #{tpu_custom_call.1} parent=1 // pred_check
      _
    $region15: #{tpu_custom_call.1} parent=1 // pred_check_branch
      %61 = sbr.rel (0) target = $region17
    $region16: #{tpu_custom_call.1} parent=1 // pred_region
      %s63 = ssub.s32 256, 256
      %64 = vsyncadd [#allocation10], %s63
      %s65 = sshll.u32 [#allocation9], 4
      %s66 = int_to_ptr.vmem [resolvable:$true] %s65
      %71 = dma.hbm_to_vmem [thread:$0]  %s3, 256, %s66, [#allocation10], 64, 64, 4
    $region17: #{tpu_custom_call.1} parent=1 // pred_fallthru
      _
    // Predicated region
    $region18: #{tpu_custom_call.1} parent=1 // pred_check
      _
    $region19: #{tpu_custom_call.1} parent=1 // pred_check_branch
      %73 = sbr.rel (0) target = $region21
    $region20: #{tpu_custom_call.1} parent=1 // pred_region
      %s75 = ssub.s32 16, 16
      %76 = vsyncadd [#allocation10], %s75
      %s78 = sshll.u32 [#allocation11], 4
      %s79 = int_to_ptr.vmem [resolvable:$true] %s78
      %81 = dma.hbm_to_vmem [thread:$0]  %s4, 16, %s79, [#allocation10]
    $region21: #{tpu_custom_call.1} parent=1 // pred_fallthru
      _
    // Predicated region
    $region22: #{tpu_custom_call.1} parent=1 // pred_check
      _
    $region23: #{tpu_custom_call.1} parent=1 // pred_check_branch
      %83 = sbr.rel (0) target = $region25
    $region24: #{tpu_custom_call.1} parent=1 // pred_region
      %s85 = ssub.s32 16, 16
      %86 = vsyncadd [#allocation13], %s85
      %s88 = sshll.u32 [#allocation12], 4
      %s89 = int_to_ptr.vmem [resolvable:$true] %s88
      %91 = dma.hbm_to_vmem [thread:$0]  %s5, 16, %s89, [#allocation13]
    $region25: #{tpu_custom_call.1} parent=1 // pred_fallthru
      _
    // Predicated region
    $region26: #{tpu_custom_call.1} parent=1 // pred_check
      _
    $region27: #{tpu_custom_call.1} parent=1 // pred_check_branch
      %93 = sbr.rel (0) target = $region29
    $region28: #{tpu_custom_call.1} parent=1 // pred_region
      %s95 = ssub.s32 16, 16
      %96 = vsyncadd [#allocation13], %s95
      %s98 = sshll.u32 [#allocation14], 4
      %s99 = int_to_ptr.vmem [resolvable:$true] %s98
      %101 = dma.hbm_to_vmem [thread:$0]  %s6, 16, %s99, [#allocation13]
    $region29: #{tpu_custom_call.1} parent=1 // pred_fallthru
      _
    // Predicated region
    $region30: #{tpu_custom_call.1} parent=1 // pred_check
      _
    $region31: #{tpu_custom_call.1} parent=1 // pred_check_branch
      %103 = sbr.rel (0) target = $region33
    $region32: #{tpu_custom_call.1} parent=1 // pred_region
      %s105 = ssub.s32 256, 256
      %106 = vsyncadd [#allocation16], %s105
      %s107 = sshll.u32 [#allocation15], 4
      %s108 = int_to_ptr.vmem [resolvable:$true] %s107
      %113 = dma.hbm_to_vmem [thread:$0]  %s7, 256, %s108, [#allocation16], 64, 64, 4
    $region33: #{tpu_custom_call.1} parent=1 // pred_fallthru
      _
    // Predicated region
    $region34: #{tpu_custom_call.1} parent=1 // pred_check
      _
    $region35: #{tpu_custom_call.1} parent=1 // pred_check_branch
      %115 = sbr.rel (0) target = $region37
    $region36: #{tpu_custom_call.1} parent=1 // pred_region
      %s117 = ssub.s32 16, 16
      %118 = vsyncadd [#allocation16], %s117
      %s120 = sshll.u32 [#allocation17], 4
      %s121 = int_to_ptr.vmem [resolvable:$true] %s120
      %123 = dma.hbm_to_vmem [thread:$0]  %s8, 16, %s121, [#allocation16]
    $region37: #{tpu_custom_call.1} parent=1 // pred_fallthru
      _
    // Predicated region
    $region38: #{tpu_custom_call.1} parent=1 // pred_check
      _
    $region39: #{tpu_custom_call.1} parent=1 // pred_check_branch
      %125 = sbr.rel (0) target = $region41
    $region40: #{tpu_custom_call.1} parent=1 // pred_region
      %s127 = ssub.s32 512, 512
      %128 = vsyncadd [#allocation19], %s127
      %s129 = sshll.u32 [#allocation18], 4
      %s130 = int_to_ptr.vmem [resolvable:$true] %s129
      %135 = dma.hbm_to_vmem [thread:$0]  %s9, 512, %s130, [#allocation19], 64, 64, 4
    $region41: #{tpu_custom_call.1} parent=1 // pred_fallthru
      _
    // Predicated region
    $region42: #{tpu_custom_call.1} parent=1 // pred_check
      _
    $region43: #{tpu_custom_call.1} parent=1 // pred_check_branch
      %137 = sbr.rel (0) target = $region45
    $region44: #{tpu_custom_call.1} parent=1 // pred_region
      %s139 = ssub.s32 16, 16
      %140 = vsyncadd [#allocation19], %s139
      %s142 = sshll.u32 [#allocation20], 4
      %s143 = int_to_ptr.vmem [resolvable:$true] %s142
      %145 = dma.hbm_to_vmem [thread:$0]  %s10, 16, %s143, [#allocation19]
    $region45: #{tpu_custom_call.1} parent=1 // pred_fallthru
      _
    // Predicated region
    $region46: #{tpu_custom_call.1} parent=1 // pred_check
      _
    $region47: #{tpu_custom_call.1} parent=1 // pred_check_branch
      %147 = sbr.rel (0) target = $region49
    $region48: #{tpu_custom_call.1} parent=1 // pred_region
      %s149 = ssub.s32 16, 16
      %150 = vsyncadd [#allocation22], %s149
      %s152 = sshll.u32 [#allocation21], 4
      %s153 = int_to_ptr.vmem [resolvable:$true] %s152
      %155 = dma.hbm_to_vmem [thread:$0]  %s11, 16, %s153, [#allocation22]
    $region49: #{tpu_custom_call.1} parent=1 // pred_fallthru
      _
    // Predicated region
    $region50: #{tpu_custom_call.1} parent=1 // pred_check
      _
    $region51: #{tpu_custom_call.1} parent=1 // pred_check_branch
      %157 = sbr.rel (0) target = $region53
    $region52: #{tpu_custom_call.1} parent=1 // pred_region
      %s159 = ssub.s32 16, 16
      %160 = vsyncadd [#allocation22], %s159
      %s162 = sshll.u32 [#allocation23], 4
      %s163 = int_to_ptr.vmem [resolvable:$true] %s162
      %165 = dma.hbm_to_vmem [thread:$0]  %s12, 16, %s163, [#allocation22]
    $region53: #{tpu_custom_call.1} parent=1 // pred_fallthru
      _
    // Predicated region
    $region54: #{tpu_custom_call.1} parent=1 // pred_check
      _
    $region55: #{tpu_custom_call.1} parent=1 // pred_check_branch
      %167 = sbr.rel (0) target = $region57
    $region56: #{tpu_custom_call.1} parent=1 // pred_region
      %168 = dma.done [#allocation4], 256
    $region57: #{tpu_custom_call.1} parent=1 // pred_fallthru
      _
    // Predicated region
    $region58: #{tpu_custom_call.1} parent=1 // pred_check
      _
    $region59: #{tpu_custom_call.1} parent=1 // pred_check_branch
      %170 = sbr.rel (0) target = $region61
    $region60: #{tpu_custom_call.1} parent=1 // pred_region
      %171 = dma.done [#allocation7], 256
    $region61: #{tpu_custom_call.1} parent=1 // pred_fallthru
      _
    // Predicated region
    $region62: #{tpu_custom_call.1} parent=1 // pred_check
      _
    $region63: #{tpu_custom_call.1} parent=1 // pred_check_branch
      %173 = sbr.rel (0) target = $region65
    $region64: #{tpu_custom_call.1} parent=1 // pred_region
      %174 = dma.done [#allocation7], 16
    $region65: #{tpu_custom_call.1} parent=1 // pred_fallthru
      _
    // Predicated region
    $region66: #{tpu_custom_call.1} parent=1 // pred_check
      _
    $region67: #{tpu_custom_call.1} parent=1 // pred_check_branch
      %176 = sbr.rel (0) target = $region69
    $region68: #{tpu_custom_call.1} parent=1 // pred_region
      %177 = dma.done [#allocation10], 256
    $region69: #{tpu_custom_call.1} parent=1 // pred_fallthru
      _
    // Predicated region
    $region70: #{tpu_custom_call.1} parent=1 // pred_check
      _
    $region71: #{tpu_custom_call.1} parent=1 // pred_check_branch
      %179 = sbr.rel (0) target = $region73
    $region72: #{tpu_custom_call.1} parent=1 // pred_region
      %180 = dma.done [#allocation10], 16
    $region73: #{tpu_custom_call.1} parent=1 // pred_fallthru
      _
    // Predicated region
    $region74: #{tpu_custom_call.1} parent=1 // pred_check
      _
    $region75: #{tpu_custom_call.1} parent=1 // pred_check_branch
      %182 = sbr.rel (0) target = $region77
    $region76: #{tpu_custom_call.1} parent=1 // pred_region
      %183 = dma.done [#allocation13], 16
    $region77: #{tpu_custom_call.1} parent=1 // pred_fallthru
      _
    // Predicated region
    $region78: #{tpu_custom_call.1} parent=1 // pred_check
      _
    $region79: #{tpu_custom_call.1} parent=1 // pred_check_branch
      %185 = sbr.rel (0) target = $region81
    $region80: #{tpu_custom_call.1} parent=1 // pred_region
      %186 = dma.done [#allocation13], 16
    $region81: #{tpu_custom_call.1} parent=1 // pred_fallthru
      _
    // Predicated region
    $region82: #{tpu_custom_call.1} parent=1 // pred_check
      _
    $region83: #{tpu_custom_call.1} parent=1 // pred_check_branch
      %188 = sbr.rel (0) target = $region85
    $region84: #{tpu_custom_call.1} parent=1 // pred_region
      %189 = dma.done [#allocation16], 256
    $region85: #{tpu_custom_call.1} parent=1 // pred_fallthru
      _
    // Predicated region
    $region86: #{tpu_custom_call.1} parent=1 // pred_check
      _
    $region87: #{tpu_custom_call.1} parent=1 // pred_check_branch
      %191 = sbr.rel (0) target = $region89
    $region88: #{tpu_custom_call.1} parent=1 // pred_region
      %192 = dma.done [#allocation16], 16
    $region89: #{tpu_custom_call.1} parent=1 // pred_fallthru
      _
    // Predicated region
    $region90: #{tpu_custom_call.1} parent=1 // pred_check
      _
    $region91: #{tpu_custom_call.1} parent=1 // pred_check_branch
      %194 = sbr.rel (0) target = $region93
    $region92: #{tpu_custom_call.1} parent=1 // pred_region
      %195 = dma.done [#allocation19], 512
    $region93: #{tpu_custom_call.1} parent=1 // pred_fallthru
      _
    // Predicated region
    $region94: #{tpu_custom_call.1} parent=1 // pred_check
      _
    $region95: #{tpu_custom_call.1} parent=1 // pred_check_branch
      %197 = sbr.rel (0) target = $region97
    $region96: #{tpu_custom_call.1} parent=1 // pred_region
      %198 = dma.done [#allocation19], 16
    $region97: #{tpu_custom_call.1} parent=1 // pred_fallthru
      _
    // Predicated region
    $region98: #{tpu_custom_call.1} parent=1 // pred_check
      _
    $region99: #{tpu_custom_call.1} parent=1 // pred_check_branch
      %200 = sbr.rel (0) target = $region101
    $region100: #{tpu_custom_call.1} parent=1 // pred_region
      %201 = dma.done [#allocation22], 16
    $region101: #{tpu_custom_call.1} parent=1 // pred_fallthru
      _
    // Predicated region
    $region102: #{tpu_custom_call.1} parent=1 // pred_check
      _
    $region103: #{tpu_custom_call.1} parent=1 // pred_check_branch
      %203 = sbr.rel (0) target = $region105
    $region104: #{tpu_custom_call.1} parent=1 // pred_region
      %204 = dma.done [#allocation22], 16
    $region105: #{tpu_custom_call.1} parent=1 // pred_fallthru
      _
    %v206 = vld [vmem:[#allocation3] sm:$0xff]
    %v207 = vld [vmem:[#allocation3 + $0x8] sm:$0xff]
    %v208 = vpack.c.bf16 %v207, %v206
    %v209 = vld [vmem:[#allocation6] sm:$0xf]
    %v210 = vld [vmem:[#allocation6 + $0x4] sm:$0xf]
    %v211 = vld [vmem:[#allocation6 + $0x8] sm:$0xf]
    %v212 = vld [vmem:[#allocation6 + $0xc] sm:$0xf]
    %v213 = vld [vmem:[#allocation8] sm:$0x1]
    %v215 = vlaneseq
    %v216 = vshrl.u32 %v215, 7
    %v217 = vsub.s32 0, %v216
    %v218 = vrot.slane %v213, %v217
    %v224 = vunpack.c.l.b16 %v209
    %v225 = vunpack.c.l.b16 %v210
    %v226 = vunpack.c.l.b16 %v211
    %v227 = vunpack.c.l.b16 %v212
    %v228 = vpack.c.b16 %v225, %v224
    %v229 = vpack.c.b16 %v227, %v226
    %vm232 = vcmask 261120
    %v234 = vsel %vm232, %v208, 0
    %236 = vmatprep.subr.bf16.mxu0 0
    %237 = vmatpush1.bf16.msra.mxu0 %v228
    %238 = vmatprep.subr.bf16.mxu0 0
    %239 = vmatpush1.bf16.msra.mxu0 %v229
    %240 = vmatprep.subr.bf16.mxu0 0
    %241 = vmatpush1.bf16.msra.mxu0 0
    %242 = vmatprep.subr.bf16.mxu0 0
    %243 = vmatpush1.bf16.msra.mxu0 0
    %244 = vmatprep.subr.bf16.mxu0 0
    %245 = vmatpush1.bf16.msra.mxu0 0
    %246 = vmatprep.subr.bf16.mxu0 0
    %247 = vmatpush1.bf16.msra.mxu0 0
    %248 = vmatprep.subr.bf16.mxu0 0
    %249 = vmatpush1.bf16.msra.mxu0 0
    %250 = vmatprep.subr.bf16.mxu0 0
    %251 = vmatpush1.bf16.msra.mxu0 0
    %252 = vmatprep.subr.bf16.mxu0 0
    %253 = vmatpush1.bf16.msra.mxu0 0
    %254 = vmatprep.subr.bf16.mxu0 0
    %255 = vmatpush1.bf16.msra.mxu0 0
    %256 = vmatprep.subr.bf16.mxu0 0
    %257 = vmatpush1.bf16.msra.mxu0 0
    %258 = vmatprep.subr.bf16.mxu0 0
    %259 = vmatpush1.bf16.msra.mxu0 0
    %260 = vmatprep.subr.bf16.mxu0 0
    %261 = vmatpush1.bf16.msra.mxu0 0
    %262 = vmatprep.subr.bf16.mxu0 0
    %263 = vmatpush1.bf16.msra.mxu0 0
    %264 = vmatprep.subr.bf16.mxu0 0
    %265 = vmatpush1.bf16.msra.mxu0 0
    %266 = vmatprep.subr.bf16.mxu0 0
    %267 = vmatpush1.bf16.msra.mxu0 0
    %268 = vmatprep.mubr.bf16.mxu0 0
    %269 = vmatmul.mubr.bf16.gmra.mrb[0].mxu0 %v234
    %v270 = vpop.f32.mrb[0].mxu0
    %v271 = vadd.f32 %v218, %v270
    %v272 = vpop.f32.mrb[0].mxu0
    %v273 = vpop.f32.mrb[0].mxu0
    %v274 = vadd.f32 %v218, %v273
    %v275 = vpop.f32.mrb[0].mxu0
    %276 = vdwg.mxu0
    %v277 = vmul.f32 %v271, 0.35355338
    %v278 = vmul.f32 %v274, 0.35355338
    %v279 = vpack.c.bf16 %v277, %v277
    %v280 = vpack.c.bf16 %v278, %v278
    %v281 = vpack.c.bf16 %v271, %v271
    %v282 = vpack.c.bf16 %v274, %v274
    %284 = vrot.lane.b32.xlu0 %v281, 96
    %v285 = vpop.permute.xlu0 %284
    %vm286 = vcmask 64512
    %v288 = vsel %vm286, %v279, 0
    %v291 = vsel %vm286, %v285, 0
    %293 = vmatprep.subr.bf16.mxu0 0
    %294 = vmatpush1.bf16.xpose.msra.mxu0 %v291
    %295 = vmatprep.subr.bf16.mxu0 0
    %296 = vmatpush1.bf16.xpose.msra.mxu0 0
    %297 = vmatprep.subr.bf16.mxu0 0
    %298 = vmatpush1.bf16.xpose.msra.mxu0 0
    %299 = vmatprep.subr.bf16.mxu0 0
    %300 = vmatpush1.bf16.xpose.msra.mxu0 0
    %301 = vmatprep.subr.bf16.mxu0 0
    %302 = vmatpush1.bf16.xpose.msra.mxu0 0
    %303 = vmatprep.subr.bf16.mxu0 0
    %304 = vmatpush1.bf16.xpose.msra.mxu0 0
    %305 = vmatprep.subr.bf16.mxu0 0
    %306 = vmatpush1.bf16.xpose.msra.mxu0 0
    %307 = vmatprep.subr.bf16.mxu0 0
    %308 = vmatpush1.bf16.xpose.msra.mxu0 0
    %309 = vmatprep.subr.bf16.mxu0 0
    %310 = vmatpush1.bf16.xpose.msra.mxu0 0
    %311 = vmatprep.subr.bf16.mxu0 0
    %312 = vmatpush1.bf16.xpose.msra.mxu0 0
    %313 = vmatprep.subr.bf16.mxu0 0
    %314 = vmatpush1.bf16.xpose.msra.mxu0 0
    %315 = vmatprep.subr.bf16.mxu0 0
    %316 = vmatpush1.bf16.xpose.msra.mxu0 0
    %317 = vmatprep.subr.bf16.mxu0 0
    %318 = vmatpush1.bf16.xpose.msra.mxu0 0
    %319 = vmatprep.subr.bf16.mxu0 0
    %320 = vmatpush1.bf16.xpose.msra.mxu0 0
    %321 = vmatprep.subr.bf16.mxu0 0
    %322 = vmatpush1.bf16.xpose.msra.mxu0 0
    %323 = vmatprep.subr.bf16.mxu0 0
    %324 = vmatpush1.bf16.xpose.msra.mxu0 0
    %325 = vmatprep.mubr.bf16.mxu0 0
    %326 = vmatmul.mubr.bf16.gmra.mrb[0].mxu0 %v288
    %v327 = vpop.f32.mrb[0].mxu0
    %v328 = vadd.f32 0.0, %v327
    %v329 = vpop.f32.mrb[0].mxu0
    %v330 = vpop.f32.mrb[0].mxu0
    %v331 = vpop.f32.mrb[0].mxu0
    %332 = vdwg.mxu0
    %334 = vrot.lane.b32.xlu0 %v282, 96
    %v335 = vpop.permute.xlu0 %334
    %v337 = vsel %vm286, %v280, 0
    %v340 = vsel %vm286, %v335, 0
    %342 = vmatprep.subr.bf16.mxu0 0
    %343 = vmatpush1.bf16.xpose.msra.mxu0 %v340
    %344 = vmatprep.subr.bf16.mxu0 0
    %345 = vmatpush1.bf16.xpose.msra.mxu0 0
    %346 = vmatprep.subr.bf16.mxu0 0
    %347 = vmatpush1.bf16.xpose.msra.mxu0 0
    %348 = vmatprep.subr.bf16.mxu0 0
    %349 = vmatpush1.bf16.xpose.msra.mxu0 0
    %350 = vmatprep.subr.bf16.mxu0 0
    %351 = vmatpush1.bf16.xpose.msra.mxu0 0
    %352 = vmatprep.subr.bf16.mxu0 0
    %353 = vmatpush1.bf16.xpose.msra.mxu0 0
    %354 = vmatprep.subr.bf16.mxu0 0
    %355 = vmatpush1.bf16.xpose.msra.mxu0 0
    %356 = vmatprep.subr.bf16.mxu0 0
    %357 = vmatpush1.bf16.xpose.msra.mxu0 0
    %358 = vmatprep.subr.bf16.mxu0 0
    %359 = vmatpush1.bf16.xpose.msra.mxu0 0
    %360 = vmatprep.subr.bf16.mxu0 0
    %361 = vmatpush1.bf16.xpose.msra.mxu0 0
    %362 = vmatprep.subr.bf16.mxu0 0
    %363 = vmatpush1.bf16.xpose.msra.mxu0 0
    %364 = vmatprep.subr.bf16.mxu0 0
    %365 = vmatpush1.bf16.xpose.msra.mxu0 0
    %366 = vmatprep.subr.bf16.mxu0 0
    %367 = vmatpush1.bf16.xpose.msra.mxu0 0
    %368 = vmatprep.subr.bf16.mxu0 0
    %369 = vmatpush1.bf16.xpose.msra.mxu0 0
    %370 = vmatprep.subr.bf16.mxu0 0
    %371 = vmatpush1.bf16.xpose.msra.mxu0 0
    %372 = vmatprep.subr.bf16.mxu0 0
    %373 = vmatpush1.bf16.xpose.msra.mxu0 0
    %374 = vmatprep.mubr.bf16.mxu0 0
    %375 = vmatmul.mubr.bf16.gmra.mrb[0].mxu0 %v337
    %v376 = vpop.f32.mrb[0].mxu0
    %v377 = vadd.f32 0.0, %v376
    %v378 = vpop.f32.mrb[0].mxu0
    %v379 = vpop.f32.mrb[0].mxu0
    %v380 = vpop.f32.mrb[0].mxu0
    %381 = vdwg.mxu0
    %v382 = vsel %vm286, %v328, -inf
    %383 = vmax.xlane.f32.xlu0 %v382
    %v384 = vpop.xlane.xlu0 %383
    %v385 = vsel %vm286, %v377, -inf
    %386 = vmax.xlane.f32.xlu0 %v385
    %v387 = vpop.xlane.xlu0 %386
    %v388 = vsub.f32 %v328, %v384
    %v389 = vsub.f32 %v377, %v387
    %v390 = vmul.f32 %v388, 1.442695
    %v391 = vpow.pop %v390
    %v392 = vmul.f32 %v389, 1.442695
    %v393 = vpow.pop %v392
    %v394 = vsel %vm286, %v391, 0.0
    %395 = vadd.xlane.f32.xlu0 %v394
    %v396 = vpop.xlane.xlu0 %395
    %v397 = vsel %vm286, %v393, 0.0
    %398 = vadd.xlane.f32.xlu0 %v397
    %v399 = vpop.xlane.xlu0 %398
    %v400 = vrcp.pop %v396
    %v401 = vrcp.pop %v399
    %v402 = vmul.f32 %v391, %v400
    %v403 = vmul.f32 %v393, %v401
    %v404 = vpack.c.bf16 %v402, %v402
    %v405 = vpack.c.bf16 %v403, %v403
    %406 = vrot.lane.b32.xlu0 %v281, 64
    %v407 = vpop.permute.xlu0 %406
    %v409 = vsel %vm286, %v404, 0
    %vm411 = vcmask 1043456
    %v413 = vsel %vm411, %v407, 0
    %415 = vmatprep.subr.bf16.mxu0 0
    %416 = vmatpush1.bf16.msra.mxu0 %v413
    %417 = vmatprep.subr.bf16.mxu0 0
    %418 = vmatpush1.bf16.msra.mxu0 0
    %419 = vmatprep.subr.bf16.mxu0 0
    %420 = vmatpush1.bf16.msra.mxu0 0
    %421 = vmatprep.subr.bf16.mxu0 0
    %422 = vmatpush1.bf16.msra.mxu0 0
    %423 = vmatprep.subr.bf16.mxu0 0
    %424 = vmatpush1.bf16.msra.mxu0 0
    %425 = vmatprep.subr.bf16.mxu0 0
    %426 = vmatpush1.bf16.msra.mxu0 0
    %427 = vmatprep.subr.bf16.mxu0 0
    %428 = vmatpush1.bf16.msra.mxu0 0
    %429 = vmatprep.subr.bf16.mxu0 0
    %430 = vmatpush1.bf16.msra.mxu0 0
    %431 = vmatprep.subr.bf16.mxu0 0
    %432 = vmatpush1.bf16.msra.mxu0 0
    %433 = vmatprep.subr.bf16.mxu0 0
    %434 = vmatpush1.bf16.msra.mxu0 0
    %435 = vmatprep.subr.bf16.mxu0 0
    %436 = vmatpush1.bf16.msra.mxu0 0
    %437 = vmatprep.subr.bf16.mxu0 0
    %438 = vmatpush1.bf16.msra.mxu0 0
    %439 = vmatprep.subr.bf16.mxu0 0
    %440 = vmatpush1.bf16.msra.mxu0 0
    %441 = vmatprep.subr.bf16.mxu0 0
    %442 = vmatpush1.bf16.msra.mxu0 0
    %443 = vmatprep.subr.bf16.mxu0 0
    %444 = vmatpush1.bf16.msra.mxu0 0
    %445 = vmatprep.subr.bf16.mxu0 0
    %446 = vmatpush1.bf16.msra.mxu0 0
    %447 = vmatprep.mubr.bf16.mxu0 0
    %448 = vmatmul.mubr.bf16.gmra.mrb[0].mxu0 %v409
    %v449 = vpop.f32.mrb[0].mxu0
    %v450 = vadd.f32 0.0, %v449
    %v451 = vpop.f32.mrb[0].mxu0
    %v452 = vpop.f32.mrb[0].mxu0
    %v453 = vpop.f32.mrb[0].mxu0
    %454 = vdwg.mxu0
    %455 = vrot.lane.b32.xlu0 %v282, 64
    %v456 = vpop.permute.xlu0 %455
    %v458 = vsel %vm286, %v405, 0
    %v461 = vsel %vm411, %v456, 0
    %463 = vmatprep.subr.bf16.mxu0 0
    %464 = vmatpush1.bf16.msra.mxu0 %v461
    %465 = vmatprep.subr.bf16.mxu0 0
    %466 = vmatpush1.bf16.msra.mxu0 0
    %467 = vmatprep.subr.bf16.mxu0 0
    %468 = vmatpush1.bf16.msra.mxu0 0
    %469 = vmatprep.subr.bf16.mxu0 0
    %470 = vmatpush1.bf16.msra.mxu0 0
    %471 = vmatprep.subr.bf16.mxu0 0
    %472 = vmatpush1.bf16.msra.mxu0 0
    %473 = vmatprep.subr.bf16.mxu0 0
    %474 = vmatpush1.bf16.msra.mxu0 0
    %475 = vmatprep.subr.bf16.mxu0 0
    %476 = vmatpush1.bf16.msra.mxu0 0
    %477 = vmatprep.subr.bf16.mxu0 0
    %478 = vmatpush1.bf16.msra.mxu0 0
    %479 = vmatprep.subr.bf16.mxu0 0
    %480 = vmatpush1.bf16.msra.mxu0 0
    %481 = vmatprep.subr.bf16.mxu0 0
    %482 = vmatpush1.bf16.msra.mxu0 0
    %483 = vmatprep.subr.bf16.mxu0 0
    %484 = vmatpush1.bf16.msra.mxu0 0
    %485 = vmatprep.subr.bf16.mxu0 0
    %486 = vmatpush1.bf16.msra.mxu0 0
    %487 = vmatprep.subr.bf16.mxu0 0
    %488 = vmatpush1.bf16.msra.mxu0 0
    %489 = vmatprep.subr.bf16.mxu0 0
    %490 = vmatpush1.bf16.msra.mxu0 0
    %491 = vmatprep.subr.bf16.mxu0 0
    %492 = vmatpush1.bf16.msra.mxu0 0
    %493 = vmatprep.subr.bf16.mxu0 0
    %494 = vmatpush1.bf16.msra.mxu0 0
    %495 = vmatprep.mubr.bf16.mxu0 0
    %496 = vmatmul.mubr.bf16.gmra.mrb[0].mxu0 %v458
    %v497 = vpop.f32.mrb[0].mxu0
    %v498 = vadd.f32 0.0, %v497
    %v499 = vpop.f32.mrb[0].mxu0
    %v500 = vpop.f32.mrb[0].mxu0
    %v501 = vpop.f32.mrb[0].mxu0
    %502 = vdwg.mxu0
    %503 = vst.msk [vmem:[#allocation2] sm:$0xff] %vm286, %v450
    %504 = vst.msk [vmem:[#allocation2 + $0x8] sm:$0xff] %vm286, %v498
    %506 = vrot.lane.b32.xlu0 %v279, 120
    %v507 = vpop.permute.xlu0 %506
    %508 = vrot.lane.b32.xlu0 %v281, 88
    %v509 = vpop.permute.xlu0 %508
    %v511 = vsel %vm286, %v507, 0
    %v514 = vsel %vm286, %v509, 0
    %516 = vmatprep.subr.bf16.mxu0 0
    %517 = vmatpush1.bf16.xpose.msra.mxu0 %v514
    %518 = vmatprep.subr.bf16.mxu0 0
    %519 = vmatpush1.bf16.xpose.msra.mxu0 0
    %520 = vmatprep.subr.bf16.mxu0 0
    %521 = vmatpush1.bf16.xpose.msra.mxu0 0
    %522 = vmatprep.subr.bf16.mxu0 0
    %523 = vmatpush1.bf16.xpose.msra.mxu0 0
    %524 = vmatprep.subr.bf16.mxu0 0
    %525 = vmatpush1.bf16.xpose.msra.mxu0 0
    %526 = vmatprep.subr.bf16.mxu0 0
    %527 = vmatpush1.bf16.xpose.msra.mxu0 0
    %528 = vmatprep.subr.bf16.mxu0 0
    %529 = vmatpush1.bf16.xpose.msra.mxu0 0
    %530 = vmatprep.subr.bf16.mxu0 0
    %531 = vmatpush1.bf16.xpose.msra.mxu0 0
    %532 = vmatprep.subr.bf16.mxu0 0
    %533 = vmatpush1.bf16.xpose.msra.mxu0 0
    %534 = vmatprep.subr.bf16.mxu0 0
    %535 = vmatpush1.bf16.xpose.msra.mxu0 0
    %536 = vmatprep.subr.bf16.mxu0 0
    %537 = vmatpush1.bf16.xpose.msra.mxu0 0
    %538 = vmatprep.subr.bf16.mxu0 0
    %539 = vmatpush1.bf16.xpose.msra.mxu0 0
    %540 = vmatprep.subr.bf16.mxu0 0
    %541 = vmatpush1.bf16.xpose.msra.mxu0 0
    %542 = vmatprep.subr.bf16.mxu0 0
    %543 = vmatpush1.bf16.xpose.msra.mxu0 0
    %544 = vmatprep.subr.bf16.mxu0 0
    %545 = vmatpush1.bf16.xpose.msra.mxu0 0
    %546 = vmatprep.subr.bf16.mxu0 0
    %547 = vmatpush1.bf16.xpose.msra.mxu0 0
    %548 = vmatprep.mubr.bf16.mxu0 0
    %549 = vmatmul.mubr.bf16.gmra.mrb[0].mxu0 %v511
    %v550 = vpop.f32.mrb[0].mxu0
    %v551 = vadd.f32 0.0, %v550
    %v552 = vpop.f32.mrb[0].mxu0
    %v553 = vpop.f32.mrb[0].mxu0
    %v554 = vpop.f32.mrb[0].mxu0
    %555 = vdwg.mxu0
    %557 = vrot.lane.b32.xlu0 %v280, 120
    %v558 = vpop.permute.xlu0 %557
    %559 = vrot.lane.b32.xlu0 %v282, 88
    %v560 = vpop.permute.xlu0 %559
    %v562 = vsel %vm286, %v558, 0
    %v565 = vsel %vm286, %v560, 0
    %567 = vmatprep.subr.bf16.mxu0 0
    %568 = vmatpush1.bf16.xpose.msra.mxu0 %v565
    %569 = vmatprep.subr.bf16.mxu0 0
    %570 = vmatpush1.bf16.xpose.msra.mxu0 0
    %571 = vmatprep.subr.bf16.mxu0 0
    %572 = vmatpush1.bf16.xpose.msra.mxu0 0
    %573 = vmatprep.subr.bf16.mxu0 0
    %574 = vmatpush1.bf16.xpose.msra.mxu0 0
    %575 = vmatprep.subr.bf16.mxu0 0
    %576 = vmatpush1.bf16.xpose.msra.mxu0 0
    %577 = vmatprep.subr.bf16.mxu0 0
    %578 = vmatpush1.bf16.xpose.msra.mxu0 0
    %579 = vmatprep.subr.bf16.mxu0 0
    %580 = vmatpush1.bf16.xpose.msra.mxu0 0
    %581 = vmatprep.subr.bf16.mxu0 0
    %582 = vmatpush1.bf16.xpose.msra.mxu0 0
    %583 = vmatprep.subr.bf16.mxu0 0
    %584 = vmatpush1.bf16.xpose.msra.mxu0 0
    %585 = vmatprep.subr.bf16.mxu0 0
    %586 = vmatpush1.bf16.xpose.msra.mxu0 0
    %587 = vmatprep.subr.bf16.mxu0 0
    %588 = vmatpush1.bf16.xpose.msra.mxu0 0
    %589 = vmatprep.subr.bf16.mxu0 0
    %590 = vmatpush1.bf16.xpose.msra.mxu0 0
    %591 = vmatprep.subr.bf16.mxu0 0
    %592 = vmatpush1.bf16.xpose.msra.mxu0 0
    %593 = vmatprep.subr.bf16.mxu0 0
    %594 = vmatpush1.bf16.xpose.msra.mxu0 0
    %595 = vmatprep.subr.bf16.mxu0 0
    %596 = vmatpush1.bf16.xpose.msra.mxu0 0
    %597 = vmatprep.subr.bf16.mxu0 0
    %598 = vmatpush1.bf16.xpose.msra.mxu0 0
    %599 = vmatprep.mubr.bf16.mxu0 0
    %600 = vmatmul.mubr.bf16.gmra.mrb[0].mxu0 %v562
    %v601 = vpop.f32.mrb[0].mxu0
    %v602 = vadd.f32 0.0, %v601
    %v603 = vpop.f32.mrb[0].mxu0
    %v604 = vpop.f32.mrb[0].mxu0
    %v605 = vpop.f32.mrb[0].mxu0
    %606 = vdwg.mxu0
    %v607 = vsel %vm286, %v551, -inf
    %608 = vmax.xlane.f32.xlu0 %v607
    %v609 = vpop.xlane.xlu0 %608
    %v610 = vsel %vm286, %v602, -inf
    %611 = vmax.xlane.f32.xlu0 %v610
    %v612 = vpop.xlane.xlu0 %611
    %v613 = vsub.f32 %v551, %v609
    %v614 = vsub.f32 %v602, %v612
    %v615 = vmul.f32 %v613, 1.442695
    %v616 = vpow.pop %v615
    %v617 = vmul.f32 %v614, 1.442695
    %v618 = vpow.pop %v617
    %v619 = vsel %vm286, %v616, 0.0
    %620 = vadd.xlane.f32.xlu0 %v619
    %v621 = vpop.xlane.xlu0 %620
    %v622 = vsel %vm286, %v618, 0.0
    %623 = vadd.xlane.f32.xlu0 %v622
    %v624 = vpop.xlane.xlu0 %623
    %v625 = vrcp.pop %v621
    %v626 = vrcp.pop %v624
    %v627 = vmul.f32 %v616, %v625
    %v628 = vmul.f32 %v618, %v626
    %v629 = vpack.c.bf16 %v627, %v627
    %v630 = vpack.c.bf16 %v628, %v628
    %631 = vrot.lane.b32.xlu0 %v281, 56
    %v632 = vpop.permute.xlu0 %631
    %v634 = vsel %vm286, %v629, 0
    %v637 = vsel %vm411, %v632, 0
    %639 = vmatprep.subr.bf16.mxu0 0
    %640 = vmatpush1.bf16.msra.mxu0 %v637
    %641 = vmatprep.subr.bf16.mxu0 0
    %642 = vmatpush1.bf16.msra.mxu0 0
    %643 = vmatprep.subr.bf16.mxu0 0
    %644 = vmatpush1.bf16.msra.mxu0 0
    %645 = vmatprep.subr.bf16.mxu0 0
    %646 = vmatpush1.bf16.msra.mxu0 0
    %647 = vmatprep.subr.bf16.mxu0 0
    %648 = vmatpush1.bf16.msra.mxu0 0
    %649 = vmatprep.subr.bf16.mxu0 0
    %650 = vmatpush1.bf16.msra.mxu0 0
    %651 = vmatprep.subr.bf16.mxu0 0
    %652 = vmatpush1.bf16.msra.mxu0 0
    %653 = vmatprep.subr.bf16.mxu0 0
    %654 = vmatpush1.bf16.msra.mxu0 0
    %655 = vmatprep.subr.bf16.mxu0 0
    %656 = vmatpush1.bf16.msra.mxu0 0
    %657 = vmatprep.subr.bf16.mxu0 0
    %658 = vmatpush1.bf16.msra.mxu0 0
    %659 = vmatprep.subr.bf16.mxu0 0
    %660 = vmatpush1.bf16.msra.mxu0 0
    %661 = vmatprep.subr.bf16.mxu0 0
    %662 = vmatpush1.bf16.msra.mxu0 0
    %663 = vmatprep.subr.bf16.mxu0 0
    %664 = vmatpush1.bf16.msra.mxu0 0
    %665 = vmatprep.subr.bf16.mxu0 0
    %666 = vmatpush1.bf16.msra.mxu0 0
    %667 = vmatprep.subr.bf16.mxu0 0
    %668 = vmatpush1.bf16.msra.mxu0 0
    %669 = vmatprep.subr.bf16.mxu0 0
    %670 = vmatpush1.bf16.msra.mxu0 0
    %671 = vmatprep.mubr.bf16.mxu0 0
    %672 = vmatmul.mubr.bf16.gmra.mrb[0].mxu0 %v634
    %v673 = vpop.f32.mrb[0].mxu0
    %v674 = vadd.f32 0.0, %v673
    %v675 = vpop.f32.mrb[0].mxu0
    %v676 = vpop.f32.mrb[0].mxu0
    %v677 = vpop.f32.mrb[0].mxu0
    %678 = vdwg.mxu0
    %679 = vrot.lane.b32.xlu0 %v282, 56
    %v680 = vpop.permute.xlu0 %679
    %v682 = vsel %vm286, %v630, 0
    %v685 = vsel %vm411, %v680, 0
    %687 = vmatprep.subr.bf16.mxu0 0
    %688 = vmatpush1.bf16.msra.mxu0 %v685
    %689 = vmatprep.subr.bf16.mxu0 0
    %690 = vmatpush1.bf16.msra.mxu0 0
    %691 = vmatprep.subr.bf16.mxu0 0
    %692 = vmatpush1.bf16.msra.mxu0 0
    %693 = vmatprep.subr.bf16.mxu0 0
    %694 = vmatpush1.bf16.msra.mxu0 0
    %695 = vmatprep.subr.bf16.mxu0 0
    %696 = vmatpush1.bf16.msra.mxu0 0
    %697 = vmatprep.subr.bf16.mxu0 0
    %698 = vmatpush1.bf16.msra.mxu0 0
    %699 = vmatprep.subr.bf16.mxu0 0
    %700 = vmatpush1.bf16.msra.mxu0 0
    %701 = vmatprep.subr.bf16.mxu0 0
    %702 = vmatpush1.bf16.msra.mxu0 0
    %703 = vmatprep.subr.bf16.mxu0 0
    %704 = vmatpush1.bf16.msra.mxu0 0
    %705 = vmatprep.subr.bf16.mxu0 0
    %706 = vmatpush1.bf16.msra.mxu0 0
    %707 = vmatprep.subr.bf16.mxu0 0
    %708 = vmatpush1.bf16.msra.mxu0 0
    %709 = vmatprep.subr.bf16.mxu0 0
    %710 = vmatpush1.bf16.msra.mxu0 0
    %711 = vmatprep.subr.bf16.mxu0 0
    %712 = vmatpush1.bf16.msra.mxu0 0
    %713 = vmatprep.subr.bf16.mxu0 0
    %714 = vmatpush1.bf16.msra.mxu0 0
    %715 = vmatprep.subr.bf16.mxu0 0
    %716 = vmatpush1.bf16.msra.mxu0 0
    %717 = vmatprep.subr.bf16.mxu0 0
    %718 = vmatpush1.bf16.msra.mxu0 0
    %719 = vmatprep.mubr.bf16.mxu0 0
    %720 = vmatmul.mubr.bf16.gmra.mrb[0].mxu0 %v682
    %v721 = vpop.f32.mrb[0].mxu0
    %v722 = vadd.f32 0.0, %v721
    %v723 = vpop.f32.mrb[0].mxu0
    %v724 = vpop.f32.mrb[0].mxu0
    %v725 = vpop.f32.mrb[0].mxu0
    %726 = vdwg.mxu0
    %729 = vrot.lane.b32.xlu0 %v674, 8
    %v730 = vpop.permute.xlu0 %729
    %731 = vrot.lane.b32.xlu0 %v722, 8
    %v732 = vpop.permute.xlu0 %731
    %vm735 = vcmask 130112
    %736 = vst.msk [vmem:[#allocation2] sm:$0xff] %vm735, %v730
    %737 = vst.msk [vmem:[#allocation2 + $0x8] sm:$0xff] %vm735, %v732
    %738 = vrot.lane.b32.xlu0 %v279, 112
    %v739 = vpop.permute.xlu0 %738
    %740 = vrot.lane.b32.xlu0 %v281, 80
    %v741 = vpop.permute.xlu0 %740
    %v743 = vsel %vm286, %v739, 0
    %v746 = vsel %vm286, %v741, 0
    %748 = vmatprep.subr.bf16.mxu0 0
    %749 = vmatpush1.bf16.xpose.msra.mxu0 %v746
    %750 = vmatprep.subr.bf16.mxu0 0
    %751 = vmatpush1.bf16.xpose.msra.mxu0 0
    %752 = vmatprep.subr.bf16.mxu0 0
    %753 = vmatpush1.bf16.xpose.msra.mxu0 0
    %754 = vmatprep.subr.bf16.mxu0 0
    %755 = vmatpush1.bf16.xpose.msra.mxu0 0
    %756 = vmatprep.subr.bf16.mxu0 0
    %757 = vmatpush1.bf16.xpose.msra.mxu0 0
    %758 = vmatprep.subr.bf16.mxu0 0
    %759 = vmatpush1.bf16.xpose.msra.mxu0 0
    %760 = vmatprep.subr.bf16.mxu0 0
    %761 = vmatpush1.bf16.xpose.msra.mxu0 0
    %762 = vmatprep.subr.bf16.mxu0 0
    %763 = vmatpush1.bf16.xpose.msra.mxu0 0
    %764 = vmatprep.subr.bf16.mxu0 0
    %765 = vmatpush1.bf16.xpose.msra.mxu0 0
    %766 = vmatprep.subr.bf16.mxu0 0
    %767 = vmatpush1.bf16.xpose.msra.mxu0 0
    %768 = vmatprep.subr.bf16.mxu0 0
    %769 = vmatpush1.bf16.xpose.msra.mxu0 0
    %770 = vmatprep.subr.bf16.mxu0 0
    %771 = vmatpush1.bf16.xpose.msra.mxu0 0
    %772 = vmatprep.subr.bf16.mxu0 0
    %773 = vmatpush1.bf16.xpose.msra.mxu0 0
    %774 = vmatprep.subr.bf16.mxu0 0
    %775 = vmatpush1.bf16.xpose.msra.mxu0 0
    %776 = vmatprep.subr.bf16.mxu0 0
    %777 = vmatpush1.bf16.xpose.msra.mxu0 0
    %778 = vmatprep.subr.bf16.mxu0 0
    %779 = vmatpush1.bf16.xpose.msra.mxu0 0
    %780 = vmatprep.mubr.bf16.mxu0 0
    %781 = vmatmul.mubr.bf16.gmra.mrb[0].mxu0 %v743
    %v782 = vpop.f32.mrb[0].mxu0
    %v783 = vadd.f32 0.0, %v782
    %v784 = vpop.f32.mrb[0].mxu0
    %v785 = vpop.f32.mrb[0].mxu0
    %v786 = vpop.f32.mrb[0].mxu0
    %787 = vdwg.mxu0
    %788 = vrot.lane.b32.xlu0 %v280, 112
    %v789 = vpop.permute.xlu0 %788
    %790 = vrot.lane.b32.xlu0 %v282, 80
    %v791 = vpop.permute.xlu0 %790
    %v793 = vsel %vm286, %v789, 0
    %v796 = vsel %vm286, %v791, 0
    %798 = vmatprep.subr.bf16.mxu0 0
    %799 = vmatpush1.bf16.xpose.msra.mxu0 %v796
    %800 = vmatprep.subr.bf16.mxu0 0
    %801 = vmatpush1.bf16.xpose.msra.mxu0 0
    %802 = vmatprep.subr.bf16.mxu0 0
    %803 = vmatpush1.bf16.xpose.msra.mxu0 0
    %804 = vmatprep.subr.bf16.mxu0 0
    %805 = vmatpush1.bf16.xpose.msra.mxu0 0
    %806 = vmatprep.subr.bf16.mxu0 0
    %807 = vmatpush1.bf16.xpose.msra.mxu0 0
    %808 = vmatprep.subr.bf16.mxu0 0
    %809 = vmatpush1.bf16.xpose.msra.mxu0 0
    %810 = vmatprep.subr.bf16.mxu0 0
    %811 = vmatpush1.bf16.xpose.msra.mxu0 0
    %812 = vmatprep.subr.bf16.mxu0 0
    %813 = vmatpush1.bf16.xpose.msra.mxu0 0
    %814 = vmatprep.subr.bf16.mxu0 0
    %815 = vmatpush1.bf16.xpose.msra.mxu0 0
    %816 = vmatprep.subr.bf16.mxu0 0
    %817 = vmatpush1.bf16.xpose.msra.mxu0 0
    %818 = vmatprep.subr.bf16.mxu0 0
    %819 = vmatpush1.bf16.xpose.msra.mxu0 0
    %820 = vmatprep.subr.bf16.mxu0 0
    %821 = vmatpush1.bf16.xpose.msra.mxu0 0
    %822 = vmatprep.subr.bf16.mxu0 0
    %823 = vmatpush1.bf16.xpose.msra.mxu0 0
    %824 = vmatprep.subr.bf16.mxu0 0
    %825 = vmatpush1.bf16.xpose.msra.mxu0 0
    %826 = vmatprep.subr.bf16.mxu0 0
    %827 = vmatpush1.bf16.xpose.msra.mxu0 0
    %828 = vmatprep.subr.bf16.mxu0 0
    %829 = vmatpush1.bf16.xpose.msra.mxu0 0
    %830 = vmatprep.mubr.bf16.mxu0 0
    %831 = vmatmul.mubr.bf16.gmra.mrb[0].mxu0 %v793
    %v832 = vpop.f32.mrb[0].mxu0
    %v833 = vadd.f32 0.0, %v832
    %v834 = vpop.f32.mrb[0].mxu0
    %v835 = vpop.f32.mrb[0].mxu0
    %v836 = vpop.f32.mrb[0].mxu0
    %837 = vdwg.mxu0
    %v838 = vsel %vm286, %v783, -inf
    %839 = vmax.xlane.f32.xlu0 %v838
    %v840 = vpop.xlane.xlu0 %839
    %v841 = vsel %vm286, %v833, -inf
    %842 = vmax.xlane.f32.xlu0 %v841
    %v843 = vpop.xlane.xlu0 %842
    %v844 = vsub.f32 %v783, %v840
    %v845 = vsub.f32 %v833, %v843
    %v846 = vmul.f32 %v844, 1.442695
    %v847 = vpow.pop %v846
    %v848 = vmul.f32 %v845, 1.442695
    %v849 = vpow.pop %v848
    %v850 = vsel %vm286, %v847, 0.0
    %851 = vadd.xlane.f32.xlu0 %v850
    %v852 = vpop.xlane.xlu0 %851
    %v853 = vsel %vm286, %v849, 0.0
    %854 = vadd.xlane.f32.xlu0 %v853
    %v855 = vpop.xlane.xlu0 %854
    %v856 = vrcp.pop %v852
    %v857 = vrcp.pop %v855
    %v858 = vmul.f32 %v847, %v856
    %v859 = vmul.f32 %v849, %v857
    %v860 = vpack.c.bf16 %v858, %v858
    %v861 = vpack.c.bf16 %v859, %v859
    %862 = vrot.lane.b32.xlu0 %v281, 48
    %v863 = vpop.permute.xlu0 %862
    %v865 = vsel %vm286, %v860, 0
    %v868 = vsel %vm411, %v863, 0
    %870 = vmatprep.subr.bf16.mxu0 0
    %871 = vmatpush1.bf16.msra.mxu0 %v868
    %872 = vmatprep.subr.bf16.mxu0 0
    %873 = vmatpush1.bf16.msra.mxu0 0
    %874 = vmatprep.subr.bf16.mxu0 0
    %875 = vmatpush1.bf16.msra.mxu0 0
    %876 = vmatprep.subr.bf16.mxu0 0
    %877 = vmatpush1.bf16.msra.mxu0 0
    %878 = vmatprep.subr.bf16.mxu0 0
    %879 = vmatpush1.bf16.msra.mxu0 0
    %880 = vmatprep.subr.bf16.mxu0 0
    %881 = vmatpush1.bf16.msra.mxu0 0
    %882 = vmatprep.subr.bf16.mxu0 0
    %883 = vmatpush1.bf16.msra.mxu0 0
    %884 = vmatprep.subr.bf16.mxu0 0
    %885 = vmatpush1.bf16.msra.mxu0 0
    %886 = vmatprep.subr.bf16.mxu0 0
    %887 = vmatpush1.bf16.msra.mxu0 0
    %888 = vmatprep.subr.bf16.mxu0 0
    %889 = vmatpush1.bf16.msra.mxu0 0
    %890 = vmatprep.subr.bf16.mxu0 0
    %891 = vmatpush1.bf16.msra.mxu0 0
    %892 = vmatprep.subr.bf16.mxu0 0
    %893 = vmatpush1.bf16.msra.mxu0 0
    %894 = vmatprep.subr.bf16.mxu0 0
    %895 = vmatpush1.bf16.msra.mxu0 0
    %896 = vmatprep.subr.bf16.mxu0 0
    %897 = vmatpush1.bf16.msra.mxu0 0
    %898 = vmatprep.subr.bf16.mxu0 0
    %899 = vmatpush1.bf16.msra.mxu0 0
    %900 = vmatprep.subr.bf16.mxu0 0
    %901 = vmatpush1.bf16.msra.mxu0 0
    %902 = vmatprep.mubr.bf16.mxu0 0
    %903 = vmatmul.mubr.bf16.gmra.mrb[0].mxu0 %v865
    %v904 = vpop.f32.mrb[0].mxu0
    %v905 = vadd.f32 0.0, %v904
    %v906 = vpop.f32.mrb[0].mxu0
    %v907 = vpop.f32.mrb[0].mxu0
    %v908 = vpop.f32.mrb[0].mxu0
    %909 = vdwg.mxu0
    %910 = vrot.lane.b32.xlu0 %v282, 48
    %v911 = vpop.permute.xlu0 %910
    %v913 = vsel %vm286, %v861, 0
    %v916 = vsel %vm411, %v911, 0
    %918 = vmatprep.subr.bf16.mxu0 0
    %919 = vmatpush1.bf16.msra.mxu0 %v916
    %920 = vmatprep.subr.bf16.mxu0 0
    %921 = vmatpush1.bf16.msra.mxu0 0
    %922 = vmatprep.subr.bf16.mxu0 0
    %923 = vmatpush1.bf16.msra.mxu0 0
    %924 = vmatprep.subr.bf16.mxu0 0
    %925 = vmatpush1.bf16.msra.mxu0 0
    %926 = vmatprep.subr.bf16.mxu0 0
    %927 = vmatpush1.bf16.msra.mxu0 0
    %928 = vmatprep.subr.bf16.mxu0 0
    %929 = vmatpush1.bf16.msra.mxu0 0
    %930 = vmatprep.subr.bf16.mxu0 0
    %931 = vmatpush1.bf16.msra.mxu0 0
    %932 = vmatprep.subr.bf16.mxu0 0
    %933 = vmatpush1.bf16.msra.mxu0 0
    %934 = vmatprep.subr.bf16.mxu0 0
    %935 = vmatpush1.bf16.msra.mxu0 0
    %936 = vmatprep.subr.bf16.mxu0 0
    %937 = vmatpush1.bf16.msra.mxu0 0
    %938 = vmatprep.subr.bf16.mxu0 0
    %939 = vmatpush1.bf16.msra.mxu0 0
    %940 = vmatprep.subr.bf16.mxu0 0
    %941 = vmatpush1.bf16.msra.mxu0 0
    %942 = vmatprep.subr.bf16.mxu0 0
    %943 = vmatpush1.bf16.msra.mxu0 0
    %944 = vmatprep.subr.bf16.mxu0 0
    %945 = vmatpush1.bf16.msra.mxu0 0
    %946 = vmatprep.subr.bf16.mxu0 0
    %947 = vmatpush1.bf16.msra.mxu0 0
    %948 = vmatprep.subr.bf16.mxu0 0
    %949 = vmatpush1.bf16.msra.mxu0 0
    %950 = vmatprep.mubr.bf16.mxu0 0
    %951 = vmatmul.mubr.bf16.gmra.mrb[0].mxu0 %v913
    %v952 = vpop.f32.mrb[0].mxu0
    %v953 = vadd.f32 0.0, %v952
    %v954 = vpop.f32.mrb[0].mxu0
    %v955 = vpop.f32.mrb[0].mxu0
    %v956 = vpop.f32.mrb[0].mxu0
    %957 = vdwg.mxu0
    %960 = vrot.lane.b32.xlu0 %v905, 16
    %v961 = vpop.permute.xlu0 %960
    %962 = vrot.lane.b32.xlu0 %v953, 16
    %v963 = vpop.permute.xlu0 %962
    %vm966 = vcmask 195712
    %967 = vst.msk [vmem:[#allocation2] sm:$0xff] %vm966, %v961
    %968 = vst.msk [vmem:[#allocation2 + $0x8] sm:$0xff] %vm966, %v963
    %969 = vrot.lane.b32.xlu0 %v279, 104
    %v970 = vpop.permute.xlu0 %969
    %971 = vrot.lane.b32.xlu0 %v281, 72
    %v972 = vpop.permute.xlu0 %971
    %v974 = vsel %vm286, %v970, 0
    %v977 = vsel %vm286, %v972, 0
    %979 = vmatprep.subr.bf16.mxu0 0
    %980 = vmatpush1.bf16.xpose.msra.mxu0 %v977
    %981 = vmatprep.subr.bf16.mxu0 0
    %982 = vmatpush1.bf16.xpose.msra.mxu0 0
    %983 = vmatprep.subr.bf16.mxu0 0
    %984 = vmatpush1.bf16.xpose.msra.mxu0 0
    %985 = vmatprep.subr.bf16.mxu0 0
    %986 = vmatpush1.bf16.xpose.msra.mxu0 0
    %987 = vmatprep.subr.bf16.mxu0 0
    %988 = vmatpush1.bf16.xpose.msra.mxu0 0
    %989 = vmatprep.subr.bf16.mxu0 0
    %990 = vmatpush1.bf16.xpose.msra.mxu0 0
    %991 = vmatprep.subr.bf16.mxu0 0
    %992 = vmatpush1.bf16.xpose.msra.mxu0 0
    %993 = vmatprep.subr.bf16.mxu0 0
    %994 = vmatpush1.bf16.xpose.msra.mxu0 0
    %995 = vmatprep.subr.bf16.mxu0 0
    %996 = vmatpush1.bf16.xpose.msra.mxu0 0
    %997 = vmatprep.subr.bf16.mxu0 0
    %998 = vmatpush1.bf16.xpose.msra.mxu0 0
    %999 = vmatprep.subr.bf16.mxu0 0
    %1000 = vmatpush1.bf16.xpose.msra.mxu0 0
    %1001 = vmatprep.subr.bf16.mxu0 0
    %1002 = vmatpush1.bf16.xpose.msra.mxu0 0
    %1003 = vmatprep.subr.bf16.mxu0 0
    %1004 = vmatpush1.bf16.xpose.msra.mxu0 0
    %1005 = vmatprep.subr.bf16.mxu0 0
    %1006 = vmatpush1.bf16.xpose.msra.mxu0 0
    %1007 = vmatprep.subr.bf16.mxu0 0
    %1008 = vmatpush1.bf16.xpose.msra.mxu0 0
    %1009 = vmatprep.subr.bf16.mxu0 0
    %1010 = vmatpush1.bf16.xpose.msra.mxu0 0
    %1011 = vmatprep.mubr.bf16.mxu0 0
    %1012 = vmatmul.mubr.bf16.gmra.mrb[0].mxu0 %v974
    %v1013 = vpop.f32.mrb[0].mxu0
    %v1014 = vadd.f32 0.0, %v1013
    %v1015 = vpop.f32.mrb[0].mxu0
    %v1016 = vpop.f32.mrb[0].mxu0
    %v1017 = vpop.f32.mrb[0].mxu0
    %1018 = vdwg.mxu0
    %1019 = vrot.lane.b32.xlu0 %v280, 104
    %v1020 = vpop.permute.xlu0 %1019
    %1021 = vrot.lane.b32.xlu0 %v282, 72
    %v1022 = vpop.permute.xlu0 %1021
    %v1024 = vsel %vm286, %v1020, 0
    %v1027 = vsel %vm286, %v1022, 0
    %1029 = vmatprep.subr.bf16.mxu0 0
    %1030 = vmatpush1.bf16.xpose.msra.mxu0 %v1027
    %1031 = vmatprep.subr.bf16.mxu0 0
    %1032 = vmatpush1.bf16.xpose.msra.mxu0 0
    %1033 = vmatprep.subr.bf16.mxu0 0
    %1034 = vmatpush1.bf16.xpose.msra.mxu0 0
    %1035 = vmatprep.subr.bf16.mxu0 0
    %1036 = vmatpush1.bf16.xpose.msra.mxu0 0
    %1037 = vmatprep.subr.bf16.mxu0 0
    %1038 = vmatpush1.bf16.xpose.msra.mxu0 0
    %1039 = vmatprep.subr.bf16.mxu0 0
    %1040 = vmatpush1.bf16.xpose.msra.mxu0 0
    %1041 = vmatprep.subr.bf16.mxu0 0
    %1042 = vmatpush1.bf16.xpose.msra.mxu0 0
    %1043 = vmatprep.subr.bf16.mxu0 0
    %1044 = vmatpush1.bf16.xpose.msra.mxu0 0
    %1045 = vmatprep.subr.bf16.mxu0 0
    %1046 = vmatpush1.bf16.xpose.msra.mxu0 0
    %1047 = vmatprep.subr.bf16.mxu0 0
    %1048 = vmatpush1.bf16.xpose.msra.mxu0 0
    %1049 = vmatprep.subr.bf16.mxu0 0
    %1050 = vmatpush1.bf16.xpose.msra.mxu0 0
    %1051 = vmatprep.subr.bf16.mxu0 0
    %1052 = vmatpush1.bf16.xpose.msra.mxu0 0
    %1053 = vmatprep.subr.bf16.mxu0 0
    %1054 = vmatpush1.bf16.xpose.msra.mxu0 0
    %1055 = vmatprep.subr.bf16.mxu0 0
    %1056 = vmatpush1.bf16.xpose.msra.mxu0 0
    %1057 = vmatprep.subr.bf16.mxu0 0
    %1058 = vmatpush1.bf16.xpose.msra.mxu0 0
    %1059 = vmatprep.subr.bf16.mxu0 0
    %1060 = vmatpush1.bf16.xpose.msra.mxu0 0
    %1061 = vmatprep.mubr.bf16.mxu0 0
    %1062 = vmatmul.mubr.bf16.gmra.mrb[0].mxu0 %v1024
    %v1063 = vpop.f32.mrb[0].mxu0
    %v1064 = vadd.f32 0.0, %v1063
    %v1065 = vpop.f32.mrb[0].mxu0
    %v1066 = vpop.f32.mrb[0].mxu0
    %v1067 = vpop.f32.mrb[0].mxu0
    %1068 = vdwg.mxu0
    %v1069 = vsel %vm286, %v1014, -inf
    %1070 = vmax.xlane.f32.xlu0 %v1069
    %v1071 = vpop.xlane.xlu0 %1070
    %v1072 = vsel %vm286, %v1064, -inf
    %1073 = vmax.xlane.f32.xlu0 %v1072
    %v1074 = vpop.xlane.xlu0 %1073
    %v1075 = vsub.f32 %v1014, %v1071
    %v1076 = vsub.f32 %v1064, %v1074
    %v1077 = vmul.f32 %v1075, 1.442695
    %v1078 = vpow.pop %v1077
    %v1079 = vmul.f32 %v1076, 1.442695
    %v1080 = vpow.pop %v1079
    %v1081 = vsel %vm286, %v1078, 0.0
    %1082 = vadd.xlane.f32.xlu0 %v1081
    %v1083 = vpop.xlane.xlu0 %1082
    %v1084 = vsel %vm286, %v1080, 0.0
    %1085 = vadd.xlane.f32.xlu0 %v1084
    %v1086 = vpop.xlane.xlu0 %1085
    %v1087 = vrcp.pop %v1083
    %v1088 = vrcp.pop %v1086
    %v1089 = vmul.f32 %v1078, %v1087
    %v1090 = vmul.f32 %v1080, %v1088
    %v1091 = vpack.c.bf16 %v1089, %v1089
    %v1092 = vpack.c.bf16 %v1090, %v1090
    %1093 = vrot.lane.b32.xlu0 %v281, 40
    %v1094 = vpop.permute.xlu0 %1093
    %v1096 = vsel %vm286, %v1091, 0
    %v1099 = vsel %vm411, %v1094, 0
    %1101 = vmatprep.subr.bf16.mxu0 0
    %1102 = vmatpush1.bf16.msra.mxu0 %v1099
    %1103 = vmatprep.subr.bf16.mxu0 0
    %1104 = vmatpush1.bf16.msra.mxu0 0
    %1105 = vmatprep.subr.bf16.mxu0 0
    %1106 = vmatpush1.bf16.msra.mxu0 0
    %1107 = vmatprep.subr.bf16.mxu0 0
    %1108 = vmatpush1.bf16.msra.mxu0 0
    %1109 = vmatprep.subr.bf16.mxu0 0
    %1110 = vmatpush1.bf16.msra.mxu0 0
    %1111 = vmatprep.subr.bf16.mxu0 0
    %1112 = vmatpush1.bf16.msra.mxu0 0
    %1113 = vmatprep.subr.bf16.mxu0 0
    %1114 = vmatpush1.bf16.msra.mxu0 0
    %1115 = vmatprep.subr.bf16.mxu0 0
    %1116 = vmatpush1.bf16.msra.mxu0 0
    %1117 = vmatprep.subr.bf16.mxu0 0
    %1118 = vmatpush1.bf16.msra.mxu0 0
    %1119 = vmatprep.subr.bf16.mxu0 0
    %1120 = vmatpush1.bf16.msra.mxu0 0
    %1121 = vmatprep.subr.bf16.mxu0 0
    %1122 = vmatpush1.bf16.msra.mxu0 0
    %1123 = vmatprep.subr.bf16.mxu0 0
    %1124 = vmatpush1.bf16.msra.mxu0 0
    %1125 = vmatprep.subr.bf16.mxu0 0
    %1126 = vmatpush1.bf16.msra.mxu0 0
    %1127 = vmatprep.subr.bf16.mxu0 0
    %1128 = vmatpush1.bf16.msra.mxu0 0
    %1129 = vmatprep.subr.bf16.mxu0 0
    %1130 = vmatpush1.bf16.msra.mxu0 0
    %1131 = vmatprep.subr.bf16.mxu0 0
    %1132 = vmatpush1.bf16.msra.mxu0 0
    %1133 = vmatprep.mubr.bf16.mxu0 0
    %1134 = vmatmul.mubr.bf16.gmra.mrb[0].mxu0 %v1096
    %v1135 = vpop.f32.mrb[0].mxu0
    %v1136 = vadd.f32 0.0, %v1135
    %v1137 = vpop.f32.mrb[0].mxu0
    %v1138 = vpop.f32.mrb[0].mxu0
    %v1139 = vpop.f32.mrb[0].mxu0
    %1140 = vdwg.mxu0
    %1141 = vrot.lane.b32.xlu0 %v282, 40
    %v1142 = vpop.permute.xlu0 %1141
    %v1144 = vsel %vm286, %v1092, 0
    %v1147 = vsel %vm411, %v1142, 0
    %1149 = vmatprep.subr.bf16.mxu0 0
    %1150 = vmatpush1.bf16.msra.mxu0 %v1147
    %1151 = vmatprep.subr.bf16.mxu0 0
    %1152 = vmatpush1.bf16.msra.mxu0 0
    %1153 = vmatprep.subr.bf16.mxu0 0
    %1154 = vmatpush1.bf16.msra.mxu0 0
    %1155 = vmatprep.subr.bf16.mxu0 0
    %1156 = vmatpush1.bf16.msra.mxu0 0
    %1157 = vmatprep.subr.bf16.mxu0 0
    %1158 = vmatpush1.bf16.msra.mxu0 0
    %1159 = vmatprep.subr.bf16.mxu0 0
    %1160 = vmatpush1.bf16.msra.mxu0 0
    %1161 = vmatprep.subr.bf16.mxu0 0
    %1162 = vmatpush1.bf16.msra.mxu0 0
    %1163 = vmatprep.subr.bf16.mxu0 0
    %1164 = vmatpush1.bf16.msra.mxu0 0
    %1165 = vmatprep.subr.bf16.mxu0 0
    %1166 = vmatpush1.bf16.msra.mxu0 0
    %1167 = vmatprep.subr.bf16.mxu0 0
    %1168 = vmatpush1.bf16.msra.mxu0 0
    %1169 = vmatprep.subr.bf16.mxu0 0
    %1170 = vmatpush1.bf16.msra.mxu0 0
    %1171 = vmatprep.subr.bf16.mxu0 0
    %1172 = vmatpush1.bf16.msra.mxu0 0
    %1173 = vmatprep.subr.bf16.mxu0 0
    %1174 = vmatpush1.bf16.msra.mxu0 0
    %1175 = vmatprep.subr.bf16.mxu0 0
    %1176 = vmatpush1.bf16.msra.mxu0 0
    %1177 = vmatprep.subr.bf16.mxu0 0
    %1178 = vmatpush1.bf16.msra.mxu0 0
    %1179 = vmatprep.subr.bf16.mxu0 0
    %1180 = vmatpush1.bf16.msra.mxu0 0
    %1181 = vmatprep.mubr.bf16.mxu0 0
    %1182 = vmatmul.mubr.bf16.gmra.mrb[0].mxu0 %v1144
    %v1183 = vpop.f32.mrb[0].mxu0
    %v1184 = vadd.f32 0.0, %v1183
    %v1185 = vpop.f32.mrb[0].mxu0
    %v1186 = vpop.f32.mrb[0].mxu0
    %v1187 = vpop.f32.mrb[0].mxu0
    %1188 = vdwg.mxu0
    %1191 = vrot.lane.b32.xlu0 %v1136, 24
    %v1192 = vpop.permute.xlu0 %1191
    %1193 = vrot.lane.b32.xlu0 %v1184, 24
    %v1194 = vpop.permute.xlu0 %1193
    %vm1197 = vcmask 261312
    %1198 = vst.msk [vmem:[#allocation2] sm:$0xff] %vm1197, %v1192
    %1199 = vst.msk [vmem:[#allocation2 + $0x8] sm:$0xff] %vm1197, %v1194
    %v1200 = vld [vmem:[#allocation2] sm:$0xff]
    %v1201 = vld [vmem:[#allocation2 + $0x8] sm:$0xff]
    %v1202 = vpack.c.bf16 %v1201, %v1200
    %v1203 = vld [vmem:[#allocation9] sm:$0xf]
    %v1204 = vld [vmem:[#allocation9 + $0x4] sm:$0xf]
    %v1205 = vld [vmem:[#allocation9 + $0x8] sm:$0xf]
    %v1206 = vld [vmem:[#allocation9 + $0xc] sm:$0xf]
    %v1207 = vld [vmem:[#allocation11] sm:$0x1]
    %v1209 = vlaneseq
    %v1210 = vshrl.u32 %v1209, 7
    %v1211 = vsub.s32 0, %v1210
    %v1212 = vrot.slane %v1207, %v1211
    %v1218 = vunpack.c.l.b16 %v1203
    %v1219 = vunpack.c.l.b16 %v1204
    %v1220 = vunpack.c.l.b16 %v1205
    %v1221 = vunpack.c.l.b16 %v1206
    %v1222 = vpack.c.b16 %v1219, %v1218
    %v1223 = vpack.c.b16 %v1221, %v1220
    %v1227 = vsel %vm232, %v1202, 0
    %1229 = vmatprep.subr.bf16.mxu0 0
    %1230 = vmatpush1.bf16.msra.mxu0 %v1222
    %1231 = vmatprep.subr.bf16.mxu0 0
    %1232 = vmatpush1.bf16.msra.mxu0 %v1223
    %1233 = vmatprep.subr.bf16.mxu0 0
    %1234 = vmatpush1.bf16.msra.mxu0 0
    %1235 = vmatprep.subr.bf16.mxu0 0
    %1236 = vmatpush1.bf16.msra.mxu0 0
    %1237 = vmatprep.subr.bf16.mxu0 0
    %1238 = vmatpush1.bf16.msra.mxu0 0
    %1239 = vmatprep.subr.bf16.mxu0 0
    %1240 = vmatpush1.bf16.msra.mxu0 0
    %1241 = vmatprep.subr.bf16.mxu0 0
    %1242 = vmatpush1.bf16.msra.mxu0 0
    %1243 = vmatprep.subr.bf16.mxu0 0
    %1244 = vmatpush1.bf16.msra.mxu0 0
    %1245 = vmatprep.subr.bf16.mxu0 0
    %1246 = vmatpush1.bf16.msra.mxu0 0
    %1247 = vmatprep.subr.bf16.mxu0 0
    %1248 = vmatpush1.bf16.msra.mxu0 0
    %1249 = vmatprep.subr.bf16.mxu0 0
    %1250 = vmatpush1.bf16.msra.mxu0 0
    %1251 = vmatprep.subr.bf16.mxu0 0
    %1252 = vmatpush1.bf16.msra.mxu0 0
    %1253 = vmatprep.subr.bf16.mxu0 0
    %1254 = vmatpush1.bf16.msra.mxu0 0
    %1255 = vmatprep.subr.bf16.mxu0 0
    %1256 = vmatpush1.bf16.msra.mxu0 0
    %1257 = vmatprep.subr.bf16.mxu0 0
    %1258 = vmatpush1.bf16.msra.mxu0 0
    %1259 = vmatprep.subr.bf16.mxu0 0
    %1260 = vmatpush1.bf16.msra.mxu0 0
    %1261 = vmatprep.mubr.bf16.mxu0 0
    %1262 = vmatmul.mubr.bf16.gmra.mrb[0].mxu0 %v1227
    %v1263 = vpop.f32.mrb[0].mxu0
    %v1264 = vadd.f32 %v1212, %v1263
    %v1265 = vpop.f32.mrb[0].mxu0
    %v1266 = vpop.f32.mrb[0].mxu0
    %v1267 = vadd.f32 %v1212, %v1266
    %v1268 = vpop.f32.mrb[0].mxu0
    %1269 = vdwg.mxu0
    %v1270 = vadd.f32 %v206, %v1264
    %v1271 = vadd.f32 %v207, %v1267
    %v1272 = vld [vmem:[#allocation12] sm:$0x1]
    %v1273 = vld [vmem:[#allocation14] sm:$0x1]
    %v1274 = vsel %vm232, %v1270, 0.0
    %1275 = vadd.xlane.f32.xlu0 %v1274
    %v1276 = vpop.xlane.xlu0 %1275
    %v1277 = vsel %vm232, %v1271, 0.0
    %1278 = vadd.xlane.f32.xlu0 %v1277
    %v1279 = vpop.xlane.xlu0 %1278
    %v1280 = vrcp.pop 32.0
    %v1281 = vmul.f32 %v1276, %v1280
    %v1282 = vmul.f32 %v1279, %v1280
    %v1283 = vsub.f32 %v1270, %v1281
    %v1284 = vsub.f32 %v1271, %v1282
    %v1285 = vmul.f32 %v1283, %v1283
    %v1286 = vmul.f32 %v1284, %v1284
    %v1287 = vsel %vm232, %v1285, 0.0
    %1288 = vadd.xlane.f32.xlu0 %v1287
    %v1289 = vpop.xlane.xlu0 %1288
    %v1290 = vsel %vm232, %v1286, 0.0
    %1291 = vadd.xlane.f32.xlu0 %v1290
    %v1292 = vpop.xlane.xlu0 %1291
    %v1293 = vmul.f32 %v1289, %v1280
    %v1294 = vmul.f32 %v1292, %v1280
    %v1295 = vadd.f32 %v1293, 1e-05
    %v1296 = vadd.f32 %v1294, 1e-05
    %v1297 = vrsqrt.pop %v1295
    %v1298 = vrsqrt.pop %v1296
    %v1299 = vmul.f32 %v1283, %v1297
    %v1300 = vmul.f32 %v1284, %v1298
    %v1302 = vlaneseq
    %v1303 = vshrl.u32 %v1302, 7
    %v1304 = vsub.s32 0, %v1303
    %v1305 = vrot.slane %v1272, %v1304
    %v1307 = vmul.f32 %v1299, %v1305
    %v1308 = vmul.f32 %v1300, %v1305
    %v1310 = vlaneseq
    %v1311 = vshrl.u32 %v1310, 7
    %v1312 = vsub.s32 0, %v1311
    %v1313 = vrot.slane %v1273, %v1312
    %v1315 = vadd.f32 %v1307, %v1313
    %v1316 = vadd.f32 %v1308, %v1313
    %v1317 = vpack.c.bf16 %v1316, %v1315
    %v1318 = vld [vmem:[#allocation15] sm:$0xf]
    %v1319 = vld [vmem:[#allocation15 + $0x4] sm:$0xf]
    %v1320 = vld [vmem:[#allocation15 + $0x8] sm:$0xf]
    %v1321 = vld [vmem:[#allocation15 + $0xc] sm:$0xf]
    %v1322 = vld [vmem:[#allocation17] sm:$0x1]
    %v1324 = vlaneseq
    %v1325 = vshrl.u32 %v1324, 7
    %v1326 = vsub.s32 0, %v1325
    %v1327 = vrot.slane %v1322, %v1326
    %v1333 = vunpack.c.l.b16 %v1318
    %v1334 = vunpack.c.l.b16 %v1319
    %v1335 = vunpack.c.l.b16 %v1320
    %v1336 = vunpack.c.l.b16 %v1321
    %v1337 = vpack.c.b16 %v1334, %v1333
    %v1338 = vpack.c.b16 %v1336, %v1335
    %v1342 = vsel %vm232, %v1317, 0
    %1344 = vmatprep.subr.bf16.mxu0 0
    %1345 = vmatpush1.bf16.msra.mxu0 %v1337
    %1346 = vmatprep.subr.bf16.mxu0 0
    %1347 = vmatpush1.bf16.msra.mxu0 %v1338
    %1348 = vmatprep.subr.bf16.mxu0 0
    %1349 = vmatpush1.bf16.msra.mxu0 0
    %1350 = vmatprep.subr.bf16.mxu0 0
    %1351 = vmatpush1.bf16.msra.mxu0 0
    %1352 = vmatprep.subr.bf16.mxu0 0
    %1353 = vmatpush1.bf16.msra.mxu0 0
    %1354 = vmatprep.subr.bf16.mxu0 0
    %1355 = vmatpush1.bf16.msra.mxu0 0
    %1356 = vmatprep.subr.bf16.mxu0 0
    %1357 = vmatpush1.bf16.msra.mxu0 0
    %1358 = vmatprep.subr.bf16.mxu0 0
    %1359 = vmatpush1.bf16.msra.mxu0 0
    %1360 = vmatprep.subr.bf16.mxu0 0
    %1361 = vmatpush1.bf16.msra.mxu0 0
    %1362 = vmatprep.subr.bf16.mxu0 0
    %1363 = vmatpush1.bf16.msra.mxu0 0
    %1364 = vmatprep.subr.bf16.mxu0 0
    %1365 = vmatpush1.bf16.msra.mxu0 0
    %1366 = vmatprep.subr.bf16.mxu0 0
    %1367 = vmatpush1.bf16.msra.mxu0 0
    %1368 = vmatprep.subr.bf16.mxu0 0
    %1369 = vmatpush1.bf16.msra.mxu0 0
    %1370 = vmatprep.subr.bf16.mxu0 0
    %1371 = vmatpush1.bf16.msra.mxu0 0
    %1372 = vmatprep.subr.bf16.mxu0 0
    %1373 = vmatpush1.bf16.msra.mxu0 0
    %1374 = vmatprep.subr.bf16.mxu0 0
    %1375 = vmatpush1.bf16.msra.mxu0 0
    %1376 = vmatprep.mubr.bf16.mxu0 0
    %1377 = vmatmul.mubr.bf16.gmra.mrb[0].mxu0 %v1342
    %v1378 = vpop.f32.mrb[0].mxu0
    %v1379 = vadd.f32 %v1327, %v1378
    %v1380 = vpop.f32.mrb[0].mxu0
    %v1381 = vpop.f32.mrb[0].mxu0
    %v1382 = vadd.f32 %v1327, %v1381
    %v1383 = vpop.f32.mrb[0].mxu0
    %1384 = vdwg.mxu0
    %v1385 = vmax.f32 %v1379, 0.0
    %v1386 = vmax.f32 %v1382, 0.0
    %v1387 = vpack.c.bf16 %v1386, %v1385
    %v1388 = vld [vmem:[#allocation18] sm:$0xf]
    %v1389 = vld [vmem:[#allocation18 + $0x4] sm:$0xf]
    %v1390 = vld [vmem:[#allocation18 + $0x8] sm:$0xf]
    %v1391 = vld [vmem:[#allocation18 + $0xc] sm:$0xf]
    %v1392 = vld [vmem:[#allocation18 + $0x10] sm:$0xf]
    %v1393 = vld [vmem:[#allocation18 + $0x14] sm:$0xf]
    %v1394 = vld [vmem:[#allocation18 + $0x18] sm:$0xf]
    %v1395 = vld [vmem:[#allocation18 + $0x1c] sm:$0xf]
    %v1396 = vld [vmem:[#allocation20] sm:$0x1]
    %v1398 = vlaneseq
    %v1399 = vshrl.u32 %v1398, 7
    %v1400 = vsub.s32 0, %v1399
    %v1401 = vrot.slane %v1396, %v1400
    %v1411 = vunpack.c.l.b16 %v1388
    %v1412 = vunpack.c.l.b16 %v1389
    %v1413 = vunpack.c.l.b16 %v1390
    %v1414 = vunpack.c.l.b16 %v1391
    %v1415 = vunpack.c.l.b16 %v1392
    %v1416 = vunpack.c.l.b16 %v1393
    %v1417 = vunpack.c.l.b16 %v1394
    %v1418 = vunpack.c.l.b16 %v1395
    %v1419 = vpack.c.b16 %v1412, %v1411
    %v1420 = vpack.c.b16 %v1414, %v1413
    %v1421 = vpack.c.b16 %v1416, %v1415
    %v1422 = vpack.c.b16 %v1418, %v1417
    %vm1427 = vcmask 523264
    %v1429 = vsel %vm1427, %v1387, 0
    %1431 = vmatprep.subr.bf16.mxu0 0
    %1432 = vmatpush1.bf16.msra.mxu0 %v1419
    %1433 = vmatprep.subr.bf16.mxu0 0
    %1434 = vmatpush1.bf16.msra.mxu0 %v1420
    %1435 = vmatprep.subr.bf16.mxu0 0
    %1436 = vmatpush1.bf16.msra.mxu0 %v1421
    %1437 = vmatprep.subr.bf16.mxu0 0
    %1438 = vmatpush1.bf16.msra.mxu0 %v1422
    %1439 = vmatprep.subr.bf16.mxu0 0
    %1440 = vmatpush1.bf16.msra.mxu0 0
    %1441 = vmatprep.subr.bf16.mxu0 0
    %1442 = vmatpush1.bf16.msra.mxu0 0
    %1443 = vmatprep.subr.bf16.mxu0 0
    %1444 = vmatpush1.bf16.msra.mxu0 0
    %1445 = vmatprep.subr.bf16.mxu0 0
    %1446 = vmatpush1.bf16.msra.mxu0 0
    %1447 = vmatprep.subr.bf16.mxu0 0
    %1448 = vmatpush1.bf16.msra.mxu0 0
    %1449 = vmatprep.subr.bf16.mxu0 0
    %1450 = vmatpush1.bf16.msra.mxu0 0
    %1451 = vmatprep.subr.bf16.mxu0 0
    %1452 = vmatpush1.bf16.msra.mxu0 0
    %1453 = vmatprep.subr.bf16.mxu0 0
    %1454 = vmatpush1.bf16.msra.mxu0 0
    %1455 = vmatprep.subr.bf16.mxu0 0
    %1456 = vmatpush1.bf16.msra.mxu0 0
    %1457 = vmatprep.subr.bf16.mxu0 0
    %1458 = vmatpush1.bf16.msra.mxu0 0
    %1459 = vmatprep.subr.bf16.mxu0 0
    %1460 = vmatpush1.bf16.msra.mxu0 0
    %1461 = vmatprep.subr.bf16.mxu0 0
    %1462 = vmatpush1.bf16.msra.mxu0 0
    %1463 = vmatprep.mubr.bf16.mxu0 0
    %1464 = vmatmul.mubr.bf16.gmra.mrb[0].mxu0 %v1429
    %v1465 = vpop.f32.mrb[0].mxu0
    %v1466 = vadd.f32 %v1401, %v1465
    %v1467 = vpop.f32.mrb[0].mxu0
    %v1468 = vpop.f32.mrb[0].mxu0
    %v1469 = vadd.f32 %v1401, %v1468
    %v1470 = vpop.f32.mrb[0].mxu0
    %1471 = vdwg.mxu0
    %v1472 = vadd.f32 %v1315, %v1466
    %v1473 = vadd.f32 %v1316, %v1469
    %v1474 = vld [vmem:[#allocation21] sm:$0x1]
    %v1475 = vld [vmem:[#allocation23] sm:$0x1]
    %v1476 = vsel %vm232, %v1472, 0.0
    %1477 = vadd.xlane.f32.xlu0 %v1476
    %v1478 = vpop.xlane.xlu0 %1477
    %v1479 = vsel %vm232, %v1473, 0.0
    %1480 = vadd.xlane.f32.xlu0 %v1479
    %v1481 = vpop.xlane.xlu0 %1480
    %v1482 = vmul.f32 %v1478, %v1280
    %v1483 = vmul.f32 %v1481, %v1280
    %v1484 = vsub.f32 %v1472, %v1482
    %v1485 = vsub.f32 %v1473, %v1483
    %v1486 = vmul.f32 %v1484, %v1484
    %v1487 = vmul.f32 %v1485, %v1485
    %v1488 = vsel %vm232, %v1486, 0.0
    %1489 = vadd.xlane.f32.xlu0 %v1488
    %v1490 = vpop.xlane.xlu0 %1489
    %v1491 = vsel %vm232, %v1487, 0.0
    %1492 = vadd.xlane.f32.xlu0 %v1491
    %v1493 = vpop.xlane.xlu0 %1492
    %v1494 = vmul.f32 %v1490, %v1280
    %v1495 = vmul.f32 %v1493, %v1280
    %v1496 = vadd.f32 %v1494, 1e-05
    %v1497 = vadd.f32 %v1495, 1e-05
    %v1498 = vrsqrt.pop %v1496
    %v1499 = vrsqrt.pop %v1497
    %v1500 = vmul.f32 %v1484, %v1498
    %v1501 = vmul.f32 %v1485, %v1499
    %v1503 = vlaneseq
    %v1504 = vshrl.u32 %v1503, 7
    %v1505 = vsub.s32 0, %v1504
    %v1506 = vrot.slane %v1474, %v1505
    %v1508 = vmul.f32 %v1500, %v1506
    %v1509 = vmul.f32 %v1501, %v1506
    %v1511 = vlaneseq
    %v1512 = vshrl.u32 %v1511, 7
    %v1513 = vsub.s32 0, %v1512
    %v1514 = vrot.slane %v1475, %v1513
    %v1516 = vadd.f32 %v1508, %v1514
    %v1517 = vadd.f32 %v1509, %v1514
    %v1518 = vpack.c.bf16 %v1516, %v1516
    %v1519 = vpack.c.bf16 %v1517, %v1517
    %vm1520 = vcmask 257024
    %1521 = vst.msk [vmem:[#allocation24] sm:$0xf] %vm1520, %v1518
    %1522 = vst.msk [vmem:[#allocation24 + $0x4] sm:$0xf] %vm1520, %v1519
    // Predicated region
    $region106: #{tpu_custom_call.1} parent=1 // pred_check
      _
    $region107: #{tpu_custom_call.1} parent=1 // pred_check_branch
      %1524 = sbr.rel (0) target = $region109
    $region108: #{tpu_custom_call.1} parent=1 // pred_region
      %s1526 = ssub.s32 128, 128
      %1527 = vsyncadd [#allocation5], %s1526
      %s1528 = sshll.u32 [#allocation24], 4
      %s1529 = int_to_ptr.vmem [resolvable:$true] %s1528
      %1534 = dma.vmem_to_hbm [thread:$0]  %s1529, 128, %s13, [#allocation5], 64, 64, 4
    $region109: #{tpu_custom_call.1} parent=1 // pred_fallthru
      _
    // Predicated region
    $region110: #{tpu_custom_call.1} parent=1 // pred_check
      _
    $region111: #{tpu_custom_call.1} parent=1 // pred_check_branch
      %1536 = sbr.rel (0) target = $region113
    $region112: #{tpu_custom_call.1} parent=1 // pred_region
      %1537 = dma.done [#allocation5], 128
    $region113: #{tpu_custom_call.1} parent=1 // pred_fallthru
      _
    %1538 = vsyncpa [#allocation4], 1
    %1539 = vsyncpa [#allocation7], 1
    %1540 = vsyncpa [#allocation10], 1
    %1541 = vsyncpa [#allocation13], 1
    %1542 = vsyncpa [#allocation16], 1
    %1543 = vsyncpa [#allocation19], 1
    %1544 = vsyncpa [#allocation22], 1
    %1545 = vsyncpa [#allocation5], 1

</llo_original>
